<compile_context>
chip_gen: v6e
topology: v6e:2x2x1
jax: 0.10.0
libtpu: 0.0.40
codegen_flags: <defaults>
</compile_context>

<pallas_src>
import functools

import jax
import jax.numpy as jnp
from jax import lax
from jax.experimental import pallas as pl
from jax.experimental.pallas import tpu as pltpu

EPS = 1e-5                       # PyTorch BatchNorm2d default eps
VMEM_LIMIT = 48 * 1024 * 1024    # leave headroom below v7x's 64 MiB/TC


def _full_spec(shape):
    zeros = (0,) * len(shape)
    return pl.BlockSpec(shape, lambda i, _z=zeros: _z)


# ---------------------------------------------------------------------------
# Fused ResidualBlock kernel (whole batch in one block, lane-packed layout)
# ---------------------------------------------------------------------------
def _residual_block_kernel(*refs, downsample, shortcut):
    (x_ref, g1_ref, b1_ref, f1_ref, s1_ref, r1_ref,
     g2_ref, b2_ref, f2_ref, s2_ref, r2_ref) = refs[:11]
    k = 11
    rsel_ref = None
    wsc_ref = None
    if downsample:
        rsel_ref = refs[k]
        k += 1
    if shortcut != "identity":
        wsc_ref = refs[k]
        k += 1
    o_ref, pad1_ref, pad2_ref = refs[k], refs[k + 1], refs[k + 2]

    N, Hin, L1 = x_ref.shape            # x lane-packed: lane = w*Cin + ci
    Cin = f1_ref.shape[1]
    Win = L1 // Cin
    Cout = f2_ref.shape[1]
    L2 = r1_ref.shape[2]                # = W1 * Cout (conv1 output lanes)
    W1 = L2 // Cout
    stride = 2 if downsample else 1
    H1 = Hin // stride
    M0 = N * Hin
    M1 = N * H1

    # ---- BN1 (training-mode batch statistics) + ReLU, two-pass variance ----
    x = x_ref[...].astype(jnp.float32).reshape(M0, L1)
    f1 = f1_ref[...]                    # (L1, Cin) 0/1 fold (lanes -> channels)
    s1 = s1_ref[...]                    # (Cin, L1) 0/1 spread (channels -> lanes)
    inv_cnt1 = 1.0 / float(M0 * Win)
    mean1 = jnp.dot(jnp.sum(x, axis=0, keepdims=True), f1,
                    preferred_element_type=jnp.float32) * inv_cnt1      # (1, Cin)
    cen = x - jnp.dot(mean1, s1, preferred_element_type=jnp.float32)
    var1 = jnp.dot(jnp.sum(cen * cen, axis=0, keepdims=True), f1,
                   preferred_element_type=jnp.float32) * inv_cnt1       # biased
    scale1 = g1_ref[...] * lax.rsqrt(var1 + EPS)
    bias1 = b1_ref[...] - mean1 * scale1
    act1 = jnp.maximum(
        x * jnp.dot(scale1, s1, preferred_element_type=jnp.float32)
        + jnp.dot(bias1, s1, preferred_element_type=jnp.float32), 0.0)  # (M0, L1)

    # ---- conv1: 3 row-shifted matmuls vs per-kh Toeplitz weights ------------
    zrow1 = jnp.zeros((N, 1, L1), jnp.float32)
    pad1_ref[:, 0:1, :] = zrow1                         # H halo rows only
    pad1_ref[:, Hin + 1:Hin + 2, :] = zrow1
    pad1_ref[:, 1:Hin + 1, :] = act1.reshape(N, Hin, L1)

    y = None
    for kh in range(3):
        lhs = pad1_ref[:, kh:kh + Hin, :].reshape(M0, L1).astype(jnp.bfloat16)
        c = jnp.dot(lhs, r1_ref[kh], preferred_element_type=jnp.float32)
        y = c if y is None else y + c                   # register accumulation
    if downsample:
        # exact 0/1 row-selection matmul: keep rows h = 2*ho of every image
        h1 = jnp.dot(rsel_ref[...], y, preferred_element_type=jnp.float32)
    else:
        h1 = y                                          # (M1, L2)

    # ---- BN2 + ReLU ---------------------------------------------------------
    f2 = f2_ref[...]
    s2 = s2_ref[...]
    inv_cnt2 = 1.0 / float(M1 * W1)
    mean2 = jnp.dot(jnp.sum(h1, axis=0, keepdims=True), f2,
                    preferred_element_type=jnp.float32) * inv_cnt2
    cen2 = h1 - jnp.dot(mean2, s2, preferred_element_type=jnp.float32)
    var2 = jnp.dot(jnp.sum(cen2 * cen2, axis=0, keepdims=True), f2,
                   preferred_element_type=jnp.float32) * inv_cnt2
    scale2 = g2_ref[...] * lax.rsqrt(var2 + EPS)
    bias2 = b2_ref[...] - mean2 * scale2
    act2 = jnp.maximum(
        h1 * jnp.dot(scale2, s2, preferred_element_type=jnp.float32)
        + jnp.dot(bias2, s2, preferred_element_type=jnp.float32), 0.0)  # (M1, L2)

    # ---- conv2 (stride 1): 3 row-shifted matmuls ----------------------------
    zrow2 = jnp.zeros((N, 1, L2), jnp.float32)
    pad2_ref[:, 0:1, :] = zrow2
    pad2_ref[:, H1 + 1:H1 + 2, :] = zrow2
    pad2_ref[:, 1:H1 + 1, :] = act2.reshape(N, H1, L2)

    out = None
    for kh in range(3):
        lhs = pad2_ref[:, kh:kh + H1, :].reshape(M1, L2).astype(jnp.bfloat16)
        c = jnp.dot(lhs, r2_ref[kh], preferred_element_type=jnp.float32)
        out = c if out is None else out + c

    # ---- fused shortcut -----------------------------------------------------
    if shortcut == "identity":
        out = out + x                                   # exact f32 add
    elif shortcut == "proj":                            # 1x1 conv, stride 1
        out = out + jnp.dot(x.astype(jnp.bfloat16), wsc_ref[...],
                            preferred_element_type=jnp.float32)
    else:                                               # "proj2": 1x1, stride 2
        xe = jnp.dot(rsel_ref[...], x, preferred_element_type=jnp.float32)
        out = out + jnp.dot(xe.astype(jnp.bfloat16), wsc_ref[...],
                            preferred_element_type=jnp.float32)

    # single lane-dense store of the whole block output
    o_ref[...] = out.astype(o_ref.dtype)


# ---------------------------------------------------------------------------
# Wrapper-side constant matrices (layout plumbing lives in XLA, not the kernel)
# ---------------------------------------------------------------------------
def _fold_matrix(W, C):
    """(W*C, C) 0/1 matrix folding lane-packed (w, c) lanes onto channels."""
    return jnp.kron(jnp.ones((W, 1), jnp.float32),
                    jnp.eye(C, dtype=jnp.float32))


def _conv3x3_rhs(w_hwio, Win, stride):
    """Per-kh (Win*Cin, Wo*Cout) Toeplitz matrices.

    rhs_kh[wi*Cin+ci, wo*Cout+co] = w[kh, kw, ci, co] with kw = wi - stride*wo + 1
    when 0 <= kw <= 2, else 0.  Absorbs the kw taps, the W zero-padding and the
    column stride into a constant matrix.
    """
    _, _, Cin, Cout = w_hwio.shape
    Wo = Win // stride
    wi = jnp.arange(Win)[:, None]
    wo = jnp.arange(Wo)[None, :]
    mats = []
    for kh in range(3):
        rhs = jnp.zeros((Win * Cin, Wo * Cout), jnp.float32)
        for kw in range(3):
            sel = (wi == stride * wo + (kw - 1)).astype(jnp.float32)
            rhs = rhs + jnp.kron(sel, w_hwio[kh, kw].astype(jnp.float32))
        mats.append(rhs)
    return jnp.stack(mats, axis=0)          # (3, Win*Cin, Wo*Cout)


def _conv1x1_rhs(w_io, Win, stride):
    """(Win*Cin, Wo*Cout) block matrix for the 1x1 shortcut (stride 1 or 2)."""
    Wo = Win // stride
    wi = jnp.arange(Win)[:, None]
    wo = jnp.arange(Wo)[None, :]
    sel = (wi == stride * wo).astype(jnp.float32)
    return jnp.kron(sel, w_io.astype(jnp.float32))


def _row_select(N, Hin, stride):
    """(N*Ho, N*Hin) 0/1 matrix keeping rows h = stride*ho of every image."""
    Ho = Hin // stride
    h = jnp.arange(Hin)[None, :]
    ho = jnp.arange(Ho)[:, None]
    sel = (h == stride * ho).astype(jnp.float32)
    return jnp.kron(jnp.eye(N, dtype=jnp.float32), sel)


# ---------------------------------------------------------------------------
# ResidualBlock / ResNetStage forward (Pallas)
# ---------------------------------------------------------------------------
def residual_block_forward(x_nhwc, p, downsample, out_dtype=jnp.float32):
    N, Hin, Win, Cin = x_nhwc.shape
    Cout = p["conv1_w"].shape[-1]
    if downsample and Cout == Cin:
        # PyTorch ResidualBlock defines no shortcut in this configuration.
        raise ValueError("ResidualBlock with downsample=True requires Cout != Cin")
    stride = 2 if downsample else 1
    assert Hin % stride == 0 and Win % stride == 0
    H1, W1 = Hin // stride, Win // stride
    L1, L2 = Win * Cin, W1 * Cout
    M1 = N * H1

    if Cout == Cin and not downsample:
        shortcut = "identity"
    elif downsample:
        shortcut = "proj2"
    else:
        shortcut = "proj"

    fold1 = _fold_matrix(Win, Cin)
    fold2 = _fold_matrix(W1, Cout)
    args = [
        x_nhwc.reshape(N, Hin, L1),                       # free lane packing
        p["bn1_gamma"].reshape(1, Cin).astype(jnp.float32),
        p["bn1_beta"].reshape(1, Cin).astype(jnp.float32),
        fold1, fold1.T,
        _conv3x3_rhs(p["conv1_w"], Win, stride).astype(jnp.bfloat16),
        p["bn2_gamma"].reshape(1, Cout).astype(jnp.float32),
        p["bn2_beta"].reshape(1, Cout).astype(jnp.float32),
        fold2, fold2.T,
        _conv3x3_rhs(p["conv2_w"], W1, 1).astype(jnp.bfloat16),
    ]
    if downsample:
        args.append(_row_select(N, Hin, 2))
    if shortcut != "identity":
        args.append(_conv1x1_rhs(p["shortcut_w"], Win, stride).astype(jnp.bfloat16))

    kern = functools.partial(_residual_block_kernel,
                             downsample=downsample, shortcut=shortcut)
    out2d = pl.pallas_call(
        kern,
        out_shape=jax.ShapeDtypeStruct((M1, L2), out_dtype),
        grid=(1,),
        in_specs=[_full_spec(a.shape) for a in args],
        out_specs=_full_spec((M1, L2)),
        scratch_shapes=[pltpu.VMEM((N, Hin + 2, L1), jnp.float32),   # H-pad act1
                        pltpu.VMEM((N, H1 + 2, L2), jnp.float32)],   # H-pad act2
        compiler_params=pltpu.CompilerParams(
            dimension_semantics=("arbitrary",),
            vmem_limit_bytes=VMEM_LIMIT),
    )(*args)
    return out2d.reshape(N, H1, W1, Cout)     # free row-major reshape in HBM


def resnet_stage_forward(x_nchw, block_params, downsample):
    # layout glue: NCHW (PyTorch) -> NHWC lane-friendly kernels -> back to NCHW
    h = jnp.transpose(x_nchw, (0, 2, 3, 1))
    nb = len(block_params)
    for i, p in enumerate(block_params):
        last = (i == nb - 1)
        h = residual_block_forward(
            h, p, downsample if i == 0 else False,
            out_dtype=jnp.float32 if last else jnp.bfloat16)   # bf16 inter-block
    return jnp.transpose(h, (0, 3, 1, 2))


# ---------------------------------------------------------------------------
# Pure-JAX reference (same math and precision policy: bf16 conv operands with
# f32 accumulation, bf16 inter-block activations) for validation.
# ---------------------------------------------------------------------------
def _ref_bn_relu(x, gamma, beta):
    mean = jnp.mean(x, axis=(0, 1, 2), keepdims=True)
    var = jnp.mean(jnp.square(x - mean), axis=(0, 1, 2), keepdims=True)
    y = (x - mean) * lax.rsqrt(var + EPS) * gamma + beta
    return jnp.maximum(y, 0.0)


def _ref_conv3x3(x, w, stride):
    return lax.conv_general_dilated(
        x.astype(jnp.bfloat16), w.astype(jnp.bfloat16),
        window_strides=(stride, stride), padding=((1, 1), (1, 1)),
        dimension_numbers=("NHWC", "HWIO", "NHWC"),
        preferred_element_type=jnp.float32)


def _ref_conv1x1(x, w, stride):
    return lax.conv_general_dilated(
        x.astype(jnp.bfloat16), w[None, None].astype(jnp.bfloat16),
        window_strides=(stride, stride), padding=((0, 0), (0, 0)),
        dimension_numbers=("NHWC", "HWIO", "NHWC"),
        preferred_element_type=jnp.float32)


def residual_block_reference(x, p, downsample):
    stride = 2 if downsample else 1
    h = _ref_conv3x3(_ref_bn_relu(x, p["bn1_gamma"], p["bn1_beta"]),
                     p["conv1_w"], stride)
    h = _ref_conv3x3(_ref_bn_relu(h, p["bn2_gamma"], p["bn2_beta"]),
                     p["conv2_w"], 1)
    if "shortcut_w" in p:
        sc = _ref_conv1x1(x, p["shortcut_w"], stride)
    elif not downsample:
        sc = x
    else:
        raise ValueError("invalid block configuration")
    return h + sc


def resnet_stage_reference(x_nchw, block_params, downsample):
    h = jnp.transpose(x_nchw, (0, 2, 3, 1))
    nb = len(block_params)
    for i, p in enumerate(block_params):
        h = residual_block_reference(h, p, downsample if i == 0 else False)
        if i != nb - 1:   # match the kernel's bf16 inter-block activations
            h = h.astype(jnp.bfloat16).astype(jnp.float32)
    return jnp.transpose(h, (0, 3, 1, 2))


# ---------------------------------------------------------------------------
# Deterministic parameter init (shapes from the module __init__)
# ---------------------------------------------------------------------------
def init_block_params(key, Cin, Cout):
    ks = jax.random.split(key, 7)
    p = {
        "bn1_gamma": 1.0 + 0.1 * jax.random.normal(ks[0], (Cin,), jnp.float32),
        "bn1_beta": 0.1 * jax.random.normal(ks[1], (Cin,), jnp.float32),
        "conv1_w": 0.2 * jax.random.normal(ks[2], (3, 3, Cin, Cout), jnp.float32),
        "bn2_gamma": 1.0 + 0.1 * jax.random.normal(ks[3], (Cout,), jnp.float32),
        "bn2_beta": 0.1 * jax.random.normal(ks[4], (Cout,), jnp.float32),
        "conv2_w": 0.2 * jax.random.normal(ks[5], (3, 3, Cout, Cout), jnp.float32),
    }
    if Cout != Cin:   # PyTorch: 1x1 conv shortcut when channel count changes
        p["shortcut_w"] = 0.2 * jax.random.normal(ks[6], (Cin, Cout), jnp.float32)
    return p


def init_stage_params(key, Cin, Cout, num_blocks):
    keys = jax.random.split(key, num_blocks)
    params = [init_block_params(keys[0], Cin, Cout)]
    for i in range(1, num_blocks):
        params.append(init_block_params(keys[i], Cout, Cout))
    return params


if __name__ == "__main__":
    key = jax.random.PRNGKey(0)
    stage_fwd = jax.jit(resnet_stage_forward, static_argnames=("downsample",))

    # Config 1: downsampling stage (stride-2 conv + stride-2 1x1 projection,
    # followed by an identity-shortcut block).
    N, Cin, H, W = 2, 4, 16, 16
    Cout, num_blocks = 8, 2
    key, xk, pk = jax.random.split(key, 3)
    x1 = jax.random.normal(xk, (N, Cin, H, W), jnp.float32)
    params1 = init_stage_params(pk, Cin, Cout, num_blocks)

    out1 = jax.block_until_ready(stage_fwd(x1, params1, downsample=True))
    ref1 = jax.block_until_ready(resnet_stage_reference(x1, params1, True))
    assert out1.shape == (N, Cout, H // 2, W // 2), out1.shape
    if not jnp.allclose(out1, ref1, rtol=2e-2, atol=2e-2):
        raise AssertionError(
            "downsample stage mismatch, max abs err="
            f"{float(jnp.max(jnp.abs(out1 - ref1)))}")

    # Config 2: stride-1 stage with a channel-projection shortcut.
    key, xk2, pk2 = jax.random.split(key, 3)
    x2 = jax.random.normal(xk2, (N, Cin, H, W), jnp.float32)
    params2 = init_stage_params(pk2, Cin, Cout, 1)
    out2 = jax.block_until_ready(stage_fwd(x2, params2, downsample=False))
    ref2 = jax.block_until_ready(resnet_stage_reference(x2, params2, False))
    assert out2.shape == (N, Cout, H, W), out2.shape
    if not jnp.allclose(out2, ref2, rtol=2e-2, atol=2e-2):
        raise AssertionError(
            "stride-1 stage mismatch, max abs err="
            f"{float(jnp.max(jnp.abs(out2 - ref2)))}")

    print("KERNEL_OK")
</pallas_src>

<mosaic_0001>
module attributes {stable_mosaic.version = 11 : i64} {
  func.func @_residual_block_kernel(%arg0: i32, %arg1: memref<2x16x64xf32, #tpu.memory_space<vmem>>, %arg2: memref<1x4xf32, #tpu.memory_space<vmem>>, %arg3: memref<1x4xf32, #tpu.memory_space<vmem>>, %arg4: memref<64x4xf32, #tpu.memory_space<vmem>>, %arg5: memref<4x64xf32, #tpu.memory_space<vmem>>, %arg6: memref<3x64x64xbf16, #tpu.memory_space<vmem>>, %arg7: memref<1x8xf32, #tpu.memory_space<vmem>>, %arg8: memref<1x8xf32, #tpu.memory_space<vmem>>, %arg9: memref<64x8xf32, #tpu.memory_space<vmem>>, %arg10: memref<8x64xf32, #tpu.memory_space<vmem>>, %arg11: memref<3x64x64xbf16, #tpu.memory_space<vmem>>, %arg12: memref<16x32xf32, #tpu.memory_space<vmem>>, %arg13: memref<64x64xbf16, #tpu.memory_space<vmem>>, %arg14: memref<16x64xbf16, #tpu.memory_space<vmem>>, %arg15: memref<2x18x64xf32, #tpu.memory_space<vmem>>, %arg16: memref<2x10x64xf32, #tpu.memory_space<vmem>>) attributes {dimension_semantics = [#tpu.dimension_semantics<arbitrary>], iteration_bounds = array<i64: 1>, scalar_prefetch = 0 : i64, scratch_operands = 2 : i64, tpu.core_type = #tpu.core_type<tc>, window_params = [{pipeline_mode = #tpu.pipeline_mode<synchronous>, transform_indices = @transform_0, window_bounds = array<i64: 2, 16, 64>}, {pipeline_mode = #tpu.pipeline_mode<synchronous>, transform_indices = @transform_1, window_bounds = array<i64: 1, 4>}, {pipeline_mode = #tpu.pipeline_mode<synchronous>, transform_indices = @transform_2, window_bounds = array<i64: 1, 4>}, {pipeline_mode = #tpu.pipeline_mode<synchronous>, transform_indices = @transform_3, window_bounds = array<i64: 64, 4>}, {pipeline_mode = #tpu.pipeline_mode<synchronous>, transform_indices = @transform_4, window_bounds = array<i64: 4, 64>}, {pipeline_mode = #tpu.pipeline_mode<synchronous>, transform_indices = @transform_5, window_bounds = array<i64: 3, 64, 64>}, {pipeline_mode = #tpu.pipeline_mode<synchronous>, transform_indices = @transform_6, window_bounds = array<i64: 1, 8>}, {pipeline_mode = #tpu.pipeline_mode<synchronous>, transform_indices = @transform_7, window_bounds = array<i64: 1, 8>}, {pipeline_mode = #tpu.pipeline_mode<synchronous>, transform_indices = @transform_8, window_bounds = array<i64: 64, 8>}, {pipeline_mode = #tpu.pipeline_mode<synchronous>, transform_indices = @transform_9, window_bounds = array<i64: 8, 64>}, {pipeline_mode = #tpu.pipeline_mode<synchronous>, transform_indices = @transform_10, window_bounds = array<i64: 3, 64, 64>}, {pipeline_mode = #tpu.pipeline_mode<synchronous>, transform_indices = @transform_11, window_bounds = array<i64: 16, 32>}, {pipeline_mode = #tpu.pipeline_mode<synchronous>, transform_indices = @transform_12, window_bounds = array<i64: 64, 64>}, {pipeline_mode = #tpu.pipeline_mode<synchronous>, transform_indices = @transform_13, window_bounds = array<i64: 16, 64>}]} {
    %c0 = arith.constant 0 : index
    %c0_0 = arith.constant 0 : index
    %c0_1 = arith.constant 0 : index
    %0 = vector.load %arg1[%c0, %c0_0, %c0_1] : memref<2x16x64xf32, #tpu.memory_space<vmem>>, vector<2x16x64xf32>
    %1 = vector.shape_cast %0 : vector<2x16x64xf32> to vector<32x64xf32>
    %c0_2 = arith.constant 0 : index
    %c0_3 = arith.constant 0 : index
    %2 = vector.load %arg4[%c0_2, %c0_3] : memref<64x4xf32, #tpu.memory_space<vmem>>, vector<64x4xf32>
    %c0_4 = arith.constant 0 : index
    %c0_5 = arith.constant 0 : index
    %3 = vector.load %arg5[%c0_4, %c0_5] : memref<4x64xf32, #tpu.memory_space<vmem>>, vector<4x64xf32>
    %cst = arith.constant dense<0.000000e+00> : vector<64xf32>
    %4 = vector.multi_reduction <add>, %1, %cst [0] : vector<32x64xf32> to vector<64xf32>
    %5 = vector.shape_cast %4 : vector<64xf32> to vector<1x64xf32>
    %cst_6 = arith.constant dense<0.000000e+00> : vector<1x4xf32>
    %6 = tpu.matmul %5, %2, %cst_6 {dimension_numbers = #tpu.dot_dimension_numbers<[1], [0], [0], [1], [0, 0, 1, 1], [], []>} : vector<1x64xf32>, vector<64x4xf32>, vector<1x4xf32> -> vector<1x4xf32>
    %cst_7 = arith.constant 0.001953125 : f32
    %7 = vector.broadcast %cst_7 : f32 to vector<1x4xf32>
    %8 = arith.mulf %6, %7 : vector<1x4xf32>
    %cst_8 = arith.constant dense<0.000000e+00> : vector<1x64xf32>
    %9 = tpu.matmul %8, %3, %cst_8 {dimension_numbers = #tpu.dot_dimension_numbers<[1], [0], [0], [1], [0, 0, 1, 1], [], []>} : vector<1x4xf32>, vector<4x64xf32>, vector<1x64xf32> -> vector<1x64xf32>
    %10 = vector.broadcast %9 : vector<1x64xf32> to vector<32x64xf32>
    %11 = arith.subf %1, %10 : vector<32x64xf32>
    %12 = arith.mulf %11, %11 : vector<32x64xf32>
    %cst_9 = arith.constant dense<0.000000e+00> : vector<64xf32>
    %13 = vector.multi_reduction <add>, %12, %cst_9 [0] : vector<32x64xf32> to vector<64xf32>
    %14 = vector.shape_cast %13 : vector<64xf32> to vector<1x64xf32>
    %cst_10 = arith.constant dense<0.000000e+00> : vector<1x4xf32>
    %15 = tpu.matmul %14, %2, %cst_10 {dimension_numbers = #tpu.dot_dimension_numbers<[1], [0], [0], [1], [0, 0, 1, 1], [], []>} : vector<1x64xf32>, vector<64x4xf32>, vector<1x4xf32> -> vector<1x4xf32>
    %cst_11 = arith.constant 0.001953125 : f32
    %16 = vector.broadcast %cst_11 : f32 to vector<1x4xf32>
    %17 = arith.mulf %15, %16 : vector<1x4xf32>
    %c0_12 = arith.constant 0 : index
    %c0_13 = arith.constant 0 : index
    %18 = vector.load %arg2[%c0_12, %c0_13] : memref<1x4xf32, #tpu.memory_space<vmem>>, vector<1x4xf32>
    %cst_14 = arith.constant 9.99999974E-6 : f32
    %19 = vector.broadcast %cst_14 : f32 to vector<1x4xf32>
    %20 = arith.addf %17, %19 : vector<1x4xf32>
    %21 = math.rsqrt %20 : vector<1x4xf32>
    %22 = arith.mulf %18, %21 : vector<1x4xf32>
    %c0_15 = arith.constant 0 : index
    %c0_16 = arith.constant 0 : index
    %23 = vector.load %arg3[%c0_15, %c0_16] : memref<1x4xf32, #tpu.memory_space<vmem>>, vector<1x4xf32>
    %24 = arith.mulf %8, %22 : vector<1x4xf32>
    %25 = arith.subf %23, %24 : vector<1x4xf32>
    %cst_17 = arith.constant dense<0.000000e+00> : vector<1x64xf32>
    %26 = tpu.matmul %22, %3, %cst_17 {dimension_numbers = #tpu.dot_dimension_numbers<[1], [0], [0], [1], [0, 0, 1, 1], [], []>} : vector<1x4xf32>, vector<4x64xf32>, vector<1x64xf32> -> vector<1x64xf32>
    %27 = vector.broadcast %26 : vector<1x64xf32> to vector<32x64xf32>
    %28 = arith.mulf %1, %27 : vector<32x64xf32>
    %cst_18 = arith.constant dense<0.000000e+00> : vector<1x64xf32>
    %29 = tpu.matmul %25, %3, %cst_18 {dimension_numbers = #tpu.dot_dimension_numbers<[1], [0], [0], [1], [0, 0, 1, 1], [], []>} : vector<1x4xf32>, vector<4x64xf32>, vector<1x64xf32> -> vector<1x64xf32>
    %30 = vector.broadcast %29 : vector<1x64xf32> to vector<32x64xf32>
    %31 = arith.addf %28, %30 : vector<32x64xf32>
    %cst_19 = arith.constant 0.000000e+00 : f32
    %32 = vector.broadcast %cst_19 : f32 to vector<32x64xf32>
    %33 = arith.maximumf %31, %32 : vector<32x64xf32>
    %cst_20 = arith.constant 0.000000e+00 : f32
    %34 = vector.broadcast %cst_20 : f32 to vector<2x1x64xf32>
    %c0_21 = arith.constant 0 : index
    %c0_22 = arith.constant 0 : index
    %c0_23 = arith.constant 0 : index
    %35 = vector.load %arg15[%c0_21, %c0_22, %c0_23] : memref<2x18x64xf32, #tpu.memory_space<vmem>>, vector<2x1x64xf32>
    tpu.vector_store %arg15[%c0_21, %c0_22, %c0_23], %34 {strides = array<i32>} : memref<2x18x64xf32, #tpu.memory_space<vmem>>, vector<2x1x64xf32>,
    %c0_24 = arith.constant 0 : index
    %c17 = arith.constant 17 : index
    %c0_25 = arith.constant 0 : index
    %36 = vector.load %arg15[%c0_24, %c17, %c0_25] : memref<2x18x64xf32, #tpu.memory_space<vmem>>, vector<2x1x64xf32>
    tpu.vector_store %arg15[%c0_24, %c17, %c0_25], %34 {strides = array<i32>} : memref<2x18x64xf32, #tpu.memory_space<vmem>>, vector<2x1x64xf32>,
    %37 = vector.shape_cast %33 : vector<32x64xf32> to vector<2x16x64xf32>
    %c0_26 = arith.constant 0 : index
    %c1 = arith.constant 1 : index
    %c0_27 = arith.constant 0 : index
    %38 = vector.load %arg15[%c0_26, %c1, %c0_27] : memref<2x18x64xf32, #tpu.memory_space<vmem>>, vector<2x16x64xf32>
    tpu.vector_store %arg15[%c0_26, %c1, %c0_27], %37 {strides = array<i32>} : memref<2x18x64xf32, #tpu.memory_space<vmem>>, vector<2x16x64xf32>,
    %c0_28 = arith.constant 0 : index
    %c0_29 = arith.constant 0 : index
    %c0_30 = arith.constant 0 : index
    %39 = vector.load %arg15[%c0_28, %c0_29, %c0_30] : memref<2x18x64xf32, #tpu.memory_space<vmem>>, vector<2x16x64xf32>
    %40 = vector.shape_cast %39 : vector<2x16x64xf32> to vector<32x64xf32>
    %41 = arith.truncf %40 : vector<32x64xf32> to vector<32x64xbf16>
    %c0_31 = arith.constant 0 : index
    %c0_32 = arith.constant 0 : index
    %c0_33 = arith.constant 0 : index
    %42 = vector.load %arg6[%c0_31, %c0_32, %c0_33] : memref<3x64x64xbf16, #tpu.memory_space<vmem>>, vector<1x64x64xbf16>
    %43 = vector.shape_cast %42 : vector<1x64x64xbf16> to vector<64x64xbf16>
    %cst_34 = arith.constant dense<0.000000e+00> : vector<32x64xf32>
    %44 = tpu.matmul %41, %43, %cst_34 {dimension_numbers = #tpu.dot_dimension_numbers<[1], [0], [0], [1], [0, 0, 1, 1], [], []>} : vector<32x64xbf16>, vector<64x64xbf16>, vector<32x64xf32> -> vector<32x64xf32>
    %c0_35 = arith.constant 0 : index
    %c1_36 = arith.constant 1 : index
    %c0_37 = arith.constant 0 : index
    %45 = vector.load %arg15[%c0_35, %c1_36, %c0_37] : memref<2x18x64xf32, #tpu.memory_space<vmem>>, vector<2x16x64xf32>
    %46 = vector.shape_cast %45 : vector<2x16x64xf32> to vector<32x64xf32>
    %47 = arith.truncf %46 : vector<32x64xf32> to vector<32x64xbf16>
    %c1_38 = arith.constant 1 : index
    %c0_39 = arith.constant 0 : index
    %c0_40 = arith.constant 0 : index
    %48 = vector.load %arg6[%c1_38, %c0_39, %c0_40] : memref<3x64x64xbf16, #tpu.memory_space<vmem>>, vector<1x64x64xbf16>
    %49 = vector.shape_cast %48 : vector<1x64x64xbf16> to vector<64x64xbf16>
    %cst_41 = arith.constant dense<0.000000e+00> : vector<32x64xf32>
    %50 = tpu.matmul %47, %49, %cst_41 {dimension_numbers = #tpu.dot_dimension_numbers<[1], [0], [0], [1], [0, 0, 1, 1], [], []>} : vector<32x64xbf16>, vector<64x64xbf16>, vector<32x64xf32> -> vector<32x64xf32>
    %51 = arith.addf %44, %50 : vector<32x64xf32>
    %c0_42 = arith.constant 0 : index
    %c2 = arith.constant 2 : index
    %c0_43 = arith.constant 0 : index
    %52 = vector.load %arg15[%c0_42, %c2, %c0_43] : memref<2x18x64xf32, #tpu.memory_space<vmem>>, vector<2x16x64xf32>
    %53 = vector.shape_cast %52 : vector<2x16x64xf32> to vector<32x64xf32>
    %54 = arith.truncf %53 : vector<32x64xf32> to vector<32x64xbf16>
    %c2_44 = arith.constant 2 : index
    %c0_45 = arith.constant 0 : index
    %c0_46 = arith.constant 0 : index
    %55 = vector.load %arg6[%c2_44, %c0_45, %c0_46] : memref<3x64x64xbf16, #tpu.memory_space<vmem>>, vector<1x64x64xbf16>
    %56 = vector.shape_cast %55 : vector<1x64x64xbf16> to vector<64x64xbf16>
    %cst_47 = arith.constant dense<0.000000e+00> : vector<32x64xf32>
    %57 = tpu.matmul %54, %56, %cst_47 {dimension_numbers = #tpu.dot_dimension_numbers<[1], [0], [0], [1], [0, 0, 1, 1], [], []>} : vector<32x64xbf16>, vector<64x64xbf16>, vector<32x64xf32> -> vector<32x64xf32>
    %58 = arith.addf %51, %57 : vector<32x64xf32>
    %c0_48 = arith.constant 0 : index
    %c0_49 = arith.constant 0 : index
    %59 = vector.load %arg12[%c0_48, %c0_49] : memref<16x32xf32, #tpu.memory_space<vmem>>, vector<16x32xf32>
    %cst_50 = arith.constant dense<0.000000e+00> : vector<16x64xf32>
    %60 = tpu.matmul %59, %58, %cst_50 {dimension_numbers = #tpu.dot_dimension_numbers<[1], [0], [0], [1], [0, 0, 1, 1], [], []>} : vector<16x32xf32>, vector<32x64xf32>, vector<16x64xf32> -> vector<16x64xf32>
    %c0_51 = arith.constant 0 : index
    %c0_52 = arith.constant 0 : index
    %61 = vector.load %arg9[%c0_51, %c0_52] : memref<64x8xf32, #tpu.memory_space<vmem>>, vector<64x8xf32>
    %c0_53 = arith.constant 0 : index
    %c0_54 = arith.constant 0 : index
    %62 = vector.load %arg10[%c0_53, %c0_54] : memref<8x64xf32, #tpu.memory_space<vmem>>, vector<8x64xf32>
    %cst_55 = arith.constant dense<0.000000e+00> : vector<64xf32>
    %63 = vector.multi_reduction <add>, %60, %cst_55 [0] : vector<16x64xf32> to vector<64xf32>
    %64 = vector.shape_cast %63 : vector<64xf32> to vector<1x64xf32>
    %cst_56 = arith.constant dense<0.000000e+00> : vector<1x8xf32>
    %65 = tpu.matmul %64, %61, %cst_56 {dimension_numbers = #tpu.dot_dimension_numbers<[1], [0], [0], [1], [0, 0, 1, 1], [], []>} : vector<1x64xf32>, vector<64x8xf32>, vector<1x8xf32> -> vector<1x8xf32>
    %cst_57 = arith.constant 7.812500e-03 : f32
    %66 = vector.broadcast %cst_57 : f32 to vector<1x8xf32>
    %67 = arith.mulf %65, %66 : vector<1x8xf32>
    %cst_58 = arith.constant dense<0.000000e+00> : vector<1x64xf32>
    %68 = tpu.matmul %67, %62, %cst_58 {dimension_numbers = #tpu.dot_dimension_numbers<[1], [0], [0], [1], [0, 0, 1, 1], [], []>} : vector<1x8xf32>, vector<8x64xf32>, vector<1x64xf32> -> vector<1x64xf32>
    %69 = vector.broadcast %68 : vector<1x64xf32> to vector<16x64xf32>
    %70 = arith.subf %60, %69 : vector<16x64xf32>
    %71 = arith.mulf %70, %70 : vector<16x64xf32>
    %cst_59 = arith.constant dense<0.000000e+00> : vector<64xf32>
    %72 = vector.multi_reduction <add>, %71, %cst_59 [0] : vector<16x64xf32> to vector<64xf32>
    %73 = vector.shape_cast %72 : vector<64xf32> to vector<1x64xf32>
    %cst_60 = arith.constant dense<0.000000e+00> : vector<1x8xf32>
    %74 = tpu.matmul %73, %61, %cst_60 {dimension_numbers = #tpu.dot_dimension_numbers<[1], [0], [0], [1], [0, 0, 1, 1], [], []>} : vector<1x64xf32>, vector<64x8xf32>, vector<1x8xf32> -> vector<1x8xf32>
    %cst_61 = arith.constant 7.812500e-03 : f32
    %75 = vector.broadcast %cst_61 : f32 to vector<1x8xf32>
    %76 = arith.mulf %74, %75 : vector<1x8xf32>
    %c0_62 = arith.constant 0 : index
    %c0_63 = arith.constant 0 : index
    %77 = vector.load %arg7[%c0_62, %c0_63] : memref<1x8xf32, #tpu.memory_space<vmem>>, vector<1x8xf32>
    %cst_64 = arith.constant 9.99999974E-6 : f32
    %78 = vector.broadcast %cst_64 : f32 to vector<1x8xf32>
    %79 = arith.addf %76, %78 : vector<1x8xf32>
    %80 = math.rsqrt %79 : vector<1x8xf32>
    %81 = arith.mulf %77, %80 : vector<1x8xf32>
    %c0_65 = arith.constant 0 : index
    %c0_66 = arith.constant 0 : index
    %82 = vector.load %arg8[%c0_65, %c0_66] : memref<1x8xf32, #tpu.memory_space<vmem>>, vector<1x8xf32>
    %83 = arith.mulf %67, %81 : vector<1x8xf32>
    %84 = arith.subf %82, %83 : vector<1x8xf32>
    %cst_67 = arith.constant dense<0.000000e+00> : vector<1x64xf32>
    %85 = tpu.matmul %81, %62, %cst_67 {dimension_numbers = #tpu.dot_dimension_numbers<[1], [0], [0], [1], [0, 0, 1, 1], [], []>} : vector<1x8xf32>, vector<8x64xf32>, vector<1x64xf32> -> vector<1x64xf32>
    %86 = vector.broadcast %85 : vector<1x64xf32> to vector<16x64xf32>
    %87 = arith.mulf %60, %86 : vector<16x64xf32>
    %cst_68 = arith.constant dense<0.000000e+00> : vector<1x64xf32>
    %88 = tpu.matmul %84, %62, %cst_68 {dimension_numbers = #tpu.dot_dimension_numbers<[1], [0], [0], [1], [0, 0, 1, 1], [], []>} : vector<1x8xf32>, vector<8x64xf32>, vector<1x64xf32> -> vector<1x64xf32>
    %89 = vector.broadcast %88 : vector<1x64xf32> to vector<16x64xf32>
    %90 = arith.addf %87, %89 : vector<16x64xf32>
    %cst_69 = arith.constant 0.000000e+00 : f32
    %91 = vector.broadcast %cst_69 : f32 to vector<16x64xf32>
    %92 = arith.maximumf %90, %91 : vector<16x64xf32>
    %cst_70 = arith.constant 0.000000e+00 : f32
    %93 = vector.broadcast %cst_70 : f32 to vector<2x1x64xf32>
    %c0_71 = arith.constant 0 : index
    %c0_72 = arith.constant 0 : index
    %c0_73 = arith.constant 0 : index
    %94 = vector.load %arg16[%c0_71, %c0_72, %c0_73] : memref<2x10x64xf32, #tpu.memory_space<vmem>>, vector<2x1x64xf32>
    tpu.vector_store %arg16[%c0_71, %c0_72, %c0_73], %93 {strides = array<i32>} : memref<2x10x64xf32, #tpu.memory_space<vmem>>, vector<2x1x64xf32>,
    %c0_74 = arith.constant 0 : index
    %c9 = arith.constant 9 : index
    %c0_75 = arith.constant 0 : index
    %95 = vector.load %arg16[%c0_74, %c9, %c0_75] : memref<2x10x64xf32, #tpu.memory_space<vmem>>, vector<2x1x64xf32>
    tpu.vector_store %arg16[%c0_74, %c9, %c0_75], %93 {strides = array<i32>} : memref<2x10x64xf32, #tpu.memory_space<vmem>>, vector<2x1x64xf32>,
    %96 = vector.shape_cast %92 : vector<16x64xf32> to vector<2x8x64xf32>
    %c0_76 = arith.constant 0 : index
    %c1_77 = arith.constant 1 : index
    %c0_78 = arith.constant 0 : index
    %97 = vector.load %arg16[%c0_76, %c1_77, %c0_78] : memref<2x10x64xf32, #tpu.memory_space<vmem>>, vector<2x8x64xf32>
    tpu.vector_store %arg16[%c0_76, %c1_77, %c0_78], %96 {strides = array<i32>} : memref<2x10x64xf32, #tpu.memory_space<vmem>>, vector<2x8x64xf32>,
    %c0_79 = arith.constant 0 : index
    %c0_80 = arith.constant 0 : index
    %c0_81 = arith.constant 0 : index
    %98 = vector.load %arg16[%c0_79, %c0_80, %c0_81] : memref<2x10x64xf32, #tpu.memory_space<vmem>>, vector<2x8x64xf32>
    %99 = vector.shape_cast %98 : vector<2x8x64xf32> to vector<16x64xf32>
    %100 = arith.truncf %99 : vector<16x64xf32> to vector<16x64xbf16>
    %c0_82 = arith.constant 0 : index
    %c0_83 = arith.constant 0 : index
    %c0_84 = arith.constant 0 : index
    %101 = vector.load %arg11[%c0_82, %c0_83, %c0_84] : memref<3x64x64xbf16, #tpu.memory_space<vmem>>, vector<1x64x64xbf16>
    %102 = vector.shape_cast %101 : vector<1x64x64xbf16> to vector<64x64xbf16>
    %cst_85 = arith.constant dense<0.000000e+00> : vector<16x64xf32>
    %103 = tpu.matmul %100, %102, %cst_85 {dimension_numbers = #tpu.dot_dimension_numbers<[1], [0], [0], [1], [0, 0, 1, 1], [], []>} : vector<16x64xbf16>, vector<64x64xbf16>, vector<16x64xf32> -> vector<16x64xf32>
    %c0_86 = arith.constant 0 : index
    %c1_87 = arith.constant 1 : index
    %c0_88 = arith.constant 0 : index
    %104 = vector.load %arg16[%c0_86, %c1_87, %c0_88] : memref<2x10x64xf32, #tpu.memory_space<vmem>>, vector<2x8x64xf32>
    %105 = vector.shape_cast %104 : vector<2x8x64xf32> to vector<16x64xf32>
    %106 = arith.truncf %105 : vector<16x64xf32> to vector<16x64xbf16>
    %c1_89 = arith.constant 1 : index
    %c0_90 = arith.constant 0 : index
    %c0_91 = arith.constant 0 : index
    %107 = vector.load %arg11[%c1_89, %c0_90, %c0_91] : memref<3x64x64xbf16, #tpu.memory_space<vmem>>, vector<1x64x64xbf16>
    %108 = vector.shape_cast %107 : vector<1x64x64xbf16> to vector<64x64xbf16>
    %cst_92 = arith.constant dense<0.000000e+00> : vector<16x64xf32>
    %109 = tpu.matmul %106, %108, %cst_92 {dimension_numbers = #tpu.dot_dimension_numbers<[1], [0], [0], [1], [0, 0, 1, 1], [], []>} : vector<16x64xbf16>, vector<64x64xbf16>, vector<16x64xf32> -> vector<16x64xf32>
    %110 = arith.addf %103, %109 : vector<16x64xf32>
    %c0_93 = arith.constant 0 : index
    %c2_94 = arith.constant 2 : index
    %c0_95 = arith.constant 0 : index
    %111 = vector.load %arg16[%c0_93, %c2_94, %c0_95] : memref<2x10x64xf32, #tpu.memory_space<vmem>>, vector<2x8x64xf32>
    %112 = vector.shape_cast %111 : vector<2x8x64xf32> to vector<16x64xf32>
    %113 = arith.truncf %112 : vector<16x64xf32> to vector<16x64xbf16>
    %c2_96 = arith.constant 2 : index
    %c0_97 = arith.constant 0 : index
    %c0_98 = arith.constant 0 : index
    %114 = vector.load %arg11[%c2_96, %c0_97, %c0_98] : memref<3x64x64xbf16, #tpu.memory_space<vmem>>, vector<1x64x64xbf16>
    %115 = vector.shape_cast %114 : vector<1x64x64xbf16> to vector<64x64xbf16>
    %cst_99 = arith.constant dense<0.000000e+00> : vector<16x64xf32>
    %116 = tpu.matmul %113, %115, %cst_99 {dimension_numbers = #tpu.dot_dimension_numbers<[1], [0], [0], [1], [0, 0, 1, 1], [], []>} : vector<16x64xbf16>, vector<64x64xbf16>, vector<16x64xf32> -> vector<16x64xf32>
    %117 = arith.addf %110, %116 : vector<16x64xf32>
    %c0_100 = arith.constant 0 : index
    %c0_101 = arith.constant 0 : index
    %118 = vector.load %arg12[%c0_100, %c0_101] : memref<16x32xf32, #tpu.memory_space<vmem>>, vector<16x32xf32>
    %cst_102 = arith.constant dense<0.000000e+00> : vector<16x64xf32>
    %119 = tpu.matmul %118, %1, %cst_102 {dimension_numbers = #tpu.dot_dimension_numbers<[1], [0], [0], [1], [0, 0, 1, 1], [], []>} : vector<16x32xf32>, vector<32x64xf32>, vector<16x64xf32> -> vector<16x64xf32>
    %120 = arith.truncf %119 : vector<16x64xf32> to vector<16x64xbf16>
    %c0_103 = arith.constant 0 : index
    %c0_104 = arith.constant 0 : index
    %121 = vector.load %arg13[%c0_103, %c0_104] : memref<64x64xbf16, #tpu.memory_space<vmem>>, vector<64x64xbf16>
    %cst_105 = arith.constant dense<0.000000e+00> : vector<16x64xf32>
    %122 = tpu.matmul %120, %121, %cst_105 {dimension_numbers = #tpu.dot_dimension_numbers<[1], [0], [0], [1], [0, 0, 1, 1], [], []>} : vector<16x64xbf16>, vector<64x64xbf16>, vector<16x64xf32> -> vector<16x64xf32>
    %123 = arith.addf %117, %122 : vector<16x64xf32>
    %124 = arith.truncf %123 : vector<16x64xf32> to vector<16x64xbf16>
    %c0_106 = arith.constant 0 : index
    %c0_107 = arith.constant 0 : index
    %125 = vector.load %arg14[%c0_106, %c0_107] : memref<16x64xbf16, #tpu.memory_space<vmem>>, vector<16x64xbf16>
    tpu.vector_store %arg14[%c0_106, %c0_107], %124 {strides = array<i32>} : memref<16x64xbf16, #tpu.memory_space<vmem>>, vector<16x64xbf16>,
    return
  }
  func.func @transform_0(%arg0: i32) -> (i32, i32, i32) {
    %c0_i32 = arith.constant 0 : i32
    %c0_i32_0 = arith.constant 0 : i32
    %c0_i32_1 = arith.constant 0 : i32
    %c0_i32_2 = arith.constant 0 : i32
    return %c0_i32, %c0_i32_0, %c0_i32_1 : i32, i32, i32
  }
  func.func @transform_1(%arg0: i32) -> (i32, i32) {
    %c0_i32 = arith.constant 0 : i32
    %c0_i32_0 = arith.constant 0 : i32
    %c0_i32_1 = arith.constant 0 : i32
    return %c0_i32, %c0_i32_0 : i32, i32
  }
  func.func @transform_2(%arg0: i32) -> (i32, i32) {
    %c0_i32 = arith.constant 0 : i32
    %c0_i32_0 = arith.constant 0 : i32
    %c0_i32_1 = arith.constant 0 : i32
    return %c0_i32, %c0_i32_0 : i32, i32
  }
  func.func @transform_3(%arg0: i32) -> (i32, i32) {
    %c0_i32 = arith.constant 0 : i32
    %c0_i32_0 = arith.constant 0 : i32
    %c0_i32_1 = arith.constant 0 : i32
    return %c0_i32, %c0_i32_0 : i32, i32
  }
  func.func @transform_4(%arg0: i32) -> (i32, i32) {
    %c0_i32 = arith.constant 0 : i32
    %c0_i32_0 = arith.constant 0 : i32
    %c0_i32_1 = arith.constant 0 : i32
    return %c0_i32, %c0_i32_0 : i32, i32
  }
  func.func @transform_5(%arg0: i32) -> (i32, i32, i32) {
    %c0_i32 = arith.constant 0 : i32
    %c0_i32_0 = arith.constant 0 : i32
    %c0_i32_1 = arith.constant 0 : i32
    %c0_i32_2 = arith.constant 0 : i32
    return %c0_i32, %c0_i32_0, %c0_i32_1 : i32, i32, i32
  }
  func.func @transform_6(%arg0: i32) -> (i32, i32) {
    %c0_i32 = arith.constant 0 : i32
    %c0_i32_0 = arith.constant 0 : i32
    %c0_i32_1 = arith.constant 0 : i32
    return %c0_i32, %c0_i32_0 : i32, i32
  }
  func.func @transform_7(%arg0: i32) -> (i32, i32) {
    %c0_i32 = arith.constant 0 : i32
    %c0_i32_0 = arith.constant 0 : i32
    %c0_i32_1 = arith.constant 0 : i32
    return %c0_i32, %c0_i32_0 : i32, i32
  }
  func.func @transform_8(%arg0: i32) -> (i32, i32) {
    %c0_i32 = arith.constant 0 : i32
    %c0_i32_0 = arith.constant 0 : i32
    %c0_i32_1 = arith.constant 0 : i32
    return %c0_i32, %c0_i32_0 : i32, i32
  }
  func.func @transform_9(%arg0: i32) -> (i32, i32) {
    %c0_i32 = arith.constant 0 : i32
    %c0_i32_0 = arith.constant 0 : i32
    %c0_i32_1 = arith.constant 0 : i32
    return %c0_i32, %c0_i32_0 : i32, i32
  }
  func.func @transform_10(%arg0: i32) -> (i32, i32, i32) {
    %c0_i32 = arith.constant 0 : i32
    %c0_i32_0 = arith.constant 0 : i32
    %c0_i32_1 = arith.constant 0 : i32
    %c0_i32_2 = arith.constant 0 : i32
    return %c0_i32, %c0_i32_0, %c0_i32_1 : i32, i32, i32
  }
  func.func @transform_11(%arg0: i32) -> (i32, i32) {
    %c0_i32 = arith.constant 0 : i32
    %c0_i32_0 = arith.constant 0 : i32
    %c0_i32_1 = arith.constant 0 : i32
    return %c0_i32, %c0_i32_0 : i32, i32
  }
  func.func @transform_12(%arg0: i32) -> (i32, i32) {
    %c0_i32 = arith.constant 0 : i32
    %c0_i32_0 = arith.constant 0 : i32
    %c0_i32_1 = arith.constant 0 : i32
    return %c0_i32, %c0_i32_0 : i32, i32
  }
  func.func @transform_13(%arg0: i32) -> (i32, i32) {
    %c0_i32 = arith.constant 0 : i32
    %c0_i32_0 = arith.constant 0 : i32
    %c0_i32_1 = arith.constant 0 : i32
    return %c0_i32, %c0_i32_0 : i32, i32
  }
}

module attributes {stable_mosaic.version = 11 : i64} {
  func.func @_residual_block_kernel(%arg0: i32, %arg1: memref<2x8x64xbf16, #tpu.memory_space<vmem>>, %arg2: memref<1x8xf32, #tpu.memory_space<vmem>>, %arg3: memref<1x8xf32, #tpu.memory_space<vmem>>, %arg4: memref<64x8xf32, #tpu.memory_space<vmem>>, %arg5: memref<8x64xf32, #tpu.memory_space<vmem>>, %arg6: memref<3x64x64xbf16, #tpu.memory_space<vmem>>, %arg7: memref<1x8xf32, #tpu.memory_space<vmem>>, %arg8: memref<1x8xf32, #tpu.memory_space<vmem>>, %arg9: memref<64x8xf32, #tpu.memory_space<vmem>>, %arg10: memref<8x64xf32, #tpu.memory_space<vmem>>, %arg11: memref<3x64x64xbf16, #tpu.memory_space<vmem>>, %arg12: memref<16x64xf32, #tpu.memory_space<vmem>>, %arg13: memref<2x10x64xf32, #tpu.memory_space<vmem>>, %arg14: memref<2x10x64xf32, #tpu.memory_space<vmem>>) attributes {dimension_semantics = [#tpu.dimension_semantics<arbitrary>], iteration_bounds = array<i64: 1>, scalar_prefetch = 0 : i64, scratch_operands = 2 : i64, tpu.core_type = #tpu.core_type<tc>, window_params = [{pipeline_mode = #tpu.pipeline_mode<synchronous>, transform_indices = @transform_0, window_bounds = array<i64: 2, 8, 64>}, {pipeline_mode = #tpu.pipeline_mode<synchronous>, transform_indices = @transform_1, window_bounds = array<i64: 1, 8>}, {pipeline_mode = #tpu.pipeline_mode<synchronous>, transform_indices = @transform_2, window_bounds = array<i64: 1, 8>}, {pipeline_mode = #tpu.pipeline_mode<synchronous>, transform_indices = @transform_3, window_bounds = array<i64: 64, 8>}, {pipeline_mode = #tpu.pipeline_mode<synchronous>, transform_indices = @transform_4, window_bounds = array<i64: 8, 64>}, {pipeline_mode = #tpu.pipeline_mode<synchronous>, transform_indices = @transform_5, window_bounds = array<i64: 3, 64, 64>}, {pipeline_mode = #tpu.pipeline_mode<synchronous>, transform_indices = @transform_6, window_bounds = array<i64: 1, 8>}, {pipeline_mode = #tpu.pipeline_mode<synchronous>, transform_indices = @transform_7, window_bounds = array<i64: 1, 8>}, {pipeline_mode = #tpu.pipeline_mode<synchronous>, transform_indices = @transform_8, window_bounds = array<i64: 64, 8>}, {pipeline_mode = #tpu.pipeline_mode<synchronous>, transform_indices = @transform_9, window_bounds = array<i64: 8, 64>}, {pipeline_mode = #tpu.pipeline_mode<synchronous>, transform_indices = @transform_10, window_bounds = array<i64: 3, 64, 64>}, {pipeline_mode = #tpu.pipeline_mode<synchronous>, transform_indices = @transform_11, window_bounds = array<i64: 16, 64>}]} {
    %c0 = arith.constant 0 : index
    %c0_0 = arith.constant 0 : index
    %c0_1 = arith.constant 0 : index
    %0 = vector.load %arg1[%c0, %c0_0, %c0_1] : memref<2x8x64xbf16, #tpu.memory_space<vmem>>, vector<2x8x64xbf16>
    %1 = arith.extf %0 : vector<2x8x64xbf16> to vector<2x8x64xf32>
    %2 = vector.shape_cast %1 : vector<2x8x64xf32> to vector<16x64xf32>
    %c0_2 = arith.constant 0 : index
    %c0_3 = arith.constant 0 : index
    %3 = vector.load %arg4[%c0_2, %c0_3] : memref<64x8xf32, #tpu.memory_space<vmem>>, vector<64x8xf32>
    %c0_4 = arith.constant 0 : index
    %c0_5 = arith.constant 0 : index
    %4 = vector.load %arg5[%c0_4, %c0_5] : memref<8x64xf32, #tpu.memory_space<vmem>>, vector<8x64xf32>
    %cst = arith.constant dense<0.000000e+00> : vector<64xf32>
    %5 = vector.multi_reduction <add>, %2, %cst [0] : vector<16x64xf32> to vector<64xf32>
    %6 = vector.shape_cast %5 : vector<64xf32> to vector<1x64xf32>
    %cst_6 = arith.constant dense<0.000000e+00> : vector<1x8xf32>
    %7 = tpu.matmul %6, %3, %cst_6 {dimension_numbers = #tpu.dot_dimension_numbers<[1], [0], [0], [1], [0, 0, 1, 1], [], []>} : vector<1x64xf32>, vector<64x8xf32>, vector<1x8xf32> -> vector<1x8xf32>
    %cst_7 = arith.constant 7.812500e-03 : f32
    %8 = vector.broadcast %cst_7 : f32 to vector<1x8xf32>
    %9 = arith.mulf %7, %8 : vector<1x8xf32>
    %cst_8 = arith.constant dense<0.000000e+00> : vector<1x64xf32>
    %10 = tpu.matmul %9, %4, %cst_8 {dimension_numbers = #tpu.dot_dimension_numbers<[1], [0], [0], [1], [0, 0, 1, 1], [], []>} : vector<1x8xf32>, vector<8x64xf32>, vector<1x64xf32> -> vector<1x64xf32>
    %11 = vector.broadcast %10 : vector<1x64xf32> to vector<16x64xf32>
    %12 = arith.subf %2, %11 : vector<16x64xf32>
    %13 = arith.mulf %12, %12 : vector<16x64xf32>
    %cst_9 = arith.constant dense<0.000000e+00> : vector<64xf32>
    %14 = vector.multi_reduction <add>, %13, %cst_9 [0] : vector<16x64xf32> to vector<64xf32>
    %15 = vector.shape_cast %14 : vector<64xf32> to vector<1x64xf32>
    %cst_10 = arith.constant dense<0.000000e+00> : vector<1x8xf32>
    %16 = tpu.matmul %15, %3, %cst_10 {dimension_numbers = #tpu.dot_dimension_numbers<[1], [0], [0], [1], [0, 0, 1, 1], [], []>} : vector<1x64xf32>, vector<64x8xf32>, vector<1x8xf32> -> vector<1x8xf32>
    %cst_11 = arith.constant 7.812500e-03 : f32
    %17 = vector.broadcast %cst_11 : f32 to vector<1x8xf32>
    %18 = arith.mulf %16, %17 : vector<1x8xf32>
    %c0_12 = arith.constant 0 : index
    %c0_13 = arith.constant 0 : index
    %19 = vector.load %arg2[%c0_12, %c0_13] : memref<1x8xf32, #tpu.memory_space<vmem>>, vector<1x8xf32>
    %cst_14 = arith.constant 9.99999974E-6 : f32
    %20 = vector.broadcast %cst_14 : f32 to vector<1x8xf32>
    %21 = arith.addf %18, %20 : vector<1x8xf32>
    %22 = math.rsqrt %21 : vector<1x8xf32>
    %23 = arith.mulf %19, %22 : vector<1x8xf32>
    %c0_15 = arith.constant 0 : index
    %c0_16 = arith.constant 0 : index
    %24 = vector.load %arg3[%c0_15, %c0_16] : memref<1x8xf32, #tpu.memory_space<vmem>>, vector<1x8xf32>
    %25 = arith.mulf %9, %23 : vector<1x8xf32>
    %26 = arith.subf %24, %25 : vector<1x8xf32>
    %cst_17 = arith.constant dense<0.000000e+00> : vector<1x64xf32>
    %27 = tpu.matmul %23, %4, %cst_17 {dimension_numbers = #tpu.dot_dimension_numbers<[1], [0], [0], [1], [0, 0, 1, 1], [], []>} : vector<1x8xf32>, vector<8x64xf32>, vector<1x64xf32> -> vector<1x64xf32>
    %28 = vector.broadcast %27 : vector<1x64xf32> to vector<16x64xf32>
    %29 = arith.mulf %2, %28 : vector<16x64xf32>
    %cst_18 = arith.constant dense<0.000000e+00> : vector<1x64xf32>
    %30 = tpu.matmul %26, %4, %cst_18 {dimension_numbers = #tpu.dot_dimension_numbers<[1], [0], [0], [1], [0, 0, 1, 1], [], []>} : vector<1x8xf32>, vector<8x64xf32>, vector<1x64xf32> -> vector<1x64xf32>
    %31 = vector.broadcast %30 : vector<1x64xf32> to vector<16x64xf32>
    %32 = arith.addf %29, %31 : vector<16x64xf32>
    %cst_19 = arith.constant 0.000000e+00 : f32
    %33 = vector.broadcast %cst_19 : f32 to vector<16x64xf32>
    %34 = arith.maximumf %32, %33 : vector<16x64xf32>
    %cst_20 = arith.constant 0.000000e+00 : f32
    %35 = vector.broadcast %cst_20 : f32 to vector<2x1x64xf32>
    %c0_21 = arith.constant 0 : index
    %c0_22 = arith.constant 0 : index
    %c0_23 = arith.constant 0 : index
    %36 = vector.load %arg13[%c0_21, %c0_22, %c0_23] : memref<2x10x64xf32, #tpu.memory_space<vmem>>, vector<2x1x64xf32>
    tpu.vector_store %arg13[%c0_21, %c0_22, %c0_23], %35 {strides = array<i32>} : memref<2x10x64xf32, #tpu.memory_space<vmem>>, vector<2x1x64xf32>,
    %c0_24 = arith.constant 0 : index
    %c9 = arith.constant 9 : index
    %c0_25 = arith.constant 0 : index
    %37 = vector.load %arg13[%c0_24, %c9, %c0_25] : memref<2x10x64xf32, #tpu.memory_space<vmem>>, vector<2x1x64xf32>
    tpu.vector_store %arg13[%c0_24, %c9, %c0_25], %35 {strides = array<i32>} : memref<2x10x64xf32, #tpu.memory_space<vmem>>, vector<2x1x64xf32>,
    %38 = vector.shape_cast %34 : vector<16x64xf32> to vector<2x8x64xf32>
    %c0_26 = arith.constant 0 : index
    %c1 = arith.constant 1 : index
    %c0_27 = arith.constant 0 : index
    %39 = vector.load %arg13[%c0_26, %c1, %c0_27] : memref<2x10x64xf32, #tpu.memory_space<vmem>>, vector<2x8x64xf32>
    tpu.vector_store %arg13[%c0_26, %c1, %c0_27], %38 {strides = array<i32>} : memref<2x10x64xf32, #tpu.memory_space<vmem>>, vector<2x8x64xf32>,
    %c0_28 = arith.constant 0 : index
    %c0_29 = arith.constant 0 : index
    %c0_30 = arith.constant 0 : index
    %40 = vector.load %arg13[%c0_28, %c0_29, %c0_30] : memref<2x10x64xf32, #tpu.memory_space<vmem>>, vector<2x8x64xf32>
    %41 = vector.shape_cast %40 : vector<2x8x64xf32> to vector<16x64xf32>
    %42 = arith.truncf %41 : vector<16x64xf32> to vector<16x64xbf16>
    %c0_31 = arith.constant 0 : index
    %c0_32 = arith.constant 0 : index
    %c0_33 = arith.constant 0 : index
    %43 = vector.load %arg6[%c0_31, %c0_32, %c0_33] : memref<3x64x64xbf16, #tpu.memory_space<vmem>>, vector<1x64x64xbf16>
    %44 = vector.shape_cast %43 : vector<1x64x64xbf16> to vector<64x64xbf16>
    %cst_34 = arith.constant dense<0.000000e+00> : vector<16x64xf32>
    %45 = tpu.matmul %42, %44, %cst_34 {dimension_numbers = #tpu.dot_dimension_numbers<[1], [0], [0], [1], [0, 0, 1, 1], [], []>} : vector<16x64xbf16>, vector<64x64xbf16>, vector<16x64xf32> -> vector<16x64xf32>
    %c0_35 = arith.constant 0 : index
    %c1_36 = arith.constant 1 : index
    %c0_37 = arith.constant 0 : index
    %46 = vector.load %arg13[%c0_35, %c1_36, %c0_37] : memref<2x10x64xf32, #tpu.memory_space<vmem>>, vector<2x8x64xf32>
    %47 = vector.shape_cast %46 : vector<2x8x64xf32> to vector<16x64xf32>
    %48 = arith.truncf %47 : vector<16x64xf32> to vector<16x64xbf16>
    %c1_38 = arith.constant 1 : index
    %c0_39 = arith.constant 0 : index
    %c0_40 = arith.constant 0 : index
    %49 = vector.load %arg6[%c1_38, %c0_39, %c0_40] : memref<3x64x64xbf16, #tpu.memory_space<vmem>>, vector<1x64x64xbf16>
    %50 = vector.shape_cast %49 : vector<1x64x64xbf16> to vector<64x64xbf16>
    %cst_41 = arith.constant dense<0.000000e+00> : vector<16x64xf32>
    %51 = tpu.matmul %48, %50, %cst_41 {dimension_numbers = #tpu.dot_dimension_numbers<[1], [0], [0], [1], [0, 0, 1, 1], [], []>} : vector<16x64xbf16>, vector<64x64xbf16>, vector<16x64xf32> -> vector<16x64xf32>
    %52 = arith.addf %45, %51 : vector<16x64xf32>
    %c0_42 = arith.constant 0 : index
    %c2 = arith.constant 2 : index
    %c0_43 = arith.constant 0 : index
    %53 = vector.load %arg13[%c0_42, %c2, %c0_43] : memref<2x10x64xf32, #tpu.memory_space<vmem>>, vector<2x8x64xf32>
    %54 = vector.shape_cast %53 : vector<2x8x64xf32> to vector<16x64xf32>
    %55 = arith.truncf %54 : vector<16x64xf32> to vector<16x64xbf16>
    %c2_44 = arith.constant 2 : index
    %c0_45 = arith.constant 0 : index
    %c0_46 = arith.constant 0 : index
    %56 = vector.load %arg6[%c2_44, %c0_45, %c0_46] : memref<3x64x64xbf16, #tpu.memory_space<vmem>>, vector<1x64x64xbf16>
    %57 = vector.shape_cast %56 : vector<1x64x64xbf16> to vector<64x64xbf16>
    %cst_47 = arith.constant dense<0.000000e+00> : vector<16x64xf32>
    %58 = tpu.matmul %55, %57, %cst_47 {dimension_numbers = #tpu.dot_dimension_numbers<[1], [0], [0], [1], [0, 0, 1, 1], [], []>} : vector<16x64xbf16>, vector<64x64xbf16>, vector<16x64xf32> -> vector<16x64xf32>
    %59 = arith.addf %52, %58 : vector<16x64xf32>
    %c0_48 = arith.constant 0 : index
    %c0_49 = arith.constant 0 : index
    %60 = vector.load %arg9[%c0_48, %c0_49] : memref<64x8xf32, #tpu.memory_space<vmem>>, vector<64x8xf32>
    %c0_50 = arith.constant 0 : index
    %c0_51 = arith.constant 0 : index
    %61 = vector.load %arg10[%c0_50, %c0_51] : memref<8x64xf32, #tpu.memory_space<vmem>>, vector<8x64xf32>
    %cst_52 = arith.constant dense<0.000000e+00> : vector<64xf32>
    %62 = vector.multi_reduction <add>, %59, %cst_52 [0] : vector<16x64xf32> to vector<64xf32>
    %63 = vector.shape_cast %62 : vector<64xf32> to vector<1x64xf32>
    %cst_53 = arith.constant dense<0.000000e+00> : vector<1x8xf32>
    %64 = tpu.matmul %63, %60, %cst_53 {dimension_numbers = #tpu.dot_dimension_numbers<[1], [0], [0], [1], [0, 0, 1, 1], [], []>} : vector<1x64xf32>, vector<64x8xf32>, vector<1x8xf32> -> vector<1x8xf32>
    %cst_54 = arith.constant 7.812500e-03 : f32
    %65 = vector.broadcast %cst_54 : f32 to vector<1x8xf32>
    %66 = arith.mulf %64, %65 : vector<1x8xf32>
    %cst_55 = arith.constant dense<0.000000e+00> : vector<1x64xf32>
    %67 = tpu.matmul %66, %61, %cst_55 {dimension_numbers = #tpu.dot_dimension_numbers<[1], [0], [0], [1], [0, 0, 1, 1], [], []>} : vector<1x8xf32>, vector<8x64xf32>, vector<1x64xf32> -> vector<1x64xf32>
    %68 = vector.broadcast %67 : vector<1x64xf32> to vector<16x64xf32>
    %69 = arith.subf %59, %68 : vector<16x64xf32>
    %70 = arith.mulf %69, %69 : vector<16x64xf32>
    %cst_56 = arith.constant dense<0.000000e+00> : vector<64xf32>
    %71 = vector.multi_reduction <add>, %70, %cst_56 [0] : vector<16x64xf32> to vector<64xf32>
    %72 = vector.shape_cast %71 : vector<64xf32> to vector<1x64xf32>
    %cst_57 = arith.constant dense<0.000000e+00> : vector<1x8xf32>
    %73 = tpu.matmul %72, %60, %cst_57 {dimension_numbers = #tpu.dot_dimension_numbers<[1], [0], [0], [1], [0, 0, 1, 1], [], []>} : vector<1x64xf32>, vector<64x8xf32>, vector<1x8xf32> -> vector<1x8xf32>
    %cst_58 = arith.constant 7.812500e-03 : f32
    %74 = vector.broadcast %cst_58 : f32 to vector<1x8xf32>
    %75 = arith.mulf %73, %74 : vector<1x8xf32>
    %c0_59 = arith.constant 0 : index
    %c0_60 = arith.constant 0 : index
    %76 = vector.load %arg7[%c0_59, %c0_60] : memref<1x8xf32, #tpu.memory_space<vmem>>, vector<1x8xf32>
    %cst_61 = arith.constant 9.99999974E-6 : f32
    %77 = vector.broadcast %cst_61 : f32 to vector<1x8xf32>
    %78 = arith.addf %75, %77 : vector<1x8xf32>
    %79 = math.rsqrt %78 : vector<1x8xf32>
    %80 = arith.mulf %76, %79 : vector<1x8xf32>
    %c0_62 = arith.constant 0 : index
    %c0_63 = arith.constant 0 : index
    %81 = vector.load %arg8[%c0_62, %c0_63] : memref<1x8xf32, #tpu.memory_space<vmem>>, vector<1x8xf32>
    %82 = arith.mulf %66, %80 : vector<1x8xf32>
    %83 = arith.subf %81, %82 : vector<1x8xf32>
    %cst_64 = arith.constant dense<0.000000e+00> : vector<1x64xf32>
    %84 = tpu.matmul %80, %61, %cst_64 {dimension_numbers = #tpu.dot_dimension_numbers<[1], [0], [0], [1], [0, 0, 1, 1], [], []>} : vector<1x8xf32>, vector<8x64xf32>, vector<1x64xf32> -> vector<1x64xf32>
    %85 = vector.broadcast %84 : vector<1x64xf32> to vector<16x64xf32>
    %86 = arith.mulf %59, %85 : vector<16x64xf32>
    %cst_65 = arith.constant dense<0.000000e+00> : vector<1x64xf32>
    %87 = tpu.matmul %83, %61, %cst_65 {dimension_numbers = #tpu.dot_dimension_numbers<[1], [0], [0], [1], [0, 0, 1, 1], [], []>} : vector<1x8xf32>, vector<8x64xf32>, vector<1x64xf32> -> vector<1x64xf32>
    %88 = vector.broadcast %87 : vector<1x64xf32> to vector<16x64xf32>
    %89 = arith.addf %86, %88 : vector<16x64xf32>
    %cst_66 = arith.constant 0.000000e+00 : f32
    %90 = vector.broadcast %cst_66 : f32 to vector<16x64xf32>
    %91 = arith.maximumf %89, %90 : vector<16x64xf32>
    %cst_67 = arith.constant 0.000000e+00 : f32
    %92 = vector.broadcast %cst_67 : f32 to vector<2x1x64xf32>
    %c0_68 = arith.constant 0 : index
    %c0_69 = arith.constant 0 : index
    %c0_70 = arith.constant 0 : index
    %93 = vector.load %arg14[%c0_68, %c0_69, %c0_70] : memref<2x10x64xf32, #tpu.memory_space<vmem>>, vector<2x1x64xf32>
    tpu.vector_store %arg14[%c0_68, %c0_69, %c0_70], %92 {strides = array<i32>} : memref<2x10x64xf32, #tpu.memory_space<vmem>>, vector<2x1x64xf32>,
    %c0_71 = arith.constant 0 : index
    %c9_72 = arith.constant 9 : index
    %c0_73 = arith.constant 0 : index
    %94 = vector.load %arg14[%c0_71, %c9_72, %c0_73] : memref<2x10x64xf32, #tpu.memory_space<vmem>>, vector<2x1x64xf32>
    tpu.vector_store %arg14[%c0_71, %c9_72, %c0_73], %92 {strides = array<i32>} : memref<2x10x64xf32, #tpu.memory_space<vmem>>, vector<2x1x64xf32>,
    %95 = vector.shape_cast %91 : vector<16x64xf32> to vector<2x8x64xf32>
    %c0_74 = arith.constant 0 : index
    %c1_75 = arith.constant 1 : index
    %c0_76 = arith.constant 0 : index
    %96 = vector.load %arg14[%c0_74, %c1_75, %c0_76] : memref<2x10x64xf32, #tpu.memory_space<vmem>>, vector<2x8x64xf32>
    tpu.vector_store %arg14[%c0_74, %c1_75, %c0_76], %95 {strides = array<i32>} : memref<2x10x64xf32, #tpu.memory_space<vmem>>, vector<2x8x64xf32>,
    %c0_77 = arith.constant 0 : index
    %c0_78 = arith.constant 0 : index
    %c0_79 = arith.constant 0 : index
    %97 = vector.load %arg14[%c0_77, %c0_78, %c0_79] : memref<2x10x64xf32, #tpu.memory_space<vmem>>, vector<2x8x64xf32>
    %98 = vector.shape_cast %97 : vector<2x8x64xf32> to vector<16x64xf32>
    %99 = arith.truncf %98 : vector<16x64xf32> to vector<16x64xbf16>
    %c0_80 = arith.constant 0 : index
    %c0_81 = arith.constant 0 : index
    %c0_82 = arith.constant 0 : index
    %100 = vector.load %arg11[%c0_80, %c0_81, %c0_82] : memref<3x64x64xbf16, #tpu.memory_space<vmem>>, vector<1x64x64xbf16>
    %101 = vector.shape_cast %100 : vector<1x64x64xbf16> to vector<64x64xbf16>
    %cst_83 = arith.constant dense<0.000000e+00> : vector<16x64xf32>
    %102 = tpu.matmul %99, %101, %cst_83 {dimension_numbers = #tpu.dot_dimension_numbers<[1], [0], [0], [1], [0, 0, 1, 1], [], []>} : vector<16x64xbf16>, vector<64x64xbf16>, vector<16x64xf32> -> vector<16x64xf32>
    %c0_84 = arith.constant 0 : index
    %c1_85 = arith.constant 1 : index
    %c0_86 = arith.constant 0 : index
    %103 = vector.load %arg14[%c0_84, %c1_85, %c0_86] : memref<2x10x64xf32, #tpu.memory_space<vmem>>, vector<2x8x64xf32>
    %104 = vector.shape_cast %103 : vector<2x8x64xf32> to vector<16x64xf32>
    %105 = arith.truncf %104 : vector<16x64xf32> to vector<16x64xbf16>
    %c1_87 = arith.constant 1 : index
    %c0_88 = arith.constant 0 : index
    %c0_89 = arith.constant 0 : index
    %106 = vector.load %arg11[%c1_87, %c0_88, %c0_89] : memref<3x64x64xbf16, #tpu.memory_space<vmem>>, vector<1x64x64xbf16>
    %107 = vector.shape_cast %106 : vector<1x64x64xbf16> to vector<64x64xbf16>
    %cst_90 = arith.constant dense<0.000000e+00> : vector<16x64xf32>
    %108 = tpu.matmul %105, %107, %cst_90 {dimension_numbers = #tpu.dot_dimension_numbers<[1], [0], [0], [1], [0, 0, 1, 1], [], []>} : vector<16x64xbf16>, vector<64x64xbf16>, vector<16x64xf32> -> vector<16x64xf32>
    %109 = arith.addf %102, %108 : vector<16x64xf32>
    %c0_91 = arith.constant 0 : index
    %c2_92 = arith.constant 2 : index
    %c0_93 = arith.constant 0 : index
    %110 = vector.load %arg14[%c0_91, %c2_92, %c0_93] : memref<2x10x64xf32, #tpu.memory_space<vmem>>, vector<2x8x64xf32>
    %111 = vector.shape_cast %110 : vector<2x8x64xf32> to vector<16x64xf32>
    %112 = arith.truncf %111 : vector<16x64xf32> to vector<16x64xbf16>
    %c2_94 = arith.constant 2 : index
    %c0_95 = arith.constant 0 : index
    %c0_96 = arith.constant 0 : index
    %113 = vector.load %arg11[%c2_94, %c0_95, %c0_96] : memref<3x64x64xbf16, #tpu.memory_space<vmem>>, vector<1x64x64xbf16>
    %114 = vector.shape_cast %113 : vector<1x64x64xbf16> to vector<64x64xbf16>
    %cst_97 = arith.constant dense<0.000000e+00> : vector<16x64xf32>
    %115 = tpu.matmul %112, %114, %cst_97 {dimension_numbers = #tpu.dot_dimension_numbers<[1], [0], [0], [1], [0, 0, 1, 1], [], []>} : vector<16x64xbf16>, vector<64x64xbf16>, vector<16x64xf32> -> vector<16x64xf32>
    %116 = arith.addf %109, %115 : vector<16x64xf32>
    %117 = arith.addf %116, %2 : vector<16x64xf32>
    %c0_98 = arith.constant 0 : index
    %c0_99 = arith.constant 0 : index
    %118 = vector.load %arg12[%c0_98, %c0_99] : memref<16x64xf32, #tpu.memory_space<vmem>>, vector<16x64xf32>
    tpu.vector_store %arg12[%c0_98, %c0_99], %117 {strides = array<i32>} : memref<16x64xf32, #tpu.memory_space<vmem>>, vector<16x64xf32>,
    return
  }
  func.func @transform_0(%arg0: i32) -> (i32, i32, i32) {
    %c0_i32 = arith.constant 0 : i32
    %c0_i32_0 = arith.constant 0 : i32
    %c0_i32_1 = arith.constant 0 : i32
    %c0_i32_2 = arith.constant 0 : i32
    return %c0_i32, %c0_i32_0, %c0_i32_1 : i32, i32, i32
  }
  func.func @transform_1(%arg0: i32) -> (i32, i32) {
    %c0_i32 = arith.constant 0 : i32
    %c0_i32_0 = arith.constant 0 : i32
    %c0_i32_1 = arith.constant 0 : i32
    return %c0_i32, %c0_i32_0 : i32, i32
  }
  func.func @transform_2(%arg0: i32) -> (i32, i32) {
    %c0_i32 = arith.constant 0 : i32
    %c0_i32_0 = arith.constant 0 : i32
    %c0_i32_1 = arith.constant 0 : i32
    return %c0_i32, %c0_i32_0 : i32, i32
  }
  func.func @transform_3(%arg0: i32) -> (i32, i32) {
    %c0_i32 = arith.constant 0 : i32
    %c0_i32_0 = arith.constant 0 : i32
    %c0_i32_1 = arith.constant 0 : i32
    return %c0_i32, %c0_i32_0 : i32, i32
  }
  func.func @transform_4(%arg0: i32) -> (i32, i32) {
    %c0_i32 = arith.constant 0 : i32
    %c0_i32_0 = arith.constant 0 : i32
    %c0_i32_1 = arith.constant 0 : i32
    return %c0_i32, %c0_i32_0 : i32, i32
  }
  func.func @transform_5(%arg0: i32) -> (i32, i32, i32) {
    %c0_i32 = arith.constant 0 : i32
    %c0_i32_0 = arith.constant 0 : i32
    %c0_i32_1 = arith.constant 0 : i32
    %c0_i32_2 = arith.constant 0 : i32
    return %c0_i32, %c0_i32_0, %c0_i32_1 : i32, i32, i32
  }
  func.func @transform_6(%arg0: i32) -> (i32, i32) {
    %c0_i32 = arith.constant 0 : i32
    %c0_i32_0 = arith.constant 0 : i32
    %c0_i32_1 = arith.constant 0 : i32
    return %c0_i32, %c0_i32_0 : i32, i32
  }
  func.func @transform_7(%arg0: i32) -> (i32, i32) {
    %c0_i32 = arith.constant 0 : i32
    %c0_i32_0 = arith.constant 0 : i32
    %c0_i32_1 = arith.constant 0 : i32
    return %c0_i32, %c0_i32_0 : i32, i32
  }
  func.func @transform_8(%arg0: i32) -> (i32, i32) {
    %c0_i32 = arith.constant 0 : i32
    %c0_i32_0 = arith.constant 0 : i32
    %c0_i32_1 = arith.constant 0 : i32
    return %c0_i32, %c0_i32_0 : i32, i32
  }
  func.func @transform_9(%arg0: i32) -> (i32, i32) {
    %c0_i32 = arith.constant 0 : i32
    %c0_i32_0 = arith.constant 0 : i32
    %c0_i32_1 = arith.constant 0 : i32
    return %c0_i32, %c0_i32_0 : i32, i32
  }
  func.func @transform_10(%arg0: i32) -> (i32, i32, i32) {
    %c0_i32 = arith.constant 0 : i32
    %c0_i32_0 = arith.constant 0 : i32
    %c0_i32_1 = arith.constant 0 : i32
    %c0_i32_2 = arith.constant 0 : i32
    return %c0_i32, %c0_i32_0, %c0_i32_1 : i32, i32, i32
  }
  func.func @transform_11(%arg0: i32) -> (i32, i32) {
    %c0_i32 = arith.constant 0 : i32
    %c0_i32_0 = arith.constant 0 : i32
    %c0_i32_1 = arith.constant 0 : i32
    return %c0_i32, %c0_i32_0 : i32, i32
  }
}

</mosaic_0001>

<llo_original>
// kernel: resnet_stage_forward.3
$region0: #{resnet_stage_forward.3}
  #allocation0 [shape = 'u32[]', space=smem, size = 0x4, offset = 0x4, fixed_abs, tag = 'smem constant byte address 0x4 - core index']
  #allocation1 [shape = 'u32[144,128]{1,0:T(1,128)}', space=vmem, size = 0x12000, scoped, tag = 'internal scratch']
  #allocation2 [shape = 'f32[2,10,64]{2,1,0:T(8,128)}', space=vmem, size = 0x4000, scoped, tag = 'scratch operand']
  #allocation3 [shape = 'f32[2,10,64]{2,1,0:T(8,128)}', space=vmem, size = 0x4000, scoped, tag = 'scratch operand']
  %s0 = inlined_call_operand.vmem [shape: bf16[2,8,64], index: 0, kind: input, shape index: {}]
  %s1 = inlined_call_operand.vmem [shape: f32[1,8], index: 1, kind: input, shape index: {}]
  %s2 = inlined_call_operand.vmem [shape: f32[1,8], index: 2, kind: input, shape index: {}]
  %s3 = inlined_call_operand.vmem [shape: f32[64,8], index: 3, kind: input, shape index: {}, may-alias: {3,8}]
  %s4 = inlined_call_operand.vmem [shape: f32[8,64], index: 4, kind: input, shape index: {}, may-alias: {4,9}]
  %s5 = inlined_call_operand.vmem [shape: bf16[3,64,64], index: 5, kind: input, shape index: {}]
  %s6 = inlined_call_operand.vmem [shape: f32[1,8], index: 6, kind: input, shape index: {}]
  %s7 = inlined_call_operand.vmem [shape: f32[1,8], index: 7, kind: input, shape index: {}]
  %s8 = inlined_call_operand.vmem [shape: f32[64,8], index: 8, kind: input, shape index: {}, may-alias: {3,8}]
  %s9 = inlined_call_operand.vmem [shape: f32[8,64], index: 9, kind: input, shape index: {}, may-alias: {4,9}]
  %s10 = inlined_call_operand.vmem [shape: bf16[3,64,64], index: 10, kind: input, shape index: {}]
  %s11 = inlined_call_operand.vmem [shape: f32[16,64], index: 11, kind: output, shape index: {}]
  %s12 = sld [smem:[#allocation0]]
  $region54: #{resnet_stage_forward.3} parent=0
    _
  %s14 = ssub.s32 1, %s12
  %s15 = scalar_select 0, %s14, %s12
  // Predicated region
  $region2: #{resnet_stage_forward.3} parent=0 // pred_check
    _
  $region3: #{resnet_stage_forward.3} parent=0 // pred_check_branch
    %17 = sbr.rel (0) target = $region5
  $region4: #{resnet_stage_forward.3} parent=0 // pred_region
    _
  $region5: #{resnet_stage_forward.3} parent=0 // pred_fallthru
    _
  // Predicated region
  $region6: #{resnet_stage_forward.3} parent=0 // pred_check
    _
  $region7: #{resnet_stage_forward.3} parent=0 // pred_check_branch
    %19 = sbr.rel (0) target = $region9
  $region8: #{resnet_stage_forward.3} parent=0 // pred_region
    _
  $region9: #{resnet_stage_forward.3} parent=0 // pred_fallthru
    _
  // Predicated region
  $region10: #{resnet_stage_forward.3} parent=0 // pred_check
    _
  $region11: #{resnet_stage_forward.3} parent=0 // pred_check_branch
    %21 = sbr.rel (0) target = $region13
  $region12: #{resnet_stage_forward.3} parent=0 // pred_region
    _
  $region13: #{resnet_stage_forward.3} parent=0 // pred_fallthru
    _
  // Predicated region
  $region14: #{resnet_stage_forward.3} parent=0 // pred_check
    _
  $region15: #{resnet_stage_forward.3} parent=0 // pred_check_branch
    %23 = sbr.rel (0) target = $region17
  $region16: #{resnet_stage_forward.3} parent=0 // pred_region
    _
  $region17: #{resnet_stage_forward.3} parent=0 // pred_fallthru
    _
  // Predicated region
  $region18: #{resnet_stage_forward.3} parent=0 // pred_check
    _
  $region19: #{resnet_stage_forward.3} parent=0 // pred_check_branch
    %25 = sbr.rel (0) target = $region21
  $region20: #{resnet_stage_forward.3} parent=0 // pred_region
    _
  $region21: #{resnet_stage_forward.3} parent=0 // pred_fallthru
    _
  // Predicated region
  $region22: #{resnet_stage_forward.3} parent=0 // pred_check
    _
  $region23: #{resnet_stage_forward.3} parent=0 // pred_check_branch
    %27 = sbr.rel (0) target = $region25
  $region24: #{resnet_stage_forward.3} parent=0 // pred_region
    _
  $region25: #{resnet_stage_forward.3} parent=0 // pred_fallthru
    _
  // Predicated region
  $region26: #{resnet_stage_forward.3} parent=0 // pred_check
    _
  $region27: #{resnet_stage_forward.3} parent=0 // pred_check_branch
    %29 = sbr.rel (0) target = $region29
  $region28: #{resnet_stage_forward.3} parent=0 // pred_region
    _
  $region29: #{resnet_stage_forward.3} parent=0 // pred_fallthru
    _
  // Predicated region
  $region30: #{resnet_stage_forward.3} parent=0 // pred_check
    _
  $region31: #{resnet_stage_forward.3} parent=0 // pred_check_branch
    %31 = sbr.rel (0) target = $region33
  $region32: #{resnet_stage_forward.3} parent=0 // pred_region
    _
  $region33: #{resnet_stage_forward.3} parent=0 // pred_fallthru
    _
  // Predicated region
  $region34: #{resnet_stage_forward.3} parent=0 // pred_check
    _
  $region35: #{resnet_stage_forward.3} parent=0 // pred_check_branch
    %33 = sbr.rel (0) target = $region37
  $region36: #{resnet_stage_forward.3} parent=0 // pred_region
    _
  $region37: #{resnet_stage_forward.3} parent=0 // pred_fallthru
    _
  // Predicated region
  $region38: #{resnet_stage_forward.3} parent=0 // pred_check
    _
  $region39: #{resnet_stage_forward.3} parent=0 // pred_check_branch
    %35 = sbr.rel (0) target = $region41
  $region40: #{resnet_stage_forward.3} parent=0 // pred_region
    _
  $region41: #{resnet_stage_forward.3} parent=0 // pred_fallthru
    _
  // Predicated region
  $region42: #{resnet_stage_forward.3} parent=0 // pred_check
    _
  $region43: #{resnet_stage_forward.3} parent=0 // pred_check_branch
    %37 = sbr.rel (0) target = $region45
  $region44: #{resnet_stage_forward.3} parent=0 // pred_region
    _
  $region45: #{resnet_stage_forward.3} parent=0 // pred_fallthru
    _
  %v39 = vld [vmem:[%s0] sm:$0xf]
  %v40 = vld [vmem:[%s0 + $0x4] sm:$0xf]
  %v41 = vunpack.c.l.bf16 %v39
  %v42 = vunpack.c.l.bf16 %v40
  %v43 = vld [vmem:[%s3] sm:$0xff]
  %v44 = vld [vmem:[%s3 + $0x8] sm:$0xff]
  %v45 = vld [vmem:[%s3 + $0x10] sm:$0xff]
  %v46 = vld [vmem:[%s3 + $0x18] sm:$0xff]
  %v47 = vld [vmem:[%s3 + $0x20] sm:$0xff]
  %v48 = vld [vmem:[%s3 + $0x28] sm:$0xff]
  %v49 = vld [vmem:[%s3 + $0x30] sm:$0xff]
  %v50 = vld [vmem:[%s3 + $0x38] sm:$0xff]
  %v51 = vld [vmem:[%s4] sm:$0xff]
  %vm52 = vcmask 523264
  %v53 = vsel %vm52, %v41, 0.0
  %v54 = vsel %vm52, %v42, 0.0
  %v55 = vadd.f32 %v53, %v54
  %v56 = vrot.slane %v55, 4
  %v57 = vadd.f32 %v55, %v56
  %v58 = vrot.slane %v57, 2
  %v59 = vadd.f32 %v57, %v58
  %v60 = vrot.slane %v59, 1
  %v61 = vadd.f32 %v59, %v60
  %v63 = vsel %vm52, %v61, 0
  %65 = vmatprep.subr.mxu0 0.0
  %66 = vmatpush1.msra.mxu0 0.0
  %67 = vmatprep.subr.mxu0 0.0
  %68 = vmatpush1.msra.mxu0 0.0
  %69 = vmatprep.subr.mxu0 0.0
  %70 = vmatpush1.msra.mxu0 0.0
  %71 = vmatprep.subr.mxu0 0.0
  %72 = vmatpush1.msra.mxu0 0.0
  %73 = vmatprep.subr.mxu0 0.0
  %74 = vmatpush1.msra.mxu0 0.0
  %75 = vmatprep.subr.mxu0 0.0
  %76 = vmatpush1.msra.mxu0 0.0
  %77 = vmatprep.subr.mxu0 0.0
  %78 = vmatpush1.msra.mxu0 0.0
  %79 = vmatprep.subr.mxu0 0.0
  %80 = vmatpush1.msra.mxu0 0.0
  %81 = vmatprep.subr.mxu0 0.0
  %82 = vmatpush1.msra.mxu0 %v50
  %83 = vmatprep.subr.mxu0 0.0
  %84 = vmatpush1.msra.mxu0 %v49
  %85 = vmatprep.subr.mxu0 0.0
  %86 = vmatpush1.msra.mxu0 %v48
  %87 = vmatprep.subr.mxu0 0.0
  %88 = vmatpush1.msra.mxu0 %v47
  %89 = vmatprep.subr.mxu0 0.0
  %90 = vmatpush1.msra.mxu0 %v46
  %91 = vmatprep.subr.mxu0 0.0
  %92 = vmatpush1.msra.mxu0 %v45
  %93 = vmatprep.subr.mxu0 0.0
  %94 = vmatpush1.msra.mxu0 %v44
  %95 = vmatprep.subr.mxu0 0.0
  %96 = vmatpush1.msra.mxu0 %v43
  %97 = vmatprep.subr.mxu0 0.0
  %98 = vmatpush2.msra.mxu0 0.0
  %99 = vmatprep.subr.mxu0 0.0
  %100 = vmatpush2.msra.mxu0 0.0
  %101 = vmatprep.subr.mxu0 0.0
  %102 = vmatpush2.msra.mxu0 0.0
  %103 = vmatprep.subr.mxu0 0.0
  %104 = vmatpush2.msra.mxu0 0.0
  %105 = vmatprep.subr.mxu0 0.0
  %106 = vmatpush2.msra.mxu0 0.0
  %107 = vmatprep.subr.mxu0 0.0
  %108 = vmatpush2.msra.mxu0 0.0
  %109 = vmatprep.subr.mxu0 0.0
  %110 = vmatpush2.msra.mxu0 0.0
  %111 = vmatprep.subr.mxu0 0.0
  %112 = vmatpush2.msra.mxu0 0.0
  %113 = vmatprep.subr.mxu0 0.0
  %114 = vmatpush2.msra.mxu0 0.0
  %115 = vmatprep.subr.mxu0 0.0
  %116 = vmatpush2.msra.mxu0 0.0
  %117 = vmatprep.subr.mxu0 0.0
  %118 = vmatpush2.msra.mxu0 0.0
  %119 = vmatprep.subr.mxu0 0.0
  %120 = vmatpush2.msra.mxu0 0.0
  %121 = vmatprep.subr.mxu0 0.0
  %122 = vmatpush2.msra.mxu0 0.0
  %123 = vmatprep.subr.mxu0 0.0
  %124 = vmatpush2.msra.mxu0 0.0
  %125 = vmatprep.subr.mxu0 0.0
  %126 = vmatpush2.msra.mxu0 0.0
  %127 = vmatprep.subr.mxu0 0.0
  %128 = vmatpush2.msra.mxu0 0.0
  %129 = vmatprep.mubr.f32.mxu0 0.0
  %130 = vmatmul.mubr.f32.gmra.mxu0 %v63
  %v131 = vpop.f32.mrf.mxu0
  %v132 = vadd.f32 0.0, %v131
  %v133 = vpop.f32.mrf.mxu0
  %134 = vdwg.mxu0
  %v135 = vmul.f32 %v132, 0.0078125
  %vm136 = vcmask 64512
  %v138 = vsel %vm136, %v135, 0
  %140 = vmatprep.subr.mxu0 0.0
  %141 = vmatpush1.msra.mxu0 0.0
  %142 = vmatprep.subr.mxu0 0.0
  %143 = vmatpush1.msra.mxu0 0.0
  %144 = vmatprep.subr.mxu0 0.0
  %145 = vmatpush1.msra.mxu0 0.0
  %146 = vmatprep.subr.mxu0 0.0
  %147 = vmatpush1.msra.mxu0 0.0
  %148 = vmatprep.subr.mxu0 0.0
  %149 = vmatpush1.msra.mxu0 0.0
  %150 = vmatprep.subr.mxu0 0.0
  %151 = vmatpush1.msra.mxu0 0.0
  %152 = vmatprep.subr.mxu0 0.0
  %153 = vmatpush1.msra.mxu0 0.0
  %154 = vmatprep.subr.mxu0 0.0
  %155 = vmatpush1.msra.mxu0 0.0
  %156 = vmatprep.subr.mxu0 0.0
  %157 = vmatpush1.msra.mxu0 0.0
  %158 = vmatprep.subr.mxu0 0.0
  %159 = vmatpush1.msra.mxu0 0.0
  %160 = vmatprep.subr.mxu0 0.0
  %161 = vmatpush1.msra.mxu0 0.0
  %162 = vmatprep.subr.mxu0 0.0
  %163 = vmatpush1.msra.mxu0 0.0
  %164 = vmatprep.subr.mxu0 0.0
  %165 = vmatpush1.msra.mxu0 0.0
  %166 = vmatprep.subr.mxu0 0.0
  %167 = vmatpush1.msra.mxu0 0.0
  %168 = vmatprep.subr.mxu0 0.0
  %169 = vmatpush1.msra.mxu0 0.0
  %170 = vmatprep.subr.mxu0 0.0
  %171 = vmatpush1.msra.mxu0 %v51
  %172 = vmatprep.subr.mxu0 0.0
  %173 = vmatpush2.msra.mxu0 0.0
  %174 = vmatprep.subr.mxu0 0.0
  %175 = vmatpush2.msra.mxu0 0.0
  %176 = vmatprep.subr.mxu0 0.0
  %177 = vmatpush2.msra.mxu0 0.0
  %178 = vmatprep.subr.mxu0 0.0
  %179 = vmatpush2.msra.mxu0 0.0
  %180 = vmatprep.subr.mxu0 0.0
  %181 = vmatpush2.msra.mxu0 0.0
  %182 = vmatprep.subr.mxu0 0.0
  %183 = vmatpush2.msra.mxu0 0.0
  %184 = vmatprep.subr.mxu0 0.0
  %185 = vmatpush2.msra.mxu0 0.0
  %186 = vmatprep.subr.mxu0 0.0
  %187 = vmatpush2.msra.mxu0 0.0
  %188 = vmatprep.subr.mxu0 0.0
  %189 = vmatpush2.msra.mxu0 0.0
  %190 = vmatprep.subr.mxu0 0.0
  %191 = vmatpush2.msra.mxu0 0.0
  %192 = vmatprep.subr.mxu0 0.0
  %193 = vmatpush2.msra.mxu0 0.0
  %194 = vmatprep.subr.mxu0 0.0
  %195 = vmatpush2.msra.mxu0 0.0
  %196 = vmatprep.subr.mxu0 0.0
  %197 = vmatpush2.msra.mxu0 0.0
  %198 = vmatprep.subr.mxu0 0.0
  %199 = vmatpush2.msra.mxu0 0.0
  %200 = vmatprep.subr.mxu0 0.0
  %201 = vmatpush2.msra.mxu0 0.0
  %202 = vmatprep.subr.mxu0 0.0
  %203 = vmatpush2.msra.mxu0 0.0
  %204 = vmatprep.mubr.f32.mxu0 0.0
  %205 = vmatmul.mubr.f32.gmra.mxu0 %v138
  %v206 = vpop.f32.mrf.mxu0
  %v207 = vadd.f32 0.0, %v206
  %v208 = vpop.f32.mrf.mxu0
  %209 = vdwg.mxu0
  %v210 = vlaneseq
  %v211 = vshrl.u32 %v210, 7
  %v212 = vsub.s32 0, %v211
  %v213 = vrot.slane %v207, %v212
  %v214 = vsub.f32 %v41, %v213
  %v215 = vsub.f32 %v42, %v213
  %v216 = vmul.f32 %v214, %v214
  %v217 = vmul.f32 %v215, %v215
  %v218 = vsel %vm52, %v216, 0.0
  %v219 = vsel %vm52, %v217, 0.0
  %v220 = vadd.f32 %v218, %v219
  %v221 = vrot.slane %v220, 4
  %v222 = vadd.f32 %v220, %v221
  %v223 = vrot.slane %v222, 2
  %v224 = vadd.f32 %v222, %v223
  %v225 = vrot.slane %v224, 1
  %v226 = vadd.f32 %v224, %v225
  %v228 = vsel %vm52, %v226, 0
  %230 = vmatprep.subr.mxu0 0.0
  %231 = vmatpush1.msra.mxu0 0.0
  %232 = vmatprep.subr.mxu0 0.0
  %233 = vmatpush1.msra.mxu0 0.0
  %234 = vmatprep.subr.mxu0 0.0
  %235 = vmatpush1.msra.mxu0 0.0
  %236 = vmatprep.subr.mxu0 0.0
  %237 = vmatpush1.msra.mxu0 0.0
  %238 = vmatprep.subr.mxu0 0.0
  %239 = vmatpush1.msra.mxu0 0.0
  %240 = vmatprep.subr.mxu0 0.0
  %241 = vmatpush1.msra.mxu0 0.0
  %242 = vmatprep.subr.mxu0 0.0
  %243 = vmatpush1.msra.mxu0 0.0
  %244 = vmatprep.subr.mxu0 0.0
  %245 = vmatpush1.msra.mxu0 0.0
  %246 = vmatprep.subr.mxu0 0.0
  %247 = vmatpush1.msra.mxu0 %v50
  %248 = vmatprep.subr.mxu0 0.0
  %249 = vmatpush1.msra.mxu0 %v49
  %250 = vmatprep.subr.mxu0 0.0
  %251 = vmatpush1.msra.mxu0 %v48
  %252 = vmatprep.subr.mxu0 0.0
  %253 = vmatpush1.msra.mxu0 %v47
  %254 = vmatprep.subr.mxu0 0.0
  %255 = vmatpush1.msra.mxu0 %v46
  %256 = vmatprep.subr.mxu0 0.0
  %257 = vmatpush1.msra.mxu0 %v45
  %258 = vmatprep.subr.mxu0 0.0
  %259 = vmatpush1.msra.mxu0 %v44
  %260 = vmatprep.subr.mxu0 0.0
  %261 = vmatpush1.msra.mxu0 %v43
  %262 = vmatprep.subr.mxu0 0.0
  %263 = vmatpush2.msra.mxu0 0.0
  %264 = vmatprep.subr.mxu0 0.0
  %265 = vmatpush2.msra.mxu0 0.0
  %266 = vmatprep.subr.mxu0 0.0
  %267 = vmatpush2.msra.mxu0 0.0
  %268 = vmatprep.subr.mxu0 0.0
  %269 = vmatpush2.msra.mxu0 0.0
  %270 = vmatprep.subr.mxu0 0.0
  %271 = vmatpush2.msra.mxu0 0.0
  %272 = vmatprep.subr.mxu0 0.0
  %273 = vmatpush2.msra.mxu0 0.0
  %274 = vmatprep.subr.mxu0 0.0
  %275 = vmatpush2.msra.mxu0 0.0
  %276 = vmatprep.subr.mxu0 0.0
  %277 = vmatpush2.msra.mxu0 0.0
  %278 = vmatprep.subr.mxu0 0.0
  %279 = vmatpush2.msra.mxu0 0.0
  %280 = vmatprep.subr.mxu0 0.0
  %281 = vmatpush2.msra.mxu0 0.0
  %282 = vmatprep.subr.mxu0 0.0
  %283 = vmatpush2.msra.mxu0 0.0
  %284 = vmatprep.subr.mxu0 0.0
  %285 = vmatpush2.msra.mxu0 0.0
  %286 = vmatprep.subr.mxu0 0.0
  %287 = vmatpush2.msra.mxu0 0.0
  %288 = vmatprep.subr.mxu0 0.0
  %289 = vmatpush2.msra.mxu0 0.0
  %290 = vmatprep.subr.mxu0 0.0
  %291 = vmatpush2.msra.mxu0 0.0
  %292 = vmatprep.subr.mxu0 0.0
  %293 = vmatpush2.msra.mxu0 0.0
  %294 = vmatprep.mubr.f32.mxu0 0.0
  %295 = vmatmul.mubr.f32.gmra.mxu0 %v228
  %v296 = vpop.f32.mrf.mxu0
  %v297 = vadd.f32 0.0, %v296
  %v298 = vpop.f32.mrf.mxu0
  %299 = vdwg.mxu0
  %v300 = vmul.f32 %v297, 0.0078125
  %v301 = vld [vmem:[%s1] sm:$0x1]
  %v302 = vadd.f32 %v300, 1e-05
  %v303 = vrsqrt.pop %v302
  %v304 = vmul.f32 %v301, %v303
  %v305 = vld [vmem:[%s2] sm:$0x1]
  %v306 = vmul.f32 %v135, %v304
  %v307 = vsub.f32 %v305, %v306
  %v309 = vsel %vm136, %v304, 0
  %311 = vmatprep.subr.mxu0 0.0
  %312 = vmatpush1.msra.mxu0 0.0
  %313 = vmatprep.subr.mxu0 0.0
  %314 = vmatpush1.msra.mxu0 0.0
  %315 = vmatprep.subr.mxu0 0.0
  %316 = vmatpush1.msra.mxu0 0.0
  %317 = vmatprep.subr.mxu0 0.0
  %318 = vmatpush1.msra.mxu0 0.0
  %319 = vmatprep.subr.mxu0 0.0
  %320 = vmatpush1.msra.mxu0 0.0
  %321 = vmatprep.subr.mxu0 0.0
  %322 = vmatpush1.msra.mxu0 0.0
  %323 = vmatprep.subr.mxu0 0.0
  %324 = vmatpush1.msra.mxu0 0.0
  %325 = vmatprep.subr.mxu0 0.0
  %326 = vmatpush1.msra.mxu0 0.0
  %327 = vmatprep.subr.mxu0 0.0
  %328 = vmatpush1.msra.mxu0 0.0
  %329 = vmatprep.subr.mxu0 0.0
  %330 = vmatpush1.msra.mxu0 0.0
  %331 = vmatprep.subr.mxu0 0.0
  %332 = vmatpush1.msra.mxu0 0.0
  %333 = vmatprep.subr.mxu0 0.0
  %334 = vmatpush1.msra.mxu0 0.0
  %335 = vmatprep.subr.mxu0 0.0
  %336 = vmatpush1.msra.mxu0 0.0
  %337 = vmatprep.subr.mxu0 0.0
  %338 = vmatpush1.msra.mxu0 0.0
  %339 = vmatprep.subr.mxu0 0.0
  %340 = vmatpush1.msra.mxu0 0.0
  %341 = vmatprep.subr.mxu0 0.0
  %342 = vmatpush1.msra.mxu0 %v51
  %343 = vmatprep.subr.mxu0 0.0
  %344 = vmatpush2.msra.mxu0 0.0
  %345 = vmatprep.subr.mxu0 0.0
  %346 = vmatpush2.msra.mxu0 0.0
  %347 = vmatprep.subr.mxu0 0.0
  %348 = vmatpush2.msra.mxu0 0.0
  %349 = vmatprep.subr.mxu0 0.0
  %350 = vmatpush2.msra.mxu0 0.0
  %351 = vmatprep.subr.mxu0 0.0
  %352 = vmatpush2.msra.mxu0 0.0
  %353 = vmatprep.subr.mxu0 0.0
  %354 = vmatpush2.msra.mxu0 0.0
  %355 = vmatprep.subr.mxu0 0.0
  %356 = vmatpush2.msra.mxu0 0.0
  %357 = vmatprep.subr.mxu0 0.0
  %358 = vmatpush2.msra.mxu0 0.0
  %359 = vmatprep.subr.mxu0 0.0
  %360 = vmatpush2.msra.mxu0 0.0
  %361 = vmatprep.subr.mxu0 0.0
  %362 = vmatpush2.msra.mxu0 0.0
  %363 = vmatprep.subr.mxu0 0.0
  %364 = vmatpush2.msra.mxu0 0.0
  %365 = vmatprep.subr.mxu0 0.0
  %366 = vmatpush2.msra.mxu0 0.0
  %367 = vmatprep.subr.mxu0 0.0
  %368 = vmatpush2.msra.mxu0 0.0
  %369 = vmatprep.subr.mxu0 0.0
  %370 = vmatpush2.msra.mxu0 0.0
  %371 = vmatprep.subr.mxu0 0.0
  %372 = vmatpush2.msra.mxu0 0.0
  %373 = vmatprep.subr.mxu0 0.0
  %374 = vmatpush2.msra.mxu0 0.0
  %375 = vmatprep.mubr.f32.mxu0 0.0
  %376 = vmatmul.mubr.f32.gmra.mxu0 %v309
  %v377 = vpop.f32.mrf.mxu0
  %v378 = vadd.f32 0.0, %v377
  %v379 = vpop.f32.mrf.mxu0
  %380 = vdwg.mxu0
  %v381 = vlaneseq
  %v382 = vshrl.u32 %v381, 7
  %v383 = vsub.s32 0, %v382
  %v384 = vrot.slane %v378, %v383
  %v385 = vmul.f32 %v41, %v384
  %v386 = vmul.f32 %v42, %v384
  %v388 = vsel %vm136, %v307, 0
  %390 = vmatprep.subr.mxu0 0.0
  %391 = vmatpush1.msra.mxu0 0.0
  %392 = vmatprep.subr.mxu0 0.0
  %393 = vmatpush1.msra.mxu0 0.0
  %394 = vmatprep.subr.mxu0 0.0
  %395 = vmatpush1.msra.mxu0 0.0
  %396 = vmatprep.subr.mxu0 0.0
  %397 = vmatpush1.msra.mxu0 0.0
  %398 = vmatprep.subr.mxu0 0.0
  %399 = vmatpush1.msra.mxu0 0.0
  %400 = vmatprep.subr.mxu0 0.0
  %401 = vmatpush1.msra.mxu0 0.0
  %402 = vmatprep.subr.mxu0 0.0
  %403 = vmatpush1.msra.mxu0 0.0
  %404 = vmatprep.subr.mxu0 0.0
  %405 = vmatpush1.msra.mxu0 0.0
  %406 = vmatprep.subr.mxu0 0.0
  %407 = vmatpush1.msra.mxu0 0.0
  %408 = vmatprep.subr.mxu0 0.0
  %409 = vmatpush1.msra.mxu0 0.0
  %410 = vmatprep.subr.mxu0 0.0
  %411 = vmatpush1.msra.mxu0 0.0
  %412 = vmatprep.subr.mxu0 0.0
  %413 = vmatpush1.msra.mxu0 0.0
  %414 = vmatprep.subr.mxu0 0.0
  %415 = vmatpush1.msra.mxu0 0.0
  %416 = vmatprep.subr.mxu0 0.0
  %417 = vmatpush1.msra.mxu0 0.0
  %418 = vmatprep.subr.mxu0 0.0
  %419 = vmatpush1.msra.mxu0 0.0
  %420 = vmatprep.subr.mxu0 0.0
  %421 = vmatpush1.msra.mxu0 %v51
  %422 = vmatprep.subr.mxu0 0.0
  %423 = vmatpush2.msra.mxu0 0.0
  %424 = vmatprep.subr.mxu0 0.0
  %425 = vmatpush2.msra.mxu0 0.0
  %426 = vmatprep.subr.mxu0 0.0
  %427 = vmatpush2.msra.mxu0 0.0
  %428 = vmatprep.subr.mxu0 0.0
  %429 = vmatpush2.msra.mxu0 0.0
  %430 = vmatprep.subr.mxu0 0.0
  %431 = vmatpush2.msra.mxu0 0.0
  %432 = vmatprep.subr.mxu0 0.0
  %433 = vmatpush2.msra.mxu0 0.0
  %434 = vmatprep.subr.mxu0 0.0
  %435 = vmatpush2.msra.mxu0 0.0
  %436 = vmatprep.subr.mxu0 0.0
  %437 = vmatpush2.msra.mxu0 0.0
  %438 = vmatprep.subr.mxu0 0.0
  %439 = vmatpush2.msra.mxu0 0.0
  %440 = vmatprep.subr.mxu0 0.0
  %441 = vmatpush2.msra.mxu0 0.0
  %442 = vmatprep.subr.mxu0 0.0
  %443 = vmatpush2.msra.mxu0 0.0
  %444 = vmatprep.subr.mxu0 0.0
  %445 = vmatpush2.msra.mxu0 0.0
  %446 = vmatprep.subr.mxu0 0.0
  %447 = vmatpush2.msra.mxu0 0.0
  %448 = vmatprep.subr.mxu0 0.0
  %449 = vmatpush2.msra.mxu0 0.0
  %450 = vmatprep.subr.mxu0 0.0
  %451 = vmatpush2.msra.mxu0 0.0
  %452 = vmatprep.subr.mxu0 0.0
  %453 = vmatpush2.msra.mxu0 0.0
  %454 = vmatprep.mubr.f32.mxu0 0.0
  %455 = vmatmul.mubr.f32.gmra.mxu0 %v388
  %v456 = vpop.f32.mrf.mxu0
  %v457 = vadd.f32 0.0, %v456
  %v458 = vpop.f32.mrf.mxu0
  %459 = vdwg.mxu0
  %v460 = vlaneseq
  %v461 = vshrl.u32 %v460, 7
  %v462 = vsub.s32 0, %v461
  %v463 = vrot.slane %v457, %v462
  %v464 = vadd.f32 %v385, %v463
  %v465 = vadd.f32 %v386, %v463
  %v466 = vmax.f32 %v464, 0.0
  %v467 = vmax.f32 %v465, 0.0
  %vm468 = vcmask 516096
  %469 = vst.msk [vmem:[#allocation2] sm:$0x1] %vm468, 0.0
  %470 = vst.msk [vmem:[#allocation2 + $0x10] sm:$0x1] %vm468, 0.0
  %471 = vst.msk [vmem:[#allocation2 + $0x9] sm:$0x1] %vm468, 0.0
  %472 = vst.msk [vmem:[#allocation2 + $0x19] sm:$0x1] %vm468, 0.0
  %473 = vst.msk [vmem:[#allocation2 + $0x1] sm:$0xff] %vm52, %v466
  %474 = vst.msk [vmem:[#allocation2 + $0x11] sm:$0xff] %vm52, %v467
  %v475 = vld [vmem:[#allocation2] sm:$0xff]
  %v476 = vld [vmem:[#allocation2 + $0x10] sm:$0xff]
  %v477 = vpack.c.bf16 %v476, %v475
  %v478 = vld [vmem:[%s5] sm:$0xf]
  %v479 = vld [vmem:[%s5 + $0x4] sm:$0xf]
  %v480 = vld [vmem:[%s5 + $0x8] sm:$0xf]
  %v481 = vld [vmem:[%s5 + $0xc] sm:$0xf]
  %v482 = vld [vmem:[%s5 + $0x10] sm:$0xf]
  %v483 = vld [vmem:[%s5 + $0x14] sm:$0xf]
  %v484 = vld [vmem:[%s5 + $0x18] sm:$0xf]
  %v485 = vld [vmem:[%s5 + $0x1c] sm:$0xf]
  %v486 = vld [vmem:[#allocation2 + $0x1] sm:$0xff]
  %v487 = vld [vmem:[#allocation2 + $0x11] sm:$0xff]
  %v488 = vpack.c.bf16 %v487, %v486
  %s489 = scalar_lea.vmem %s5, 32
  %v490 = vld [vmem:[%s489] sm:$0xf]
  %v491 = vld [vmem:[%s489 + $0x4] sm:$0xf]
  %v492 = vld [vmem:[%s489 + $0x8] sm:$0xf]
  %v493 = vld [vmem:[%s489 + $0xc] sm:$0xf]
  %v494 = vld [vmem:[%s489 + $0x10] sm:$0xf]
  %v495 = vld [vmem:[%s489 + $0x14] sm:$0xf]
  %v496 = vld [vmem:[%s489 + $0x18] sm:$0xf]
  %v497 = vld [vmem:[%s489 + $0x1c] sm:$0xf]
  %v506 = vunpack.c.l.b16 %v490
  %v507 = vunpack.c.l.b16 %v491
  %v508 = vunpack.c.l.b16 %v492
  %v509 = vunpack.c.l.b16 %v493
  %v510 = vunpack.c.l.b16 %v494
  %v511 = vunpack.c.l.b16 %v495
  %v512 = vunpack.c.l.b16 %v496
  %v513 = vunpack.c.l.b16 %v497
  %v514 = vpack.c.b16 %v507, %v506
  %v515 = vpack.c.b16 %v509, %v508
  %v516 = vpack.c.b16 %v511, %v510
  %v517 = vpack.c.b16 %v513, %v512
  %v523 = vsel %vm52, %v488, 0
  %525 = vmatprep.subr.bf16.mxu0 0
  %526 = vmatpush1.bf16.msra.mxu0 0
  %527 = vmatprep.subr.bf16.mxu0 0
  %528 = vmatpush1.bf16.msra.mxu0 0
  %529 = vmatprep.subr.bf16.mxu0 0
  %530 = vmatpush1.bf16.msra.mxu0 0
  %531 = vmatprep.subr.bf16.mxu0 0
  %532 = vmatpush1.bf16.msra.mxu0 0
  %533 = vmatprep.subr.bf16.mxu0 0
  %534 = vmatpush1.bf16.msra.mxu0 %v517
  %535 = vmatprep.subr.bf16.mxu0 0
  %536 = vmatpush1.bf16.msra.mxu0 %v516
  %537 = vmatprep.subr.bf16.mxu0 0
  %538 = vmatpush1.bf16.msra.mxu0 %v515
  %539 = vmatprep.subr.bf16.mxu0 0
  %540 = vmatpush1.bf16.msra.mxu0 %v514
  %541 = vmatprep.subr.bf16.mxu0 0
  %542 = vmatpush2.bf16.msra.mxu0 0
  %543 = vmatprep.subr.bf16.mxu0 0
  %544 = vmatpush2.bf16.msra.mxu0 0
  %545 = vmatprep.subr.bf16.mxu0 0
  %546 = vmatpush2.bf16.msra.mxu0 0
  %547 = vmatprep.subr.bf16.mxu0 0
  %548 = vmatpush2.bf16.msra.mxu0 0
  %549 = vmatprep.subr.bf16.mxu0 0
  %550 = vmatpush2.bf16.msra.mxu0 0
  %551 = vmatprep.subr.bf16.mxu0 0
  %552 = vmatpush2.bf16.msra.mxu0 0
  %553 = vmatprep.subr.bf16.mxu0 0
  %554 = vmatpush2.bf16.msra.mxu0 0
  %555 = vmatprep.subr.bf16.mxu0 0
  %556 = vmatpush2.bf16.msra.mxu0 0
  %557 = vmatprep.mubr.bf16.mxu0 0
  %558 = vmatmul.mubr.bf16.gmra.mxu0 %v523
  %v559 = vpop.f32.mrf.mxu0
  %v560 = vadd.f32 0.0, %v559
  %v561 = vpop.f32.mrf.mxu0
  %v562 = vpop.f32.mrf.mxu0
  %v563 = vadd.f32 0.0, %v562
  %v564 = vpop.f32.mrf.mxu0
  %565 = vdwg.mxu0
  %v574 = vunpack.c.l.b16 %v478
  %v575 = vunpack.c.l.b16 %v479
  %v576 = vunpack.c.l.b16 %v480
  %v577 = vunpack.c.l.b16 %v481
  %v578 = vunpack.c.l.b16 %v482
  %v579 = vunpack.c.l.b16 %v483
  %v580 = vunpack.c.l.b16 %v484
  %v581 = vunpack.c.l.b16 %v485
  %v582 = vpack.c.b16 %v575, %v574
  %v583 = vpack.c.b16 %v577, %v576
  %v584 = vpack.c.b16 %v579, %v578
  %v585 = vpack.c.b16 %v581, %v580
  %v591 = vsel %vm52, %v477, 0
  %593 = vmatprep.subr.bf16.mxu0 0
  %594 = vmatpush1.bf16.msra.mxu0 0
  %595 = vmatprep.subr.bf16.mxu0 0
  %596 = vmatpush1.bf16.msra.mxu0 0
  %597 = vmatprep.subr.bf16.mxu0 0
  %598 = vmatpush1.bf16.msra.mxu0 0
  %599 = vmatprep.subr.bf16.mxu0 0
  %600 = vmatpush1.bf16.msra.mxu0 0
  %601 = vmatprep.subr.bf16.mxu0 0
  %602 = vmatpush1.bf16.msra.mxu0 %v585
  %603 = vmatprep.subr.bf16.mxu0 0
  %604 = vmatpush1.bf16.msra.mxu0 %v584
  %605 = vmatprep.subr.bf16.mxu0 0
  %606 = vmatpush1.bf16.msra.mxu0 %v583
  %607 = vmatprep.subr.bf16.mxu0 0
  %608 = vmatpush1.bf16.msra.mxu0 %v582
  %609 = vmatprep.subr.bf16.mxu0 0
  %610 = vmatpush2.bf16.msra.mxu0 0
  %611 = vmatprep.subr.bf16.mxu0 0
  %612 = vmatpush2.bf16.msra.mxu0 0
  %613 = vmatprep.subr.bf16.mxu0 0
  %614 = vmatpush2.bf16.msra.mxu0 0
  %615 = vmatprep.subr.bf16.mxu0 0
  %616 = vmatpush2.bf16.msra.mxu0 0
  %617 = vmatprep.subr.bf16.mxu0 0
  %618 = vmatpush2.bf16.msra.mxu0 0
  %619 = vmatprep.subr.bf16.mxu0 0
  %620 = vmatpush2.bf16.msra.mxu0 0
  %621 = vmatprep.subr.bf16.mxu0 0
  %622 = vmatpush2.bf16.msra.mxu0 0
  %623 = vmatprep.subr.bf16.mxu0 0
  %624 = vmatpush2.bf16.msra.mxu0 0
  %625 = vmatprep.mubr.bf16.mxu0 0
  %626 = vmatmul.mubr.bf16.gmra.mxu0 %v591
  %v627 = vpop.f32.mrf.mxu0
  %v628 = vadd.f32 %v560, %v627
  %v629 = vpop.f32.mrf.mxu0
  %v630 = vpop.f32.mrf.mxu0
  %v631 = vadd.f32 %v563, %v630
  %v632 = vpop.f32.mrf.mxu0
  %633 = vdwg.mxu0
  %v634 = vld [vmem:[#allocation2 + $0x2] sm:$0xff]
  %v635 = vld [vmem:[#allocation2 + $0x12] sm:$0xff]
  %v636 = vpack.c.bf16 %v635, %v634
  %s637 = scalar_lea.vmem %s5, 64
  %v638 = vld [vmem:[%s637] sm:$0xf]
  %v639 = vld [vmem:[%s637 + $0x4] sm:$0xf]
  %v640 = vld [vmem:[%s637 + $0x8] sm:$0xf]
  %v641 = vld [vmem:[%s637 + $0xc] sm:$0xf]
  %v642 = vld [vmem:[%s637 + $0x10] sm:$0xf]
  %v643 = vld [vmem:[%s637 + $0x14] sm:$0xf]
  %v644 = vld [vmem:[%s637 + $0x18] sm:$0xf]
  %v645 = vld [vmem:[%s637 + $0x1c] sm:$0xf]
  %v654 = vunpack.c.l.b16 %v638
  %v655 = vunpack.c.l.b16 %v639
  %v656 = vunpack.c.l.b16 %v640
  %v657 = vunpack.c.l.b16 %v641
  %v658 = vunpack.c.l.b16 %v642
  %v659 = vunpack.c.l.b16 %v643
  %v660 = vunpack.c.l.b16 %v644
  %v661 = vunpack.c.l.b16 %v645
  %v662 = vpack.c.b16 %v655, %v654
  %v663 = vpack.c.b16 %v657, %v656
  %v664 = vpack.c.b16 %v659, %v658
  %v665 = vpack.c.b16 %v661, %v660
  %v671 = vsel %vm52, %v636, 0
  %673 = vmatprep.subr.bf16.mxu0 0
  %674 = vmatpush1.bf16.msra.mxu0 0
  %675 = vmatprep.subr.bf16.mxu0 0
  %676 = vmatpush1.bf16.msra.mxu0 0
  %677 = vmatprep.subr.bf16.mxu0 0
  %678 = vmatpush1.bf16.msra.mxu0 0
  %679 = vmatprep.subr.bf16.mxu0 0
  %680 = vmatpush1.bf16.msra.mxu0 0
  %681 = vmatprep.subr.bf16.mxu0 0
  %682 = vmatpush1.bf16.msra.mxu0 %v665
  %683 = vmatprep.subr.bf16.mxu0 0
  %684 = vmatpush1.bf16.msra.mxu0 %v664
  %685 = vmatprep.subr.bf16.mxu0 0
  %686 = vmatpush1.bf16.msra.mxu0 %v663
  %687 = vmatprep.subr.bf16.mxu0 0
  %688 = vmatpush1.bf16.msra.mxu0 %v662
  %689 = vmatprep.subr.bf16.mxu0 0
  %690 = vmatpush2.bf16.msra.mxu0 0
  %691 = vmatprep.subr.bf16.mxu0 0
  %692 = vmatpush2.bf16.msra.mxu0 0
  %693 = vmatprep.subr.bf16.mxu0 0
  %694 = vmatpush2.bf16.msra.mxu0 0
  %695 = vmatprep.subr.bf16.mxu0 0
  %696 = vmatpush2.bf16.msra.mxu0 0
  %697 = vmatprep.subr.bf16.mxu0 0
  %698 = vmatpush2.bf16.msra.mxu0 0
  %699 = vmatprep.subr.bf16.mxu0 0
  %700 = vmatpush2.bf16.msra.mxu0 0
  %701 = vmatprep.subr.bf16.mxu0 0
  %702 = vmatpush2.bf16.msra.mxu0 0
  %703 = vmatprep.subr.bf16.mxu0 0
  %704 = vmatpush2.bf16.msra.mxu0 0
  %705 = vmatprep.mubr.bf16.mxu0 0
  %706 = vmatmul.mubr.bf16.gmra.mxu0 %v671
  %v707 = vpop.f32.mrf.mxu0
  %v708 = vadd.f32 0.0, %v707
  %v709 = vpop.f32.mrf.mxu0
  %v710 = vpop.f32.mrf.mxu0
  %v711 = vadd.f32 0.0, %v710
  %v712 = vpop.f32.mrf.mxu0
  %713 = vdwg.mxu0
  %v714 = vadd.f32 %v628, %v708
  %v715 = vadd.f32 %v631, %v711
  %v716 = vld [vmem:[%s8] sm:$0xff]
  %v717 = vld [vmem:[%s8 + $0x8] sm:$0xff]
  %v718 = vld [vmem:[%s8 + $0x10] sm:$0xff]
  %v719 = vld [vmem:[%s8 + $0x18] sm:$0xff]
  %v720 = vld [vmem:[%s8 + $0x20] sm:$0xff]
  %v721 = vld [vmem:[%s8 + $0x28] sm:$0xff]
  %v722 = vld [vmem:[%s8 + $0x30] sm:$0xff]
  %v723 = vld [vmem:[%s8 + $0x38] sm:$0xff]
  %v724 = vld [vmem:[%s9] sm:$0xff]
  %v725 = vsel %vm52, %v714, 0.0
  %v726 = vsel %vm52, %v715, 0.0
  %v727 = vadd.f32 %v725, %v726
  %v728 = vrot.slane %v727, 4
  %v729 = vadd.f32 %v727, %v728
  %v730 = vrot.slane %v729, 2
  %v731 = vadd.f32 %v729, %v730
  %v732 = vrot.slane %v731, 1
  %v733 = vadd.f32 %v731, %v732
  %v735 = vsel %vm52, %v733, 0
  %737 = vmatprep.subr.mxu0 0.0
  %738 = vmatpush1.msra.mxu0 0.0
  %739 = vmatprep.subr.mxu0 0.0
  %740 = vmatpush1.msra.mxu0 0.0
  %741 = vmatprep.subr.mxu0 0.0
  %742 = vmatpush1.msra.mxu0 0.0
  %743 = vmatprep.subr.mxu0 0.0
  %744 = vmatpush1.msra.mxu0 0.0
  %745 = vmatprep.subr.mxu0 0.0
  %746 = vmatpush1.msra.mxu0 0.0
  %747 = vmatprep.subr.mxu0 0.0
  %748 = vmatpush1.msra.mxu0 0.0
  %749 = vmatprep.subr.mxu0 0.0
  %750 = vmatpush1.msra.mxu0 0.0
  %751 = vmatprep.subr.mxu0 0.0
  %752 = vmatpush1.msra.mxu0 0.0
  %753 = vmatprep.subr.mxu0 0.0
  %754 = vmatpush1.msra.mxu0 %v723
  %755 = vmatprep.subr.mxu0 0.0
  %756 = vmatpush1.msra.mxu0 %v722
  %757 = vmatprep.subr.mxu0 0.0
  %758 = vmatpush1.msra.mxu0 %v721
  %759 = vmatprep.subr.mxu0 0.0
  %760 = vmatpush1.msra.mxu0 %v720
  %761 = vmatprep.subr.mxu0 0.0
  %762 = vmatpush1.msra.mxu0 %v719
  %763 = vmatprep.subr.mxu0 0.0
  %764 = vmatpush1.msra.mxu0 %v718
  %765 = vmatprep.subr.mxu0 0.0
  %766 = vmatpush1.msra.mxu0 %v717
  %767 = vmatprep.subr.mxu0 0.0
  %768 = vmatpush1.msra.mxu0 %v716
  %769 = vmatprep.subr.mxu0 0.0
  %770 = vmatpush2.msra.mxu0 0.0
  %771 = vmatprep.subr.mxu0 0.0
  %772 = vmatpush2.msra.mxu0 0.0
  %773 = vmatprep.subr.mxu0 0.0
  %774 = vmatpush2.msra.mxu0 0.0
  %775 = vmatprep.subr.mxu0 0.0
  %776 = vmatpush2.msra.mxu0 0.0
  %777 = vmatprep.subr.mxu0 0.0
  %778 = vmatpush2.msra.mxu0 0.0
  %779 = vmatprep.subr.mxu0 0.0
  %780 = vmatpush2.msra.mxu0 0.0
  %781 = vmatprep.subr.mxu0 0.0
  %782 = vmatpush2.msra.mxu0 0.0
  %783 = vmatprep.subr.mxu0 0.0
  %784 = vmatpush2.msra.mxu0 0.0
  %785 = vmatprep.subr.mxu0 0.0
  %786 = vmatpush2.msra.mxu0 0.0
  %787 = vmatprep.subr.mxu0 0.0
  %788 = vmatpush2.msra.mxu0 0.0
  %789 = vmatprep.subr.mxu0 0.0
  %790 = vmatpush2.msra.mxu0 0.0
  %791 = vmatprep.subr.mxu0 0.0
  %792 = vmatpush2.msra.mxu0 0.0
  %793 = vmatprep.subr.mxu0 0.0
  %794 = vmatpush2.msra.mxu0 0.0
  %795 = vmatprep.subr.mxu0 0.0
  %796 = vmatpush2.msra.mxu0 0.0
  %797 = vmatprep.subr.mxu0 0.0
  %798 = vmatpush2.msra.mxu0 0.0
  %799 = vmatprep.subr.mxu0 0.0
  %800 = vmatpush2.msra.mxu0 0.0
  %801 = vmatprep.mubr.f32.mxu0 0.0
  %802 = vmatmul.mubr.f32.gmra.mxu0 %v735
  %v803 = vpop.f32.mrf.mxu0
  %v804 = vadd.f32 0.0, %v803
  %v805 = vpop.f32.mrf.mxu0
  %806 = vdwg.mxu0
  %v807 = vmul.f32 %v804, 0.0078125
  %v809 = vsel %vm136, %v807, 0
  %811 = vmatprep.subr.mxu0 0.0
  %812 = vmatpush1.msra.mxu0 0.0
  %813 = vmatprep.subr.mxu0 0.0
  %814 = vmatpush1.msra.mxu0 0.0
  %815 = vmatprep.subr.mxu0 0.0
  %816 = vmatpush1.msra.mxu0 0.0
  %817 = vmatprep.subr.mxu0 0.0
  %818 = vmatpush1.msra.mxu0 0.0
  %819 = vmatprep.subr.mxu0 0.0
  %820 = vmatpush1.msra.mxu0 0.0
  %821 = vmatprep.subr.mxu0 0.0
  %822 = vmatpush1.msra.mxu0 0.0
  %823 = vmatprep.subr.mxu0 0.0
  %824 = vmatpush1.msra.mxu0 0.0
  %825 = vmatprep.subr.mxu0 0.0
  %826 = vmatpush1.msra.mxu0 0.0
  %827 = vmatprep.subr.mxu0 0.0
  %828 = vmatpush1.msra.mxu0 0.0
  %829 = vmatprep.subr.mxu0 0.0
  %830 = vmatpush1.msra.mxu0 0.0
  %831 = vmatprep.subr.mxu0 0.0
  %832 = vmatpush1.msra.mxu0 0.0
  %833 = vmatprep.subr.mxu0 0.0
  %834 = vmatpush1.msra.mxu0 0.0
  %835 = vmatprep.subr.mxu0 0.0
  %836 = vmatpush1.msra.mxu0 0.0
  %837 = vmatprep.subr.mxu0 0.0
  %838 = vmatpush1.msra.mxu0 0.0
  %839 = vmatprep.subr.mxu0 0.0
  %840 = vmatpush1.msra.mxu0 0.0
  %841 = vmatprep.subr.mxu0 0.0
  %842 = vmatpush1.msra.mxu0 %v724
  %843 = vmatprep.subr.mxu0 0.0
  %844 = vmatpush2.msra.mxu0 0.0
  %845 = vmatprep.subr.mxu0 0.0
  %846 = vmatpush2.msra.mxu0 0.0
  %847 = vmatprep.subr.mxu0 0.0
  %848 = vmatpush2.msra.mxu0 0.0
  %849 = vmatprep.subr.mxu0 0.0
  %850 = vmatpush2.msra.mxu0 0.0
  %851 = vmatprep.subr.mxu0 0.0
  %852 = vmatpush2.msra.mxu0 0.0
  %853 = vmatprep.subr.mxu0 0.0
  %854 = vmatpush2.msra.mxu0 0.0
  %855 = vmatprep.subr.mxu0 0.0
  %856 = vmatpush2.msra.mxu0 0.0
  %857 = vmatprep.subr.mxu0 0.0
  %858 = vmatpush2.msra.mxu0 0.0
  %859 = vmatprep.subr.mxu0 0.0
  %860 = vmatpush2.msra.mxu0 0.0
  %861 = vmatprep.subr.mxu0 0.0
  %862 = vmatpush2.msra.mxu0 0.0
  %863 = vmatprep.subr.mxu0 0.0
  %864 = vmatpush2.msra.mxu0 0.0
  %865 = vmatprep.subr.mxu0 0.0
  %866 = vmatpush2.msra.mxu0 0.0
  %867 = vmatprep.subr.mxu0 0.0
  %868 = vmatpush2.msra.mxu0 0.0
  %869 = vmatprep.subr.mxu0 0.0
  %870 = vmatpush2.msra.mxu0 0.0
  %871 = vmatprep.subr.mxu0 0.0
  %872 = vmatpush2.msra.mxu0 0.0
  %873 = vmatprep.subr.mxu0 0.0
  %874 = vmatpush2.msra.mxu0 0.0
  %875 = vmatprep.mubr.f32.mxu0 0.0
  %876 = vmatmul.mubr.f32.gmra.mxu0 %v809
  %v877 = vpop.f32.mrf.mxu0
  %v878 = vadd.f32 0.0, %v877
  %v879 = vpop.f32.mrf.mxu0
  %880 = vdwg.mxu0
  %v881 = vlaneseq
  %v882 = vshrl.u32 %v881, 7
  %v883 = vsub.s32 0, %v882
  %v884 = vrot.slane %v878, %v883
  %v885 = vsub.f32 %v714, %v884
  %v886 = vsub.f32 %v715, %v884
  %v887 = vmul.f32 %v885, %v885
  %v888 = vmul.f32 %v886, %v886
  %v889 = vsel %vm52, %v887, 0.0
  %v890 = vsel %vm52, %v888, 0.0
  %v891 = vadd.f32 %v889, %v890
  %v892 = vrot.slane %v891, 4
  %v893 = vadd.f32 %v891, %v892
  %v894 = vrot.slane %v893, 2
  %v895 = vadd.f32 %v893, %v894
  %v896 = vrot.slane %v895, 1
  %v897 = vadd.f32 %v895, %v896
  %v899 = vsel %vm52, %v897, 0
  %901 = vmatprep.subr.mxu0 0.0
  %902 = vmatpush1.msra.mxu0 0.0
  %903 = vmatprep.subr.mxu0 0.0
  %904 = vmatpush1.msra.mxu0 0.0
  %905 = vmatprep.subr.mxu0 0.0
  %906 = vmatpush1.msra.mxu0 0.0
  %907 = vmatprep.subr.mxu0 0.0
  %908 = vmatpush1.msra.mxu0 0.0
  %909 = vmatprep.subr.mxu0 0.0
  %910 = vmatpush1.msra.mxu0 0.0
  %911 = vmatprep.subr.mxu0 0.0
  %912 = vmatpush1.msra.mxu0 0.0
  %913 = vmatprep.subr.mxu0 0.0
  %914 = vmatpush1.msra.mxu0 0.0
  %915 = vmatprep.subr.mxu0 0.0
  %916 = vmatpush1.msra.mxu0 0.0
  %917 = vmatprep.subr.mxu0 0.0
  %918 = vmatpush1.msra.mxu0 %v723
  %919 = vmatprep.subr.mxu0 0.0
  %920 = vmatpush1.msra.mxu0 %v722
  %921 = vmatprep.subr.mxu0 0.0
  %922 = vmatpush1.msra.mxu0 %v721
  %923 = vmatprep.subr.mxu0 0.0
  %924 = vmatpush1.msra.mxu0 %v720
  %925 = vmatprep.subr.mxu0 0.0
  %926 = vmatpush1.msra.mxu0 %v719
  %927 = vmatprep.subr.mxu0 0.0
  %928 = vmatpush1.msra.mxu0 %v718
  %929 = vmatprep.subr.mxu0 0.0
  %930 = vmatpush1.msra.mxu0 %v717
  %931 = vmatprep.subr.mxu0 0.0
  %932 = vmatpush1.msra.mxu0 %v716
  %933 = vmatprep.subr.mxu0 0.0
  %934 = vmatpush2.msra.mxu0 0.0
  %935 = vmatprep.subr.mxu0 0.0
  %936 = vmatpush2.msra.mxu0 0.0
  %937 = vmatprep.subr.mxu0 0.0
  %938 = vmatpush2.msra.mxu0 0.0
  %939 = vmatprep.subr.mxu0 0.0
  %940 = vmatpush2.msra.mxu0 0.0
  %941 = vmatprep.subr.mxu0 0.0
  %942 = vmatpush2.msra.mxu0 0.0
  %943 = vmatprep.subr.mxu0 0.0
  %944 = vmatpush2.msra.mxu0 0.0
  %945 = vmatprep.subr.mxu0 0.0
  %946 = vmatpush2.msra.mxu0 0.0
  %947 = vmatprep.subr.mxu0 0.0
  %948 = vmatpush2.msra.mxu0 0.0
  %949 = vmatprep.subr.mxu0 0.0
  %950 = vmatpush2.msra.mxu0 0.0
  %951 = vmatprep.subr.mxu0 0.0
  %952 = vmatpush2.msra.mxu0 0.0
  %953 = vmatprep.subr.mxu0 0.0
  %954 = vmatpush2.msra.mxu0 0.0
  %955 = vmatprep.subr.mxu0 0.0
  %956 = vmatpush2.msra.mxu0 0.0
  %957 = vmatprep.subr.mxu0 0.0
  %958 = vmatpush2.msra.mxu0 0.0
  %959 = vmatprep.subr.mxu0 0.0
  %960 = vmatpush2.msra.mxu0 0.0
  %961 = vmatprep.subr.mxu0 0.0
  %962 = vmatpush2.msra.mxu0 0.0
  %963 = vmatprep.subr.mxu0 0.0
  %964 = vmatpush2.msra.mxu0 0.0
  %965 = vmatprep.mubr.f32.mxu0 0.0
  %966 = vmatmul.mubr.f32.gmra.mxu0 %v899
  %v967 = vpop.f32.mrf.mxu0
  %v968 = vadd.f32 0.0, %v967
  %v969 = vpop.f32.mrf.mxu0
  %970 = vdwg.mxu0
  %v971 = vmul.f32 %v968, 0.0078125
  %v972 = vld [vmem:[%s6] sm:$0x1]
  %v973 = vadd.f32 %v971, 1e-05
  %v974 = vrsqrt.pop %v973
  %v975 = vmul.f32 %v972, %v974
  %v976 = vld [vmem:[%s7] sm:$0x1]
  %v977 = vmul.f32 %v807, %v975
  %v978 = vsub.f32 %v976, %v977
  %v980 = vsel %vm136, %v975, 0
  %982 = vmatprep.subr.mxu0 0.0
  %983 = vmatpush1.msra.mxu0 0.0
  %984 = vmatprep.subr.mxu0 0.0
  %985 = vmatpush1.msra.mxu0 0.0
  %986 = vmatprep.subr.mxu0 0.0
  %987 = vmatpush1.msra.mxu0 0.0
  %988 = vmatprep.subr.mxu0 0.0
  %989 = vmatpush1.msra.mxu0 0.0
  %990 = vmatprep.subr.mxu0 0.0
  %991 = vmatpush1.msra.mxu0 0.0
  %992 = vmatprep.subr.mxu0 0.0
  %993 = vmatpush1.msra.mxu0 0.0
  %994 = vmatprep.subr.mxu0 0.0
  %995 = vmatpush1.msra.mxu0 0.0
  %996 = vmatprep.subr.mxu0 0.0
  %997 = vmatpush1.msra.mxu0 0.0
  %998 = vmatprep.subr.mxu0 0.0
  %999 = vmatpush1.msra.mxu0 0.0
  %1000 = vmatprep.subr.mxu0 0.0
  %1001 = vmatpush1.msra.mxu0 0.0
  %1002 = vmatprep.subr.mxu0 0.0
  %1003 = vmatpush1.msra.mxu0 0.0
  %1004 = vmatprep.subr.mxu0 0.0
  %1005 = vmatpush1.msra.mxu0 0.0
  %1006 = vmatprep.subr.mxu0 0.0
  %1007 = vmatpush1.msra.mxu0 0.0
  %1008 = vmatprep.subr.mxu0 0.0
  %1009 = vmatpush1.msra.mxu0 0.0
  %1010 = vmatprep.subr.mxu0 0.0
  %1011 = vmatpush1.msra.mxu0 0.0
  %1012 = vmatprep.subr.mxu0 0.0
  %1013 = vmatpush1.msra.mxu0 %v724
  %1014 = vmatprep.subr.mxu0 0.0
  %1015 = vmatpush2.msra.mxu0 0.0
  %1016 = vmatprep.subr.mxu0 0.0
  %1017 = vmatpush2.msra.mxu0 0.0
  %1018 = vmatprep.subr.mxu0 0.0
  %1019 = vmatpush2.msra.mxu0 0.0
  %1020 = vmatprep.subr.mxu0 0.0
  %1021 = vmatpush2.msra.mxu0 0.0
  %1022 = vmatprep.subr.mxu0 0.0
  %1023 = vmatpush2.msra.mxu0 0.0
  %1024 = vmatprep.subr.mxu0 0.0
  %1025 = vmatpush2.msra.mxu0 0.0
  %1026 = vmatprep.subr.mxu0 0.0
  %1027 = vmatpush2.msra.mxu0 0.0
  %1028 = vmatprep.subr.mxu0 0.0
  %1029 = vmatpush2.msra.mxu0 0.0
  %1030 = vmatprep.subr.mxu0 0.0
  %1031 = vmatpush2.msra.mxu0 0.0
  %1032 = vmatprep.subr.mxu0 0.0
  %1033 = vmatpush2.msra.mxu0 0.0
  %1034 = vmatprep.subr.mxu0 0.0
  %1035 = vmatpush2.msra.mxu0 0.0
  %1036 = vmatprep.subr.mxu0 0.0
  %1037 = vmatpush2.msra.mxu0 0.0
  %1038 = vmatprep.subr.mxu0 0.0
  %1039 = vmatpush2.msra.mxu0 0.0
  %1040 = vmatprep.subr.mxu0 0.0
  %1041 = vmatpush2.msra.mxu0 0.0
  %1042 = vmatprep.subr.mxu0 0.0
  %1043 = vmatpush2.msra.mxu0 0.0
  %1044 = vmatprep.subr.mxu0 0.0
  %1045 = vmatpush2.msra.mxu0 0.0
  %1046 = vmatprep.mubr.f32.mxu0 0.0
  %1047 = vmatmul.mubr.f32.gmra.mxu0 %v980
  %v1048 = vpop.f32.mrf.mxu0
  %v1049 = vadd.f32 0.0, %v1048
  %v1050 = vpop.f32.mrf.mxu0
  %1051 = vdwg.mxu0
  %v1052 = vlaneseq
  %v1053 = vshrl.u32 %v1052, 7
  %v1054 = vsub.s32 0, %v1053
  %v1055 = vrot.slane %v1049, %v1054
  %v1056 = vmul.f32 %v714, %v1055
  %v1057 = vmul.f32 %v715, %v1055
  %v1059 = vsel %vm136, %v978, 0
  %1061 = vmatprep.subr.mxu0 0.0
  %1062 = vmatpush1.msra.mxu0 0.0
  %1063 = vmatprep.subr.mxu0 0.0
  %1064 = vmatpush1.msra.mxu0 0.0
  %1065 = vmatprep.subr.mxu0 0.0
  %1066 = vmatpush1.msra.mxu0 0.0
  %1067 = vmatprep.subr.mxu0 0.0
  %1068 = vmatpush1.msra.mxu0 0.0
  %1069 = vmatprep.subr.mxu0 0.0
  %1070 = vmatpush1.msra.mxu0 0.0
  %1071 = vmatprep.subr.mxu0 0.0
  %1072 = vmatpush1.msra.mxu0 0.0
  %1073 = vmatprep.subr.mxu0 0.0
  %1074 = vmatpush1.msra.mxu0 0.0
  %1075 = vmatprep.subr.mxu0 0.0
  %1076 = vmatpush1.msra.mxu0 0.0
  %1077 = vmatprep.subr.mxu0 0.0
  %1078 = vmatpush1.msra.mxu0 0.0
  %1079 = vmatprep.subr.mxu0 0.0
  %1080 = vmatpush1.msra.mxu0 0.0
  %1081 = vmatprep.subr.mxu0 0.0
  %1082 = vmatpush1.msra.mxu0 0.0
  %1083 = vmatprep.subr.mxu0 0.0
  %1084 = vmatpush1.msra.mxu0 0.0
  %1085 = vmatprep.subr.mxu0 0.0
  %1086 = vmatpush1.msra.mxu0 0.0
  %1087 = vmatprep.subr.mxu0 0.0
  %1088 = vmatpush1.msra.mxu0 0.0
  %1089 = vmatprep.subr.mxu0 0.0
  %1090 = vmatpush1.msra.mxu0 0.0
  %1091 = vmatprep.subr.mxu0 0.0
  %1092 = vmatpush1.msra.mxu0 %v724
  %1093 = vmatprep.subr.mxu0 0.0
  %1094 = vmatpush2.msra.mxu0 0.0
  %1095 = vmatprep.subr.mxu0 0.0
  %1096 = vmatpush2.msra.mxu0 0.0
  %1097 = vmatprep.subr.mxu0 0.0
  %1098 = vmatpush2.msra.mxu0 0.0
  %1099 = vmatprep.subr.mxu0 0.0
  %1100 = vmatpush2.msra.mxu0 0.0
  %1101 = vmatprep.subr.mxu0 0.0
  %1102 = vmatpush2.msra.mxu0 0.0
  %1103 = vmatprep.subr.mxu0 0.0
  %1104 = vmatpush2.msra.mxu0 0.0
  %1105 = vmatprep.subr.mxu0 0.0
  %1106 = vmatpush2.msra.mxu0 0.0
  %1107 = vmatprep.subr.mxu0 0.0
  %1108 = vmatpush2.msra.mxu0 0.0
  %1109 = vmatprep.subr.mxu0 0.0
  %1110 = vmatpush2.msra.mxu0 0.0
  %1111 = vmatprep.subr.mxu0 0.0
  %1112 = vmatpush2.msra.mxu0 0.0
  %1113 = vmatprep.subr.mxu0 0.0
  %1114 = vmatpush2.msra.mxu0 0.0
  %1115 = vmatprep.subr.mxu0 0.0
  %1116 = vmatpush2.msra.mxu0 0.0
  %1117 = vmatprep.subr.mxu0 0.0
  %1118 = vmatpush2.msra.mxu0 0.0
  %1119 = vmatprep.subr.mxu0 0.0
  %1120 = vmatpush2.msra.mxu0 0.0
  %1121 = vmatprep.subr.mxu0 0.0
  %1122 = vmatpush2.msra.mxu0 0.0
  %1123 = vmatprep.subr.mxu0 0.0
  %1124 = vmatpush2.msra.mxu0 0.0
  %1125 = vmatprep.mubr.f32.mxu0 0.0
  %1126 = vmatmul.mubr.f32.gmra.mxu0 %v1059
  %v1127 = vpop.f32.mrf.mxu0
  %v1128 = vadd.f32 0.0, %v1127
  %v1129 = vpop.f32.mrf.mxu0
  %1130 = vdwg.mxu0
  %v1131 = vlaneseq
  %v1132 = vshrl.u32 %v1131, 7
  %v1133 = vsub.s32 0, %v1132
  %v1134 = vrot.slane %v1128, %v1133
  %v1135 = vadd.f32 %v1056, %v1134
  %v1136 = vadd.f32 %v1057, %v1134
  %v1137 = vmax.f32 %v1135, 0.0
  %v1138 = vmax.f32 %v1136, 0.0
  %1139 = vst.msk [vmem:[#allocation3] sm:$0x1] %vm468, 0.0
  %1140 = vst.msk [vmem:[#allocation3 + $0x10] sm:$0x1] %vm468, 0.0
  %1141 = vst.msk [vmem:[#allocation3 + $0x9] sm:$0x1] %vm468, 0.0
  %1142 = vst.msk [vmem:[#allocation3 + $0x19] sm:$0x1] %vm468, 0.0
  %1143 = vst.msk [vmem:[#allocation3 + $0x1] sm:$0xff] %vm52, %v1137
  %1144 = vst.msk [vmem:[#allocation3 + $0x11] sm:$0xff] %vm52, %v1138
  %v1145 = vld [vmem:[#allocation3] sm:$0xff]
  %v1146 = vld [vmem:[#allocation3 + $0x10] sm:$0xff]
  %v1147 = vpack.c.bf16 %v1146, %v1145
  %v1148 = vld [vmem:[%s10] sm:$0xf]
  %v1149 = vld [vmem:[%s10 + $0x4] sm:$0xf]
  %v1150 = vld [vmem:[%s10 + $0x8] sm:$0xf]
  %v1151 = vld [vmem:[%s10 + $0xc] sm:$0xf]
  %v1152 = vld [vmem:[%s10 + $0x10] sm:$0xf]
  %v1153 = vld [vmem:[%s10 + $0x14] sm:$0xf]
  %v1154 = vld [vmem:[%s10 + $0x18] sm:$0xf]
  %v1155 = vld [vmem:[%s10 + $0x1c] sm:$0xf]
  %v1156 = vld [vmem:[#allocation3 + $0x1] sm:$0xff]
  %v1157 = vld [vmem:[#allocation3 + $0x11] sm:$0xff]
  %v1158 = vpack.c.bf16 %v1157, %v1156
  %s1159 = scalar_lea.vmem %s10, 32
  %v1160 = vld [vmem:[%s1159] sm:$0xf]
  %v1161 = vld [vmem:[%s1159 + $0x4] sm:$0xf]
  %v1162 = vld [vmem:[%s1159 + $0x8] sm:$0xf]
  %v1163 = vld [vmem:[%s1159 + $0xc] sm:$0xf]
  %v1164 = vld [vmem:[%s1159 + $0x10] sm:$0xf]
  %v1165 = vld [vmem:[%s1159 + $0x14] sm:$0xf]
  %v1166 = vld [vmem:[%s1159 + $0x18] sm:$0xf]
  %v1167 = vld [vmem:[%s1159 + $0x1c] sm:$0xf]
  %v1176 = vunpack.c.l.b16 %v1160
  %v1177 = vunpack.c.l.b16 %v1161
  %v1178 = vunpack.c.l.b16 %v1162
  %v1179 = vunpack.c.l.b16 %v1163
  %v1180 = vunpack.c.l.b16 %v1164
  %v1181 = vunpack.c.l.b16 %v1165
  %v1182 = vunpack.c.l.b16 %v1166
  %v1183 = vunpack.c.l.b16 %v1167
  %v1184 = vpack.c.b16 %v1177, %v1176
  %v1185 = vpack.c.b16 %v1179, %v1178
  %v1186 = vpack.c.b16 %v1181, %v1180
  %v1187 = vpack.c.b16 %v1183, %v1182
  %v1193 = vsel %vm52, %v1158, 0
  %1195 = vmatprep.subr.bf16.mxu0 0
  %1196 = vmatpush1.bf16.msra.mxu0 0
  %1197 = vmatprep.subr.bf16.mxu0 0
  %1198 = vmatpush1.bf16.msra.mxu0 0
  %1199 = vmatprep.subr.bf16.mxu0 0
  %1200 = vmatpush1.bf16.msra.mxu0 0
  %1201 = vmatprep.subr.bf16.mxu0 0
  %1202 = vmatpush1.bf16.msra.mxu0 0
  %1203 = vmatprep.subr.bf16.mxu0 0
  %1204 = vmatpush1.bf16.msra.mxu0 %v1187
  %1205 = vmatprep.subr.bf16.mxu0 0
  %1206 = vmatpush1.bf16.msra.mxu0 %v1186
  %1207 = vmatprep.subr.bf16.mxu0 0
  %1208 = vmatpush1.bf16.msra.mxu0 %v1185
  %1209 = vmatprep.subr.bf16.mxu0 0
  %1210 = vmatpush1.bf16.msra.mxu0 %v1184
  %1211 = vmatprep.subr.bf16.mxu0 0
  %1212 = vmatpush2.bf16.msra.mxu0 0
  %1213 = vmatprep.subr.bf16.mxu0 0
  %1214 = vmatpush2.bf16.msra.mxu0 0
  %1215 = vmatprep.subr.bf16.mxu0 0
  %1216 = vmatpush2.bf16.msra.mxu0 0
  %1217 = vmatprep.subr.bf16.mxu0 0
  %1218 = vmatpush2.bf16.msra.mxu0 0
  %1219 = vmatprep.subr.bf16.mxu0 0
  %1220 = vmatpush2.bf16.msra.mxu0 0
  %1221 = vmatprep.subr.bf16.mxu0 0
  %1222 = vmatpush2.bf16.msra.mxu0 0
  %1223 = vmatprep.subr.bf16.mxu0 0
  %1224 = vmatpush2.bf16.msra.mxu0 0
  %1225 = vmatprep.subr.bf16.mxu0 0
  %1226 = vmatpush2.bf16.msra.mxu0 0
  %1227 = vmatprep.mubr.bf16.mxu0 0
  %1228 = vmatmul.mubr.bf16.gmra.mxu0 %v1193
  %v1229 = vpop.f32.mrf.mxu0
  %v1230 = vadd.f32 0.0, %v1229
  %v1231 = vpop.f32.mrf.mxu0
  %v1232 = vpop.f32.mrf.mxu0
  %v1233 = vadd.f32 0.0, %v1232
  %v1234 = vpop.f32.mrf.mxu0
  %1235 = vdwg.mxu0
  %v1244 = vunpack.c.l.b16 %v1148
  %v1245 = vunpack.c.l.b16 %v1149
  %v1246 = vunpack.c.l.b16 %v1150
  %v1247 = vunpack.c.l.b16 %v1151
  %v1248 = vunpack.c.l.b16 %v1152
  %v1249 = vunpack.c.l.b16 %v1153
  %v1250 = vunpack.c.l.b16 %v1154
  %v1251 = vunpack.c.l.b16 %v1155
  %v1252 = vpack.c.b16 %v1245, %v1244
  %v1253 = vpack.c.b16 %v1247, %v1246
  %v1254 = vpack.c.b16 %v1249, %v1248
  %v1255 = vpack.c.b16 %v1251, %v1250
  %v1261 = vsel %vm52, %v1147, 0
  %1263 = vmatprep.subr.bf16.mxu0 0
  %1264 = vmatpush1.bf16.msra.mxu0 0
  %1265 = vmatprep.subr.bf16.mxu0 0
  %1266 = vmatpush1.bf16.msra.mxu0 0
  %1267 = vmatprep.subr.bf16.mxu0 0
  %1268 = vmatpush1.bf16.msra.mxu0 0
  %1269 = vmatprep.subr.bf16.mxu0 0
  %1270 = vmatpush1.bf16.msra.mxu0 0
  %1271 = vmatprep.subr.bf16.mxu0 0
  %1272 = vmatpush1.bf16.msra.mxu0 %v1255
  %1273 = vmatprep.subr.bf16.mxu0 0
  %1274 = vmatpush1.bf16.msra.mxu0 %v1254
  %1275 = vmatprep.subr.bf16.mxu0 0
  %1276 = vmatpush1.bf16.msra.mxu0 %v1253
  %1277 = vmatprep.subr.bf16.mxu0 0
  %1278 = vmatpush1.bf16.msra.mxu0 %v1252
  %1279 = vmatprep.subr.bf16.mxu0 0
  %1280 = vmatpush2.bf16.msra.mxu0 0
  %1281 = vmatprep.subr.bf16.mxu0 0
  %1282 = vmatpush2.bf16.msra.mxu0 0
  %1283 = vmatprep.subr.bf16.mxu0 0
  %1284 = vmatpush2.bf16.msra.mxu0 0
  %1285 = vmatprep.subr.bf16.mxu0 0
  %1286 = vmatpush2.bf16.msra.mxu0 0
  %1287 = vmatprep.subr.bf16.mxu0 0
  %1288 = vmatpush2.bf16.msra.mxu0 0
  %1289 = vmatprep.subr.bf16.mxu0 0
  %1290 = vmatpush2.bf16.msra.mxu0 0
  %1291 = vmatprep.subr.bf16.mxu0 0
  %1292 = vmatpush2.bf16.msra.mxu0 0
  %1293 = vmatprep.subr.bf16.mxu0 0
  %1294 = vmatpush2.bf16.msra.mxu0 0
  %1295 = vmatprep.mubr.bf16.mxu0 0
  %1296 = vmatmul.mubr.bf16.gmra.mxu0 %v1261
  %v1297 = vpop.f32.mrf.mxu0
  %v1298 = vadd.f32 %v1230, %v1297
  %v1299 = vpop.f32.mrf.mxu0
  %v1300 = vpop.f32.mrf.mxu0
  %v1301 = vadd.f32 %v1233, %v1300
  %v1302 = vpop.f32.mrf.mxu0
  %1303 = vdwg.mxu0
  %v1304 = vld [vmem:[#allocation3 + $0x2] sm:$0xff]
  %v1305 = vld [vmem:[#allocation3 + $0x12] sm:$0xff]
  %v1306 = vpack.c.bf16 %v1305, %v1304
  %s1307 = scalar_lea.vmem %s10, 64
  %v1308 = vld [vmem:[%s1307] sm:$0xf]
  %v1309 = vld [vmem:[%s1307 + $0x4] sm:$0xf]
  %v1310 = vld [vmem:[%s1307 + $0x8] sm:$0xf]
  %v1311 = vld [vmem:[%s1307 + $0xc] sm:$0xf]
  %v1312 = vld [vmem:[%s1307 + $0x10] sm:$0xf]
  %v1313 = vld [vmem:[%s1307 + $0x14] sm:$0xf]
  %v1314 = vld [vmem:[%s1307 + $0x18] sm:$0xf]
  %v1315 = vld [vmem:[%s1307 + $0x1c] sm:$0xf]
  %v1324 = vunpack.c.l.b16 %v1308
  %v1325 = vunpack.c.l.b16 %v1309
  %v1326 = vunpack.c.l.b16 %v1310
  %v1327 = vunpack.c.l.b16 %v1311
  %v1328 = vunpack.c.l.b16 %v1312
  %v1329 = vunpack.c.l.b16 %v1313
  %v1330 = vunpack.c.l.b16 %v1314
  %v1331 = vunpack.c.l.b16 %v1315
  %v1332 = vpack.c.b16 %v1325, %v1324
  %v1333 = vpack.c.b16 %v1327, %v1326
  %v1334 = vpack.c.b16 %v1329, %v1328
  %v1335 = vpack.c.b16 %v1331, %v1330
  %v1341 = vsel %vm52, %v1306, 0
  %1343 = vmatprep.subr.bf16.mxu0 0
  %1344 = vmatpush1.bf16.msra.mxu0 0
  %1345 = vmatprep.subr.bf16.mxu0 0
  %1346 = vmatpush1.bf16.msra.mxu0 0
  %1347 = vmatprep.subr.bf16.mxu0 0
  %1348 = vmatpush1.bf16.msra.mxu0 0
  %1349 = vmatprep.subr.bf16.mxu0 0
  %1350 = vmatpush1.bf16.msra.mxu0 0
  %1351 = vmatprep.subr.bf16.mxu0 0
  %1352 = vmatpush1.bf16.msra.mxu0 %v1335
  %1353 = vmatprep.subr.bf16.mxu0 0
  %1354 = vmatpush1.bf16.msra.mxu0 %v1334
  %1355 = vmatprep.subr.bf16.mxu0 0
  %1356 = vmatpush1.bf16.msra.mxu0 %v1333
  %1357 = vmatprep.subr.bf16.mxu0 0
  %1358 = vmatpush1.bf16.msra.mxu0 %v1332
  %1359 = vmatprep.subr.bf16.mxu0 0
  %1360 = vmatpush2.bf16.msra.mxu0 0
  %1361 = vmatprep.subr.bf16.mxu0 0
  %1362 = vmatpush2.bf16.msra.mxu0 0
  %1363 = vmatprep.subr.bf16.mxu0 0
  %1364 = vmatpush2.bf16.msra.mxu0 0
  %1365 = vmatprep.subr.bf16.mxu0 0
  %1366 = vmatpush2.bf16.msra.mxu0 0
  %1367 = vmatprep.subr.bf16.mxu0 0
  %1368 = vmatpush2.bf16.msra.mxu0 0
  %1369 = vmatprep.subr.bf16.mxu0 0
  %1370 = vmatpush2.bf16.msra.mxu0 0
  %1371 = vmatprep.subr.bf16.mxu0 0
  %1372 = vmatpush2.bf16.msra.mxu0 0
  %1373 = vmatprep.subr.bf16.mxu0 0
  %1374 = vmatpush2.bf16.msra.mxu0 0
  %1375 = vmatprep.mubr.bf16.mxu0 0
  %1376 = vmatmul.mubr.bf16.gmra.mxu0 %v1341
  %v1377 = vpop.f32.mrf.mxu0
  %v1378 = vadd.f32 0.0, %v1377
  %v1379 = vpop.f32.mrf.mxu0
  %v1380 = vpop.f32.mrf.mxu0
  %v1381 = vadd.f32 0.0, %v1380
  %v1382 = vpop.f32.mrf.mxu0
  %1383 = vdwg.mxu0
  %v1384 = vadd.f32 %v1298, %v1378
  %v1385 = vadd.f32 %v1301, %v1381
  %v1386 = vadd.f32 %v1384, %v41
  %v1387 = vadd.f32 %v1385, %v42
  %1388 = vst.msk [vmem:[%s11] sm:$0xff] %vm52, %v1386
  %1389 = vst.msk [vmem:[%s11 + $0x8] sm:$0xff] %vm52, %v1387
  // Predicated region
  $region46: #{resnet_stage_forward.3} parent=0 // pred_check
    _
  $region47: #{resnet_stage_forward.3} parent=0 // pred_check_branch
    %1391 = sbr.rel (0) target = $region49
  $region48: #{resnet_stage_forward.3} parent=0 // pred_region
    _
  $region49: #{resnet_stage_forward.3} parent=0 // pred_fallthru
    _
  // Predicated region
  $region50: #{resnet_stage_forward.3} parent=0 // pred_check
    _
  $region51: #{resnet_stage_forward.3} parent=0 // pred_check_branch
    %1393 = sbr.rel (0) target = $region53
  $region52: #{resnet_stage_forward.3} parent=0 // pred_region
    _
  $region53: #{resnet_stage_forward.3} parent=0 // pred_fallthru
    _

// kernel: resnet_stage_forward.2
$region0: #{resnet_stage_forward.2}
  #allocation0 [shape = 'u32[]', space=smem, size = 0x4, offset = 0x4, fixed_abs, tag = 'smem constant byte address 0x4 - core index']
  #allocation1 [shape = 'u32[144,128]{1,0:T(1,128)}', space=vmem, size = 0x12000, scoped, tag = 'internal scratch']
  #allocation2 [shape = 'f32[2,18,64]{2,1,0:T(8,128)}', space=vmem, size = 0x6000, scoped, tag = 'scratch operand']
  #allocation3 [shape = 'f32[2,10,64]{2,1,0:T(8,128)}', space=vmem, size = 0x4000, scoped, tag = 'scratch operand']
  %s0 = inlined_call_operand.vmem [shape: f32[2,16,64], index: 0, kind: input, shape index: {}]
  %s1 = inlined_call_operand.vmem [shape: f32[1,4], index: 1, kind: input, shape index: {}]
  %s2 = inlined_call_operand.vmem [shape: f32[1,4], index: 2, kind: input, shape index: {}]
  %s3 = inlined_call_operand.vmem [shape: f32[64,4], index: 3, kind: input, shape index: {}]
  %s4 = inlined_call_operand.vmem [shape: f32[4,64], index: 4, kind: input, shape index: {}]
  %s5 = inlined_call_operand.vmem [shape: bf16[3,64,64], index: 5, kind: input, shape index: {}]
  %s6 = inlined_call_operand.vmem [shape: f32[1,8], index: 6, kind: input, shape index: {}]
  %s7 = inlined_call_operand.vmem [shape: f32[1,8], index: 7, kind: input, shape index: {}]
  %s8 = inlined_call_operand.vmem [shape: f32[64,8], index: 8, kind: input, shape index: {}]
  %s9 = inlined_call_operand.vmem [shape: f32[8,64], index: 9, kind: input, shape index: {}]
  %s10 = inlined_call_operand.vmem [shape: bf16[3,64,64], index: 10, kind: input, shape index: {}]
  %s11 = inlined_call_operand.vmem [shape: f32[16,32], index: 11, kind: input, shape index: {}]
  %s12 = inlined_call_operand.vmem [shape: bf16[64,64], index: 12, kind: input, shape index: {}]
  %s13 = inlined_call_operand.vmem [shape: bf16[16,64], index: 13, kind: output, shape index: {}]
  %s14 = sld [smem:[#allocation0]]
  $region62: #{resnet_stage_forward.2} parent=0
    _
  %s16 = ssub.s32 1, %s14
  %s17 = scalar_select 0, %s16, %s14
  // Predicated region
  $region2: #{resnet_stage_forward.2} parent=0 // pred_check
    _
  $region3: #{resnet_stage_forward.2} parent=0 // pred_check_branch
    %19 = sbr.rel (0) target = $region5
  $region4: #{resnet_stage_forward.2} parent=0 // pred_region
    _
  $region5: #{resnet_stage_forward.2} parent=0 // pred_fallthru
    _
  // Predicated region
  $region6: #{resnet_stage_forward.2} parent=0 // pred_check
    _
  $region7: #{resnet_stage_forward.2} parent=0 // pred_check_branch
    %21 = sbr.rel (0) target = $region9
  $region8: #{resnet_stage_forward.2} parent=0 // pred_region
    _
  $region9: #{resnet_stage_forward.2} parent=0 // pred_fallthru
    _
  // Predicated region
  $region10: #{resnet_stage_forward.2} parent=0 // pred_check
    _
  $region11: #{resnet_stage_forward.2} parent=0 // pred_check_branch
    %23 = sbr.rel (0) target = $region13
  $region12: #{resnet_stage_forward.2} parent=0 // pred_region
    _
  $region13: #{resnet_stage_forward.2} parent=0 // pred_fallthru
    _
  // Predicated region
  $region14: #{resnet_stage_forward.2} parent=0 // pred_check
    _
  $region15: #{resnet_stage_forward.2} parent=0 // pred_check_branch
    %25 = sbr.rel (0) target = $region17
  $region16: #{resnet_stage_forward.2} parent=0 // pred_region
    _
  $region17: #{resnet_stage_forward.2} parent=0 // pred_fallthru
    _
  // Predicated region
  $region18: #{resnet_stage_forward.2} parent=0 // pred_check
    _
  $region19: #{resnet_stage_forward.2} parent=0 // pred_check_branch
    %27 = sbr.rel (0) target = $region21
  $region20: #{resnet_stage_forward.2} parent=0 // pred_region
    _
  $region21: #{resnet_stage_forward.2} parent=0 // pred_fallthru
    _
  // Predicated region
  $region22: #{resnet_stage_forward.2} parent=0 // pred_check
    _
  $region23: #{resnet_stage_forward.2} parent=0 // pred_check_branch
    %29 = sbr.rel (0) target = $region25
  $region24: #{resnet_stage_forward.2} parent=0 // pred_region
    _
  $region25: #{resnet_stage_forward.2} parent=0 // pred_fallthru
    _
  // Predicated region
  $region26: #{resnet_stage_forward.2} parent=0 // pred_check
    _
  $region27: #{resnet_stage_forward.2} parent=0 // pred_check_branch
    %31 = sbr.rel (0) target = $region29
  $region28: #{resnet_stage_forward.2} parent=0 // pred_region
    _
  $region29: #{resnet_stage_forward.2} parent=0 // pred_fallthru
    _
  // Predicated region
  $region30: #{resnet_stage_forward.2} parent=0 // pred_check
    _
  $region31: #{resnet_stage_forward.2} parent=0 // pred_check_branch
    %33 = sbr.rel (0) target = $region33
  $region32: #{resnet_stage_forward.2} parent=0 // pred_region
    _
  $region33: #{resnet_stage_forward.2} parent=0 // pred_fallthru
    _
  // Predicated region
  $region34: #{resnet_stage_forward.2} parent=0 // pred_check
    _
  $region35: #{resnet_stage_forward.2} parent=0 // pred_check_branch
    %35 = sbr.rel (0) target = $region37
  $region36: #{resnet_stage_forward.2} parent=0 // pred_region
    _
  $region37: #{resnet_stage_forward.2} parent=0 // pred_fallthru
    _
  // Predicated region
  $region38: #{resnet_stage_forward.2} parent=0 // pred_check
    _
  $region39: #{resnet_stage_forward.2} parent=0 // pred_check_branch
    %37 = sbr.rel (0) target = $region41
  $region40: #{resnet_stage_forward.2} parent=0 // pred_region
    _
  $region41: #{resnet_stage_forward.2} parent=0 // pred_fallthru
    _
  // Predicated region
  $region42: #{resnet_stage_forward.2} parent=0 // pred_check
    _
  $region43: #{resnet_stage_forward.2} parent=0 // pred_check_branch
    %39 = sbr.rel (0) target = $region45
  $region44: #{resnet_stage_forward.2} parent=0 // pred_region
    _
  $region45: #{resnet_stage_forward.2} parent=0 // pred_fallthru
    _
  // Predicated region
  $region46: #{resnet_stage_forward.2} parent=0 // pred_check
    _
  $region47: #{resnet_stage_forward.2} parent=0 // pred_check_branch
    %41 = sbr.rel (0) target = $region49
  $region48: #{resnet_stage_forward.2} parent=0 // pred_region
    _
  $region49: #{resnet_stage_forward.2} parent=0 // pred_fallthru
    _
  // Predicated region
  $region50: #{resnet_stage_forward.2} parent=0 // pred_check
    _
  $region51: #{resnet_stage_forward.2} parent=0 // pred_check_branch
    %43 = sbr.rel (0) target = $region53
  $region52: #{resnet_stage_forward.2} parent=0 // pred_region
    _
  $region53: #{resnet_stage_forward.2} parent=0 // pred_fallthru
    _
  %v45 = vld [vmem:[%s0] sm:$0xff]
  %v46 = vld [vmem:[%s0 + $0x8] sm:$0xff]
  %v47 = vld [vmem:[%s0 + $0x10] sm:$0xff]
  %v48 = vld [vmem:[%s0 + $0x18] sm:$0xff]
  %v49 = vld [vmem:[%s3] sm:$0xff]
  %v50 = vld [vmem:[%s3 + $0x8] sm:$0xff]
  %v51 = vld [vmem:[%s3 + $0x10] sm:$0xff]
  %v52 = vld [vmem:[%s3 + $0x18] sm:$0xff]
  %v53 = vld [vmem:[%s3 + $0x20] sm:$0xff]
  %v54 = vld [vmem:[%s3 + $0x28] sm:$0xff]
  %v55 = vld [vmem:[%s3 + $0x30] sm:$0xff]
  %v56 = vld [vmem:[%s3 + $0x38] sm:$0xff]
  %v57 = vld [vmem:[%s4] sm:$0xf]
  %vm58 = vcmask 523264
  %v59 = vsel %vm58, %v45, 0.0
  %v60 = vsel %vm58, %v46, 0.0
  %v61 = vadd.f32 %v59, %v60
  %v62 = vsel %vm58, %v47, 0.0
  %v63 = vadd.f32 %v61, %v62
  %v64 = vsel %vm58, %v48, 0.0
  %v65 = vadd.f32 %v63, %v64
  %v66 = vrot.slane %v65, 4
  %v67 = vadd.f32 %v65, %v66
  %v68 = vrot.slane %v67, 2
  %v69 = vadd.f32 %v67, %v68
  %v70 = vrot.slane %v69, 1
  %v71 = vadd.f32 %v69, %v70
  %v73 = vsel %vm58, %v71, 0
  %75 = vmatprep.subr.mxu0 0.0
  %76 = vmatpush1.msra.mxu0 0.0
  %77 = vmatprep.subr.mxu0 0.0
  %78 = vmatpush1.msra.mxu0 0.0
  %79 = vmatprep.subr.mxu0 0.0
  %80 = vmatpush1.msra.mxu0 0.0
  %81 = vmatprep.subr.mxu0 0.0
  %82 = vmatpush1.msra.mxu0 0.0
  %83 = vmatprep.subr.mxu0 0.0
  %84 = vmatpush1.msra.mxu0 0.0
  %85 = vmatprep.subr.mxu0 0.0
  %86 = vmatpush1.msra.mxu0 0.0
  %87 = vmatprep.subr.mxu0 0.0
  %88 = vmatpush1.msra.mxu0 0.0
  %89 = vmatprep.subr.mxu0 0.0
  %90 = vmatpush1.msra.mxu0 0.0
  %91 = vmatprep.subr.mxu0 0.0
  %92 = vmatpush1.msra.mxu0 %v56
  %93 = vmatprep.subr.mxu0 0.0
  %94 = vmatpush1.msra.mxu0 %v55
  %95 = vmatprep.subr.mxu0 0.0
  %96 = vmatpush1.msra.mxu0 %v54
  %97 = vmatprep.subr.mxu0 0.0
  %98 = vmatpush1.msra.mxu0 %v53
  %99 = vmatprep.subr.mxu0 0.0
  %100 = vmatpush1.msra.mxu0 %v52
  %101 = vmatprep.subr.mxu0 0.0
  %102 = vmatpush1.msra.mxu0 %v51
  %103 = vmatprep.subr.mxu0 0.0
  %104 = vmatpush1.msra.mxu0 %v50
  %105 = vmatprep.subr.mxu0 0.0
  %106 = vmatpush1.msra.mxu0 %v49
  %107 = vmatprep.subr.mxu0 0.0
  %108 = vmatpush2.msra.mxu0 0.0
  %109 = vmatprep.subr.mxu0 0.0
  %110 = vmatpush2.msra.mxu0 0.0
  %111 = vmatprep.subr.mxu0 0.0
  %112 = vmatpush2.msra.mxu0 0.0
  %113 = vmatprep.subr.mxu0 0.0
  %114 = vmatpush2.msra.mxu0 0.0
  %115 = vmatprep.subr.mxu0 0.0
  %116 = vmatpush2.msra.mxu0 0.0
  %117 = vmatprep.subr.mxu0 0.0
  %118 = vmatpush2.msra.mxu0 0.0
  %119 = vmatprep.subr.mxu0 0.0
  %120 = vmatpush2.msra.mxu0 0.0
  %121 = vmatprep.subr.mxu0 0.0
  %122 = vmatpush2.msra.mxu0 0.0
  %123 = vmatprep.subr.mxu0 0.0
  %124 = vmatpush2.msra.mxu0 0.0
  %125 = vmatprep.subr.mxu0 0.0
  %126 = vmatpush2.msra.mxu0 0.0
  %127 = vmatprep.subr.mxu0 0.0
  %128 = vmatpush2.msra.mxu0 0.0
  %129 = vmatprep.subr.mxu0 0.0
  %130 = vmatpush2.msra.mxu0 0.0
  %131 = vmatprep.subr.mxu0 0.0
  %132 = vmatpush2.msra.mxu0 0.0
  %133 = vmatprep.subr.mxu0 0.0
  %134 = vmatpush2.msra.mxu0 0.0
  %135 = vmatprep.subr.mxu0 0.0
  %136 = vmatpush2.msra.mxu0 0.0
  %137 = vmatprep.subr.mxu0 0.0
  %138 = vmatpush2.msra.mxu0 0.0
  %139 = vmatprep.mubr.f32.mxu0 0.0
  %140 = vmatmul.mubr.f32.gmra.mxu0 %v73
  %v141 = vpop.f32.mrf.mxu0
  %v142 = vadd.f32 0.0, %v141
  %v143 = vpop.f32.mrf.mxu0
  %144 = vdwg.mxu0
  %v145 = vmul.f32 %v142, 0.001953125
  %vm146 = vcmask 31744
  %v148 = vsel %vm146, %v145, 0
  %vm150 = vcmask 1043456
  %v152 = vsel %vm150, %v57, 0
  %154 = vmatprep.subr.mxu0 0.0
  %155 = vmatpush1.msra.mxu0 0.0
  %156 = vmatprep.subr.mxu0 0.0
  %157 = vmatpush1.msra.mxu0 0.0
  %158 = vmatprep.subr.mxu0 0.0
  %159 = vmatpush1.msra.mxu0 0.0
  %160 = vmatprep.subr.mxu0 0.0
  %161 = vmatpush1.msra.mxu0 0.0
  %162 = vmatprep.subr.mxu0 0.0
  %163 = vmatpush1.msra.mxu0 0.0
  %164 = vmatprep.subr.mxu0 0.0
  %165 = vmatpush1.msra.mxu0 0.0
  %166 = vmatprep.subr.mxu0 0.0
  %167 = vmatpush1.msra.mxu0 0.0
  %168 = vmatprep.subr.mxu0 0.0
  %169 = vmatpush1.msra.mxu0 0.0
  %170 = vmatprep.subr.mxu0 0.0
  %171 = vmatpush1.msra.mxu0 0.0
  %172 = vmatprep.subr.mxu0 0.0
  %173 = vmatpush1.msra.mxu0 0.0
  %174 = vmatprep.subr.mxu0 0.0
  %175 = vmatpush1.msra.mxu0 0.0
  %176 = vmatprep.subr.mxu0 0.0
  %177 = vmatpush1.msra.mxu0 0.0
  %178 = vmatprep.subr.mxu0 0.0
  %179 = vmatpush1.msra.mxu0 0.0
  %180 = vmatprep.subr.mxu0 0.0
  %181 = vmatpush1.msra.mxu0 0.0
  %182 = vmatprep.subr.mxu0 0.0
  %183 = vmatpush1.msra.mxu0 0.0
  %184 = vmatprep.subr.mxu0 0.0
  %185 = vmatpush1.msra.mxu0 %v152
  %186 = vmatprep.subr.mxu0 0.0
  %187 = vmatpush2.msra.mxu0 0.0
  %188 = vmatprep.subr.mxu0 0.0
  %189 = vmatpush2.msra.mxu0 0.0
  %190 = vmatprep.subr.mxu0 0.0
  %191 = vmatpush2.msra.mxu0 0.0
  %192 = vmatprep.subr.mxu0 0.0
  %193 = vmatpush2.msra.mxu0 0.0
  %194 = vmatprep.subr.mxu0 0.0
  %195 = vmatpush2.msra.mxu0 0.0
  %196 = vmatprep.subr.mxu0 0.0
  %197 = vmatpush2.msra.mxu0 0.0
  %198 = vmatprep.subr.mxu0 0.0
  %199 = vmatpush2.msra.mxu0 0.0
  %200 = vmatprep.subr.mxu0 0.0
  %201 = vmatpush2.msra.mxu0 0.0
  %202 = vmatprep.subr.mxu0 0.0
  %203 = vmatpush2.msra.mxu0 0.0
  %204 = vmatprep.subr.mxu0 0.0
  %205 = vmatpush2.msra.mxu0 0.0
  %206 = vmatprep.subr.mxu0 0.0
  %207 = vmatpush2.msra.mxu0 0.0
  %208 = vmatprep.subr.mxu0 0.0
  %209 = vmatpush2.msra.mxu0 0.0
  %210 = vmatprep.subr.mxu0 0.0
  %211 = vmatpush2.msra.mxu0 0.0
  %212 = vmatprep.subr.mxu0 0.0
  %213 = vmatpush2.msra.mxu0 0.0
  %214 = vmatprep.subr.mxu0 0.0
  %215 = vmatpush2.msra.mxu0 0.0
  %216 = vmatprep.subr.mxu0 0.0
  %217 = vmatpush2.msra.mxu0 0.0
  %218 = vmatprep.mubr.f32.mxu0 0.0
  %219 = vmatmul.mubr.f32.gmra.mxu0 %v148
  %v220 = vpop.f32.mrf.mxu0
  %v221 = vadd.f32 0.0, %v220
  %v222 = vpop.f32.mrf.mxu0
  %223 = vdwg.mxu0
  %v224 = vlaneseq
  %v225 = vshrl.u32 %v224, 7
  %v226 = vsub.s32 0, %v225
  %v227 = vrot.slane %v221, %v226
  %v228 = vsub.f32 %v45, %v227
  %v229 = vsub.f32 %v46, %v227
  %v230 = vsub.f32 %v47, %v227
  %v231 = vsub.f32 %v48, %v227
  %v232 = vmul.f32 %v228, %v228
  %v233 = vmul.f32 %v229, %v229
  %v234 = vmul.f32 %v230, %v230
  %v235 = vmul.f32 %v231, %v231
  %v236 = vsel %vm58, %v232, 0.0
  %v237 = vsel %vm58, %v233, 0.0
  %v238 = vadd.f32 %v236, %v237
  %v239 = vsel %vm58, %v234, 0.0
  %v240 = vadd.f32 %v238, %v239
  %v241 = vsel %vm58, %v235, 0.0
  %v242 = vadd.f32 %v240, %v241
  %v243 = vrot.slane %v242, 4
  %v244 = vadd.f32 %v242, %v243
  %v245 = vrot.slane %v244, 2
  %v246 = vadd.f32 %v244, %v245
  %v247 = vrot.slane %v246, 1
  %v248 = vadd.f32 %v246, %v247
  %v250 = vsel %vm58, %v248, 0
  %252 = vmatprep.subr.mxu0 0.0
  %253 = vmatpush1.msra.mxu0 0.0
  %254 = vmatprep.subr.mxu0 0.0
  %255 = vmatpush1.msra.mxu0 0.0
  %256 = vmatprep.subr.mxu0 0.0
  %257 = vmatpush1.msra.mxu0 0.0
  %258 = vmatprep.subr.mxu0 0.0
  %259 = vmatpush1.msra.mxu0 0.0
  %260 = vmatprep.subr.mxu0 0.0
  %261 = vmatpush1.msra.mxu0 0.0
  %262 = vmatprep.subr.mxu0 0.0
  %263 = vmatpush1.msra.mxu0 0.0
  %264 = vmatprep.subr.mxu0 0.0
  %265 = vmatpush1.msra.mxu0 0.0
  %266 = vmatprep.subr.mxu0 0.0
  %267 = vmatpush1.msra.mxu0 0.0
  %268 = vmatprep.subr.mxu0 0.0
  %269 = vmatpush1.msra.mxu0 %v56
  %270 = vmatprep.subr.mxu0 0.0
  %271 = vmatpush1.msra.mxu0 %v55
  %272 = vmatprep.subr.mxu0 0.0
  %273 = vmatpush1.msra.mxu0 %v54
  %274 = vmatprep.subr.mxu0 0.0
  %275 = vmatpush1.msra.mxu0 %v53
  %276 = vmatprep.subr.mxu0 0.0
  %277 = vmatpush1.msra.mxu0 %v52
  %278 = vmatprep.subr.mxu0 0.0
  %279 = vmatpush1.msra.mxu0 %v51
  %280 = vmatprep.subr.mxu0 0.0
  %281 = vmatpush1.msra.mxu0 %v50
  %282 = vmatprep.subr.mxu0 0.0
  %283 = vmatpush1.msra.mxu0 %v49
  %284 = vmatprep.subr.mxu0 0.0
  %285 = vmatpush2.msra.mxu0 0.0
  %286 = vmatprep.subr.mxu0 0.0
  %287 = vmatpush2.msra.mxu0 0.0
  %288 = vmatprep.subr.mxu0 0.0
  %289 = vmatpush2.msra.mxu0 0.0
  %290 = vmatprep.subr.mxu0 0.0
  %291 = vmatpush2.msra.mxu0 0.0
  %292 = vmatprep.subr.mxu0 0.0
  %293 = vmatpush2.msra.mxu0 0.0
  %294 = vmatprep.subr.mxu0 0.0
  %295 = vmatpush2.msra.mxu0 0.0
  %296 = vmatprep.subr.mxu0 0.0
  %297 = vmatpush2.msra.mxu0 0.0
  %298 = vmatprep.subr.mxu0 0.0
  %299 = vmatpush2.msra.mxu0 0.0
  %300 = vmatprep.subr.mxu0 0.0
  %301 = vmatpush2.msra.mxu0 0.0
  %302 = vmatprep.subr.mxu0 0.0
  %303 = vmatpush2.msra.mxu0 0.0
  %304 = vmatprep.subr.mxu0 0.0
  %305 = vmatpush2.msra.mxu0 0.0
  %306 = vmatprep.subr.mxu0 0.0
  %307 = vmatpush2.msra.mxu0 0.0
  %308 = vmatprep.subr.mxu0 0.0
  %309 = vmatpush2.msra.mxu0 0.0
  %310 = vmatprep.subr.mxu0 0.0
  %311 = vmatpush2.msra.mxu0 0.0
  %312 = vmatprep.subr.mxu0 0.0
  %313 = vmatpush2.msra.mxu0 0.0
  %314 = vmatprep.subr.mxu0 0.0
  %315 = vmatpush2.msra.mxu0 0.0
  %316 = vmatprep.mubr.f32.mxu0 0.0
  %317 = vmatmul.mubr.f32.gmra.mxu0 %v250
  %v318 = vpop.f32.mrf.mxu0
  %v319 = vadd.f32 0.0, %v318
  %v320 = vpop.f32.mrf.mxu0
  %321 = vdwg.mxu0
  %v322 = vmul.f32 %v319, 0.001953125
  %v323 = vld [vmem:[%s1] sm:$0x1]
  %v324 = vadd.f32 %v322, 1e-05
  %v325 = vrsqrt.pop %v324
  %v326 = vmul.f32 %v323, %v325
  %v327 = vld [vmem:[%s2] sm:$0x1]
  %v328 = vmul.f32 %v145, %v326
  %v329 = vsub.f32 %v327, %v328
  %v331 = vsel %vm146, %v326, 0
  %333 = vmatprep.subr.mxu0 0.0
  %334 = vmatpush1.msra.mxu0 0.0
  %335 = vmatprep.subr.mxu0 0.0
  %336 = vmatpush1.msra.mxu0 0.0
  %337 = vmatprep.subr.mxu0 0.0
  %338 = vmatpush1.msra.mxu0 0.0
  %339 = vmatprep.subr.mxu0 0.0
  %340 = vmatpush1.msra.mxu0 0.0
  %341 = vmatprep.subr.mxu0 0.0
  %342 = vmatpush1.msra.mxu0 0.0
  %343 = vmatprep.subr.mxu0 0.0
  %344 = vmatpush1.msra.mxu0 0.0
  %345 = vmatprep.subr.mxu0 0.0
  %346 = vmatpush1.msra.mxu0 0.0
  %347 = vmatprep.subr.mxu0 0.0
  %348 = vmatpush1.msra.mxu0 0.0
  %349 = vmatprep.subr.mxu0 0.0
  %350 = vmatpush1.msra.mxu0 0.0
  %351 = vmatprep.subr.mxu0 0.0
  %352 = vmatpush1.msra.mxu0 0.0
  %353 = vmatprep.subr.mxu0 0.0
  %354 = vmatpush1.msra.mxu0 0.0
  %355 = vmatprep.subr.mxu0 0.0
  %356 = vmatpush1.msra.mxu0 0.0
  %357 = vmatprep.subr.mxu0 0.0
  %358 = vmatpush1.msra.mxu0 0.0
  %359 = vmatprep.subr.mxu0 0.0
  %360 = vmatpush1.msra.mxu0 0.0
  %361 = vmatprep.subr.mxu0 0.0
  %362 = vmatpush1.msra.mxu0 0.0
  %363 = vmatprep.subr.mxu0 0.0
  %364 = vmatpush1.msra.mxu0 %v152
  %365 = vmatprep.subr.mxu0 0.0
  %366 = vmatpush2.msra.mxu0 0.0
  %367 = vmatprep.subr.mxu0 0.0
  %368 = vmatpush2.msra.mxu0 0.0
  %369 = vmatprep.subr.mxu0 0.0
  %370 = vmatpush2.msra.mxu0 0.0
  %371 = vmatprep.subr.mxu0 0.0
  %372 = vmatpush2.msra.mxu0 0.0
  %373 = vmatprep.subr.mxu0 0.0
  %374 = vmatpush2.msra.mxu0 0.0
  %375 = vmatprep.subr.mxu0 0.0
  %376 = vmatpush2.msra.mxu0 0.0
  %377 = vmatprep.subr.mxu0 0.0
  %378 = vmatpush2.msra.mxu0 0.0
  %379 = vmatprep.subr.mxu0 0.0
  %380 = vmatpush2.msra.mxu0 0.0
  %381 = vmatprep.subr.mxu0 0.0
  %382 = vmatpush2.msra.mxu0 0.0
  %383 = vmatprep.subr.mxu0 0.0
  %384 = vmatpush2.msra.mxu0 0.0
  %385 = vmatprep.subr.mxu0 0.0
  %386 = vmatpush2.msra.mxu0 0.0
  %387 = vmatprep.subr.mxu0 0.0
  %388 = vmatpush2.msra.mxu0 0.0
  %389 = vmatprep.subr.mxu0 0.0
  %390 = vmatpush2.msra.mxu0 0.0
  %391 = vmatprep.subr.mxu0 0.0
  %392 = vmatpush2.msra.mxu0 0.0
  %393 = vmatprep.subr.mxu0 0.0
  %394 = vmatpush2.msra.mxu0 0.0
  %395 = vmatprep.subr.mxu0 0.0
  %396 = vmatpush2.msra.mxu0 0.0
  %397 = vmatprep.mubr.f32.mxu0 0.0
  %398 = vmatmul.mubr.f32.gmra.mxu0 %v331
  %v399 = vpop.f32.mrf.mxu0
  %v400 = vadd.f32 0.0, %v399
  %v401 = vpop.f32.mrf.mxu0
  %402 = vdwg.mxu0
  %v403 = vlaneseq
  %v404 = vshrl.u32 %v403, 7
  %v405 = vsub.s32 0, %v404
  %v406 = vrot.slane %v400, %v405
  %v407 = vmul.f32 %v45, %v406
  %v408 = vmul.f32 %v46, %v406
  %v409 = vmul.f32 %v47, %v406
  %v410 = vmul.f32 %v48, %v406
  %v412 = vsel %vm146, %v329, 0
  %414 = vmatprep.subr.mxu0 0.0
  %415 = vmatpush1.msra.mxu0 0.0
  %416 = vmatprep.subr.mxu0 0.0
  %417 = vmatpush1.msra.mxu0 0.0
  %418 = vmatprep.subr.mxu0 0.0
  %419 = vmatpush1.msra.mxu0 0.0
  %420 = vmatprep.subr.mxu0 0.0
  %421 = vmatpush1.msra.mxu0 0.0
  %422 = vmatprep.subr.mxu0 0.0
  %423 = vmatpush1.msra.mxu0 0.0
  %424 = vmatprep.subr.mxu0 0.0
  %425 = vmatpush1.msra.mxu0 0.0
  %426 = vmatprep.subr.mxu0 0.0
  %427 = vmatpush1.msra.mxu0 0.0
  %428 = vmatprep.subr.mxu0 0.0
  %429 = vmatpush1.msra.mxu0 0.0
  %430 = vmatprep.subr.mxu0 0.0
  %431 = vmatpush1.msra.mxu0 0.0
  %432 = vmatprep.subr.mxu0 0.0
  %433 = vmatpush1.msra.mxu0 0.0
  %434 = vmatprep.subr.mxu0 0.0
  %435 = vmatpush1.msra.mxu0 0.0
  %436 = vmatprep.subr.mxu0 0.0
  %437 = vmatpush1.msra.mxu0 0.0
  %438 = vmatprep.subr.mxu0 0.0
  %439 = vmatpush1.msra.mxu0 0.0
  %440 = vmatprep.subr.mxu0 0.0
  %441 = vmatpush1.msra.mxu0 0.0
  %442 = vmatprep.subr.mxu0 0.0
  %443 = vmatpush1.msra.mxu0 0.0
  %444 = vmatprep.subr.mxu0 0.0
  %445 = vmatpush1.msra.mxu0 %v152
  %446 = vmatprep.subr.mxu0 0.0
  %447 = vmatpush2.msra.mxu0 0.0
  %448 = vmatprep.subr.mxu0 0.0
  %449 = vmatpush2.msra.mxu0 0.0
  %450 = vmatprep.subr.mxu0 0.0
  %451 = vmatpush2.msra.mxu0 0.0
  %452 = vmatprep.subr.mxu0 0.0
  %453 = vmatpush2.msra.mxu0 0.0
  %454 = vmatprep.subr.mxu0 0.0
  %455 = vmatpush2.msra.mxu0 0.0
  %456 = vmatprep.subr.mxu0 0.0
  %457 = vmatpush2.msra.mxu0 0.0
  %458 = vmatprep.subr.mxu0 0.0
  %459 = vmatpush2.msra.mxu0 0.0
  %460 = vmatprep.subr.mxu0 0.0
  %461 = vmatpush2.msra.mxu0 0.0
  %462 = vmatprep.subr.mxu0 0.0
  %463 = vmatpush2.msra.mxu0 0.0
  %464 = vmatprep.subr.mxu0 0.0
  %465 = vmatpush2.msra.mxu0 0.0
  %466 = vmatprep.subr.mxu0 0.0
  %467 = vmatpush2.msra.mxu0 0.0
  %468 = vmatprep.subr.mxu0 0.0
  %469 = vmatpush2.msra.mxu0 0.0
  %470 = vmatprep.subr.mxu0 0.0
  %471 = vmatpush2.msra.mxu0 0.0
  %472 = vmatprep.subr.mxu0 0.0
  %473 = vmatpush2.msra.mxu0 0.0
  %474 = vmatprep.subr.mxu0 0.0
  %475 = vmatpush2.msra.mxu0 0.0
  %476 = vmatprep.subr.mxu0 0.0
  %477 = vmatpush2.msra.mxu0 0.0
  %478 = vmatprep.mubr.f32.mxu0 0.0
  %479 = vmatmul.mubr.f32.gmra.mxu0 %v412
  %v480 = vpop.f32.mrf.mxu0
  %v481 = vadd.f32 0.0, %v480
  %v482 = vpop.f32.mrf.mxu0
  %483 = vdwg.mxu0
  %v484 = vlaneseq
  %v485 = vshrl.u32 %v484, 7
  %v486 = vsub.s32 0, %v485
  %v487 = vrot.slane %v481, %v486
  %v488 = vadd.f32 %v407, %v487
  %v489 = vadd.f32 %v408, %v487
  %v490 = vadd.f32 %v409, %v487
  %v491 = vadd.f32 %v410, %v487
  %v492 = vmax.f32 %v488, 0.0
  %v493 = vmax.f32 %v489, 0.0
  %v494 = vmax.f32 %v490, 0.0
  %v495 = vmax.f32 %v491, 0.0
  %vm496 = vcmask 516096
  %497 = vst.msk [vmem:[#allocation2] sm:$0x1] %vm496, 0.0
  %498 = vst.msk [vmem:[#allocation2 + $0x18] sm:$0x1] %vm496, 0.0
  %499 = vst.msk [vmem:[#allocation2 + $0x11] sm:$0x1] %vm496, 0.0
  %500 = vst.msk [vmem:[#allocation2 + $0x29] sm:$0x1] %vm496, 0.0
  %501 = vst.msk [vmem:[#allocation2 + $0x1] sm:$0xff] %vm58, %v492
  %502 = vst.msk [vmem:[#allocation2 + $0x9] sm:$0xff] %vm58, %v493
  %503 = vst.msk [vmem:[#allocation2 + $0x19] sm:$0xff] %vm58, %v494
  %504 = vst.msk [vmem:[#allocation2 + $0x21] sm:$0xff] %vm58, %v495
  %v505 = vld [vmem:[#allocation2] sm:$0xff]
  %v506 = vld [vmem:[#allocation2 + $0x8] sm:$0xff]
  %v507 = vld [vmem:[#allocation2 + $0x18] sm:$0xff]
  %v508 = vld [vmem:[#allocation2 + $0x20] sm:$0xff]
  %v509 = vpack.c.bf16 %v506, %v505
  %v510 = vpack.c.bf16 %v508, %v507
  %v511 = vld [vmem:[%s5] sm:$0xf]
  %v512 = vld [vmem:[%s5 + $0x4] sm:$0xf]
  %v513 = vld [vmem:[%s5 + $0x8] sm:$0xf]
  %v514 = vld [vmem:[%s5 + $0xc] sm:$0xf]
  %v515 = vld [vmem:[%s5 + $0x10] sm:$0xf]
  %v516 = vld [vmem:[%s5 + $0x14] sm:$0xf]
  %v517 = vld [vmem:[%s5 + $0x18] sm:$0xf]
  %v518 = vld [vmem:[%s5 + $0x1c] sm:$0xf]
  %v519 = vld [vmem:[#allocation2 + $0x1] sm:$0xff]
  %v520 = vld [vmem:[#allocation2 + $0x9] sm:$0xff]
  %v521 = vld [vmem:[#allocation2 + $0x19] sm:$0xff]
  %v522 = vld [vmem:[#allocation2 + $0x21] sm:$0xff]
  %v523 = vpack.c.bf16 %v520, %v519
  %v524 = vpack.c.bf16 %v522, %v521
  %s525 = scalar_lea.vmem %s5, 32
  %v526 = vld [vmem:[%s525] sm:$0xf]
  %v527 = vld [vmem:[%s525 + $0x4] sm:$0xf]
  %v528 = vld [vmem:[%s525 + $0x8] sm:$0xf]
  %v529 = vld [vmem:[%s525 + $0xc] sm:$0xf]
  %v530 = vld [vmem:[%s525 + $0x10] sm:$0xf]
  %v531 = vld [vmem:[%s525 + $0x14] sm:$0xf]
  %v532 = vld [vmem:[%s525 + $0x18] sm:$0xf]
  %v533 = vld [vmem:[%s525 + $0x1c] sm:$0xf]
  %v542 = vunpack.c.l.b16 %v526
  %v543 = vunpack.c.l.b16 %v527
  %v544 = vunpack.c.l.b16 %v528
  %v545 = vunpack.c.l.b16 %v529
  %v546 = vunpack.c.l.b16 %v530
  %v547 = vunpack.c.l.b16 %v531
  %v548 = vunpack.c.l.b16 %v532
  %v549 = vunpack.c.l.b16 %v533
  %v550 = vpack.c.b16 %v543, %v542
  %v551 = vpack.c.b16 %v545, %v544
  %v552 = vpack.c.b16 %v547, %v546
  %v553 = vpack.c.b16 %v549, %v548
  %v559 = vsel %vm58, %v523, 0
  %v562 = vsel %vm58, %v524, 0
  %564 = vmatprep.subr.bf16.mxu0 0
  %565 = vmatpush1.bf16.msra.mxu0 0
  %566 = vmatprep.subr.bf16.mxu0 0
  %567 = vmatpush1.bf16.msra.mxu0 0
  %568 = vmatprep.subr.bf16.mxu0 0
  %569 = vmatpush1.bf16.msra.mxu0 0
  %570 = vmatprep.subr.bf16.mxu0 0
  %571 = vmatpush1.bf16.msra.mxu0 0
  %572 = vmatprep.subr.bf16.mxu0 0
  %573 = vmatpush1.bf16.msra.mxu0 %v553
  %574 = vmatprep.subr.bf16.mxu0 0
  %575 = vmatpush1.bf16.msra.mxu0 %v552
  %576 = vmatprep.subr.bf16.mxu0 0
  %577 = vmatpush1.bf16.msra.mxu0 %v551
  %578 = vmatprep.subr.bf16.mxu0 0
  %579 = vmatpush1.bf16.msra.mxu0 %v550
  %580 = vmatprep.subr.bf16.mxu0 0
  %581 = vmatpush2.bf16.msra.mxu0 0
  %582 = vmatprep.subr.bf16.mxu0 0
  %583 = vmatpush2.bf16.msra.mxu0 0
  %584 = vmatprep.subr.bf16.mxu0 0
  %585 = vmatpush2.bf16.msra.mxu0 0
  %586 = vmatprep.subr.bf16.mxu0 0
  %587 = vmatpush2.bf16.msra.mxu0 0
  %588 = vmatprep.subr.bf16.mxu0 0
  %589 = vmatpush2.bf16.msra.mxu0 0
  %590 = vmatprep.subr.bf16.mxu0 0
  %591 = vmatpush2.bf16.msra.mxu0 0
  %592 = vmatprep.subr.bf16.mxu0 0
  %593 = vmatpush2.bf16.msra.mxu0 0
  %594 = vmatprep.subr.bf16.mxu0 0
  %595 = vmatpush2.bf16.msra.mxu0 0
  %596 = vmatprep.mubr.bf16.mxu0 0
  %597 = vmatmul.mubr.bf16.gmra.mxu0 %v559
  %v598 = vpop.f32.mrf.mxu0
  %v599 = vadd.f32 0.0, %v598
  %v600 = vpop.f32.mrf.mxu0
  %v601 = vpop.f32.mrf.mxu0
  %v602 = vadd.f32 0.0, %v601
  %v603 = vpop.f32.mrf.mxu0
  %604 = vmatprep.mubr.bf16.mxu0 0
  %605 = vmatmul.mubr.bf16.gmra.mxu0 %v562
  %v606 = vpop.f32.mrf.mxu0
  %v607 = vadd.f32 0.0, %v606
  %v608 = vpop.f32.mrf.mxu0
  %v609 = vpop.f32.mrf.mxu0
  %v610 = vadd.f32 0.0, %v609
  %v611 = vpop.f32.mrf.mxu0
  %612 = vdwg.mxu0
  %v621 = vunpack.c.l.b16 %v511
  %v622 = vunpack.c.l.b16 %v512
  %v623 = vunpack.c.l.b16 %v513
  %v624 = vunpack.c.l.b16 %v514
  %v625 = vunpack.c.l.b16 %v515
  %v626 = vunpack.c.l.b16 %v516
  %v627 = vunpack.c.l.b16 %v517
  %v628 = vunpack.c.l.b16 %v518
  %v629 = vpack.c.b16 %v622, %v621
  %v630 = vpack.c.b16 %v624, %v623
  %v631 = vpack.c.b16 %v626, %v625
  %v632 = vpack.c.b16 %v628, %v627
  %v638 = vsel %vm58, %v509, 0
  %v641 = vsel %vm58, %v510, 0
  %643 = vmatprep.subr.bf16.mxu0 0
  %644 = vmatpush1.bf16.msra.mxu0 0
  %645 = vmatprep.subr.bf16.mxu0 0
  %646 = vmatpush1.bf16.msra.mxu0 0
  %647 = vmatprep.subr.bf16.mxu0 0
  %648 = vmatpush1.bf16.msra.mxu0 0
  %649 = vmatprep.subr.bf16.mxu0 0
  %650 = vmatpush1.bf16.msra.mxu0 0
  %651 = vmatprep.subr.bf16.mxu0 0
  %652 = vmatpush1.bf16.msra.mxu0 %v632
  %653 = vmatprep.subr.bf16.mxu0 0
  %654 = vmatpush1.bf16.msra.mxu0 %v631
  %655 = vmatprep.subr.bf16.mxu0 0
  %656 = vmatpush1.bf16.msra.mxu0 %v630
  %657 = vmatprep.subr.bf16.mxu0 0
  %658 = vmatpush1.bf16.msra.mxu0 %v629
  %659 = vmatprep.subr.bf16.mxu0 0
  %660 = vmatpush2.bf16.msra.mxu0 0
  %661 = vmatprep.subr.bf16.mxu0 0
  %662 = vmatpush2.bf16.msra.mxu0 0
  %663 = vmatprep.subr.bf16.mxu0 0
  %664 = vmatpush2.bf16.msra.mxu0 0
  %665 = vmatprep.subr.bf16.mxu0 0
  %666 = vmatpush2.bf16.msra.mxu0 0
  %667 = vmatprep.subr.bf16.mxu0 0
  %668 = vmatpush2.bf16.msra.mxu0 0
  %669 = vmatprep.subr.bf16.mxu0 0
  %670 = vmatpush2.bf16.msra.mxu0 0
  %671 = vmatprep.subr.bf16.mxu0 0
  %672 = vmatpush2.bf16.msra.mxu0 0
  %673 = vmatprep.subr.bf16.mxu0 0
  %674 = vmatpush2.bf16.msra.mxu0 0
  %675 = vmatprep.mubr.bf16.mxu0 0
  %676 = vmatmul.mubr.bf16.gmra.mxu0 %v638
  %v677 = vpop.f32.mrf.mxu0
  %v678 = vadd.f32 %v599, %v677
  %v679 = vpop.f32.mrf.mxu0
  %v680 = vpop.f32.mrf.mxu0
  %v681 = vadd.f32 %v602, %v680
  %v682 = vpop.f32.mrf.mxu0
  %683 = vmatprep.mubr.bf16.mxu0 0
  %684 = vmatmul.mubr.bf16.gmra.mxu0 %v641
  %v685 = vpop.f32.mrf.mxu0
  %v686 = vadd.f32 %v607, %v685
  %v687 = vpop.f32.mrf.mxu0
  %v688 = vpop.f32.mrf.mxu0
  %v689 = vadd.f32 %v610, %v688
  %v690 = vpop.f32.mrf.mxu0
  %691 = vdwg.mxu0
  %v692 = vld [vmem:[#allocation2 + $0x2] sm:$0xff]
  %v693 = vld [vmem:[#allocation2 + $0xa] sm:$0xff]
  %v694 = vld [vmem:[#allocation2 + $0x1a] sm:$0xff]
  %v695 = vld [vmem:[#allocation2 + $0x22] sm:$0xff]
  %v696 = vpack.c.bf16 %v693, %v692
  %v697 = vpack.c.bf16 %v695, %v694
  %s698 = scalar_lea.vmem %s5, 64
  %v699 = vld [vmem:[%s698] sm:$0xf]
  %v700 = vld [vmem:[%s698 + $0x4] sm:$0xf]
  %v701 = vld [vmem:[%s698 + $0x8] sm:$0xf]
  %v702 = vld [vmem:[%s698 + $0xc] sm:$0xf]
  %v703 = vld [vmem:[%s698 + $0x10] sm:$0xf]
  %v704 = vld [vmem:[%s698 + $0x14] sm:$0xf]
  %v705 = vld [vmem:[%s698 + $0x18] sm:$0xf]
  %v706 = vld [vmem:[%s698 + $0x1c] sm:$0xf]
  %v715 = vunpack.c.l.b16 %v699
  %v716 = vunpack.c.l.b16 %v700
  %v717 = vunpack.c.l.b16 %v701
  %v718 = vunpack.c.l.b16 %v702
  %v719 = vunpack.c.l.b16 %v703
  %v720 = vunpack.c.l.b16 %v704
  %v721 = vunpack.c.l.b16 %v705
  %v722 = vunpack.c.l.b16 %v706
  %v723 = vpack.c.b16 %v716, %v715
  %v724 = vpack.c.b16 %v718, %v717
  %v725 = vpack.c.b16 %v720, %v719
  %v726 = vpack.c.b16 %v722, %v721
  %v732 = vsel %vm58, %v696, 0
  %v735 = vsel %vm58, %v697, 0
  %737 = vmatprep.subr.bf16.mxu0 0
  %738 = vmatpush1.bf16.msra.mxu0 0
  %739 = vmatprep.subr.bf16.mxu0 0
  %740 = vmatpush1.bf16.msra.mxu0 0
  %741 = vmatprep.subr.bf16.mxu0 0
  %742 = vmatpush1.bf16.msra.mxu0 0
  %743 = vmatprep.subr.bf16.mxu0 0
  %744 = vmatpush1.bf16.msra.mxu0 0
  %745 = vmatprep.subr.bf16.mxu0 0
  %746 = vmatpush1.bf16.msra.mxu0 %v726
  %747 = vmatprep.subr.bf16.mxu0 0
  %748 = vmatpush1.bf16.msra.mxu0 %v725
  %749 = vmatprep.subr.bf16.mxu0 0
  %750 = vmatpush1.bf16.msra.mxu0 %v724
  %751 = vmatprep.subr.bf16.mxu0 0
  %752 = vmatpush1.bf16.msra.mxu0 %v723
  %753 = vmatprep.subr.bf16.mxu0 0
  %754 = vmatpush2.bf16.msra.mxu0 0
  %755 = vmatprep.subr.bf16.mxu0 0
  %756 = vmatpush2.bf16.msra.mxu0 0
  %757 = vmatprep.subr.bf16.mxu0 0
  %758 = vmatpush2.bf16.msra.mxu0 0
  %759 = vmatprep.subr.bf16.mxu0 0
  %760 = vmatpush2.bf16.msra.mxu0 0
  %761 = vmatprep.subr.bf16.mxu0 0
  %762 = vmatpush2.bf16.msra.mxu0 0
  %763 = vmatprep.subr.bf16.mxu0 0
  %764 = vmatpush2.bf16.msra.mxu0 0
  %765 = vmatprep.subr.bf16.mxu0 0
  %766 = vmatpush2.bf16.msra.mxu0 0
  %767 = vmatprep.subr.bf16.mxu0 0
  %768 = vmatpush2.bf16.msra.mxu0 0
  %769 = vmatprep.mubr.bf16.mxu0 0
  %770 = vmatmul.mubr.bf16.gmra.mxu0 %v732
  %v771 = vpop.f32.mrf.mxu0
  %v772 = vadd.f32 0.0, %v771
  %v773 = vpop.f32.mrf.mxu0
  %v774 = vpop.f32.mrf.mxu0
  %v775 = vadd.f32 0.0, %v774
  %v776 = vpop.f32.mrf.mxu0
  %777 = vmatprep.mubr.bf16.mxu0 0
  %778 = vmatmul.mubr.bf16.gmra.mxu0 %v735
  %v779 = vpop.f32.mrf.mxu0
  %v780 = vadd.f32 0.0, %v779
  %v781 = vpop.f32.mrf.mxu0
  %v782 = vpop.f32.mrf.mxu0
  %v783 = vadd.f32 0.0, %v782
  %v784 = vpop.f32.mrf.mxu0
  %785 = vdwg.mxu0
  %v786 = vadd.f32 %v678, %v772
  %v787 = vadd.f32 %v681, %v775
  %v788 = vadd.f32 %v686, %v780
  %v789 = vadd.f32 %v689, %v783
  %v790 = vld [vmem:[%s11] sm:$0xff]
  %v791 = vld [vmem:[%s11 + $0x8] sm:$0xff]
  %vm792 = vcmask 261120
  %v794 = vsel %vm792, %v790, 0
  %v797 = vsel %vm792, %v791, 0
  %799 = vmatprep.subr.mxu0 0.0
  %800 = vmatpush1.msra.mxu0 0.0
  %801 = vmatprep.subr.mxu0 0.0
  %802 = vmatpush1.msra.mxu0 0.0
  %803 = vmatprep.subr.mxu0 0.0
  %804 = vmatpush1.msra.mxu0 0.0
  %805 = vmatprep.subr.mxu0 0.0
  %806 = vmatpush1.msra.mxu0 0.0
  %807 = vmatprep.subr.mxu0 0.0
  %808 = vmatpush1.msra.mxu0 0.0
  %809 = vmatprep.subr.mxu0 0.0
  %810 = vmatpush1.msra.mxu0 0.0
  %811 = vmatprep.subr.mxu0 0.0
  %812 = vmatpush1.msra.mxu0 0.0
  %813 = vmatprep.subr.mxu0 0.0
  %814 = vmatpush1.msra.mxu0 0.0
  %815 = vmatprep.subr.mxu0 0.0
  %816 = vmatpush1.msra.mxu0 0.0
  %817 = vmatprep.subr.mxu0 0.0
  %818 = vmatpush1.msra.mxu0 0.0
  %819 = vmatprep.subr.mxu0 0.0
  %820 = vmatpush1.msra.mxu0 0.0
  %821 = vmatprep.subr.mxu0 0.0
  %822 = vmatpush1.msra.mxu0 0.0
  %823 = vmatprep.subr.mxu0 0.0
  %824 = vmatpush1.msra.mxu0 %v789
  %825 = vmatprep.subr.mxu0 0.0
  %826 = vmatpush1.msra.mxu0 %v788
  %827 = vmatprep.subr.mxu0 0.0
  %828 = vmatpush1.msra.mxu0 %v787
  %829 = vmatprep.subr.mxu0 0.0
  %830 = vmatpush1.msra.mxu0 %v786
  %831 = vmatprep.subr.mxu0 0.0
  %832 = vmatpush2.msra.mxu0 0.0
  %833 = vmatprep.subr.mxu0 0.0
  %834 = vmatpush2.msra.mxu0 0.0
  %835 = vmatprep.subr.mxu0 0.0
  %836 = vmatpush2.msra.mxu0 0.0
  %837 = vmatprep.subr.mxu0 0.0
  %838 = vmatpush2.msra.mxu0 0.0
  %839 = vmatprep.subr.mxu0 0.0
  %840 = vmatpush2.msra.mxu0 0.0
  %841 = vmatprep.subr.mxu0 0.0
  %842 = vmatpush2.msra.mxu0 0.0
  %843 = vmatprep.subr.mxu0 0.0
  %844 = vmatpush2.msra.mxu0 0.0
  %845 = vmatprep.subr.mxu0 0.0
  %846 = vmatpush2.msra.mxu0 0.0
  %847 = vmatprep.subr.mxu0 0.0
  %848 = vmatpush2.msra.mxu0 0.0
  %849 = vmatprep.subr.mxu0 0.0
  %850 = vmatpush2.msra.mxu0 0.0
  %851 = vmatprep.subr.mxu0 0.0
  %852 = vmatpush2.msra.mxu0 0.0
  %853 = vmatprep.subr.mxu0 0.0
  %854 = vmatpush2.msra.mxu0 0.0
  %855 = vmatprep.subr.mxu0 0.0
  %856 = vmatpush2.msra.mxu0 0.0
  %857 = vmatprep.subr.mxu0 0.0
  %858 = vmatpush2.msra.mxu0 0.0
  %859 = vmatprep.subr.mxu0 0.0
  %860 = vmatpush2.msra.mxu0 0.0
  %861 = vmatprep.subr.mxu0 0.0
  %862 = vmatpush2.msra.mxu0 0.0
  %863 = vmatprep.mubr.f32.mxu0 0.0
  %864 = vmatmul.mubr.f32.gmra.mxu0 %v794
  %v865 = vpop.f32.mrf.mxu0
  %v866 = vadd.f32 0.0, %v865
  %v867 = vpop.f32.mrf.mxu0
  %868 = vmatprep.mubr.f32.mxu0 0.0
  %869 = vmatmul.mubr.f32.gmra.mxu0 %v797
  %v870 = vpop.f32.mrf.mxu0
  %v871 = vadd.f32 0.0, %v870
  %v872 = vpop.f32.mrf.mxu0
  %873 = vdwg.mxu0
  %v874 = vld [vmem:[%s8] sm:$0xff]
  %v875 = vld [vmem:[%s8 + $0x8] sm:$0xff]
  %v876 = vld [vmem:[%s8 + $0x10] sm:$0xff]
  %v877 = vld [vmem:[%s8 + $0x18] sm:$0xff]
  %v878 = vld [vmem:[%s8 + $0x20] sm:$0xff]
  %v879 = vld [vmem:[%s8 + $0x28] sm:$0xff]
  %v880 = vld [vmem:[%s8 + $0x30] sm:$0xff]
  %v881 = vld [vmem:[%s8 + $0x38] sm:$0xff]
  %v882 = vld [vmem:[%s9] sm:$0xff]
  %v883 = vsel %vm58, %v866, 0.0
  %v884 = vsel %vm58, %v871, 0.0
  %v885 = vadd.f32 %v883, %v884
  %v886 = vrot.slane %v885, 4
  %v887 = vadd.f32 %v885, %v886
  %v888 = vrot.slane %v887, 2
  %v889 = vadd.f32 %v887, %v888
  %v890 = vrot.slane %v889, 1
  %v891 = vadd.f32 %v889, %v890
  %v893 = vsel %vm58, %v891, 0
  %895 = vmatprep.subr.mxu0 0.0
  %896 = vmatpush1.msra.mxu0 0.0
  %897 = vmatprep.subr.mxu0 0.0
  %898 = vmatpush1.msra.mxu0 0.0
  %899 = vmatprep.subr.mxu0 0.0
  %900 = vmatpush1.msra.mxu0 0.0
  %901 = vmatprep.subr.mxu0 0.0
  %902 = vmatpush1.msra.mxu0 0.0
  %903 = vmatprep.subr.mxu0 0.0
  %904 = vmatpush1.msra.mxu0 0.0
  %905 = vmatprep.subr.mxu0 0.0
  %906 = vmatpush1.msra.mxu0 0.0
  %907 = vmatprep.subr.mxu0 0.0
  %908 = vmatpush1.msra.mxu0 0.0
  %909 = vmatprep.subr.mxu0 0.0
  %910 = vmatpush1.msra.mxu0 0.0
  %911 = vmatprep.subr.mxu0 0.0
  %912 = vmatpush1.msra.mxu0 %v881
  %913 = vmatprep.subr.mxu0 0.0
  %914 = vmatpush1.msra.mxu0 %v880
  %915 = vmatprep.subr.mxu0 0.0
  %916 = vmatpush1.msra.mxu0 %v879
  %917 = vmatprep.subr.mxu0 0.0
  %918 = vmatpush1.msra.mxu0 %v878
  %919 = vmatprep.subr.mxu0 0.0
  %920 = vmatpush1.msra.mxu0 %v877
  %921 = vmatprep.subr.mxu0 0.0
  %922 = vmatpush1.msra.mxu0 %v876
  %923 = vmatprep.subr.mxu0 0.0
  %924 = vmatpush1.msra.mxu0 %v875
  %925 = vmatprep.subr.mxu0 0.0
  %926 = vmatpush1.msra.mxu0 %v874
  %927 = vmatprep.subr.mxu0 0.0
  %928 = vmatpush2.msra.mxu0 0.0
  %929 = vmatprep.subr.mxu0 0.0
  %930 = vmatpush2.msra.mxu0 0.0
  %931 = vmatprep.subr.mxu0 0.0
  %932 = vmatpush2.msra.mxu0 0.0
  %933 = vmatprep.subr.mxu0 0.0
  %934 = vmatpush2.msra.mxu0 0.0
  %935 = vmatprep.subr.mxu0 0.0
  %936 = vmatpush2.msra.mxu0 0.0
  %937 = vmatprep.subr.mxu0 0.0
  %938 = vmatpush2.msra.mxu0 0.0
  %939 = vmatprep.subr.mxu0 0.0
  %940 = vmatpush2.msra.mxu0 0.0
  %941 = vmatprep.subr.mxu0 0.0
  %942 = vmatpush2.msra.mxu0 0.0
  %943 = vmatprep.subr.mxu0 0.0
  %944 = vmatpush2.msra.mxu0 0.0
  %945 = vmatprep.subr.mxu0 0.0
  %946 = vmatpush2.msra.mxu0 0.0
  %947 = vmatprep.subr.mxu0 0.0
  %948 = vmatpush2.msra.mxu0 0.0
  %949 = vmatprep.subr.mxu0 0.0
  %950 = vmatpush2.msra.mxu0 0.0
  %951 = vmatprep.subr.mxu0 0.0
  %952 = vmatpush2.msra.mxu0 0.0
  %953 = vmatprep.subr.mxu0 0.0
  %954 = vmatpush2.msra.mxu0 0.0
  %955 = vmatprep.subr.mxu0 0.0
  %956 = vmatpush2.msra.mxu0 0.0
  %957 = vmatprep.subr.mxu0 0.0
  %958 = vmatpush2.msra.mxu0 0.0
  %959 = vmatprep.mubr.f32.mxu0 0.0
  %960 = vmatmul.mubr.f32.gmra.mxu0 %v893
  %v961 = vpop.f32.mrf.mxu0
  %v962 = vadd.f32 0.0, %v961
  %v963 = vpop.f32.mrf.mxu0
  %964 = vdwg.mxu0
  %v965 = vmul.f32 %v962, 0.0078125
  %vm966 = vcmask 64512
  %v968 = vsel %vm966, %v965, 0
  %970 = vmatprep.subr.mxu0 0.0
  %971 = vmatpush1.msra.mxu0 0.0
  %972 = vmatprep.subr.mxu0 0.0
  %973 = vmatpush1.msra.mxu0 0.0
  %974 = vmatprep.subr.mxu0 0.0
  %975 = vmatpush1.msra.mxu0 0.0
  %976 = vmatprep.subr.mxu0 0.0
  %977 = vmatpush1.msra.mxu0 0.0
  %978 = vmatprep.subr.mxu0 0.0
  %979 = vmatpush1.msra.mxu0 0.0
  %980 = vmatprep.subr.mxu0 0.0
  %981 = vmatpush1.msra.mxu0 0.0
  %982 = vmatprep.subr.mxu0 0.0
  %983 = vmatpush1.msra.mxu0 0.0
  %984 = vmatprep.subr.mxu0 0.0
  %985 = vmatpush1.msra.mxu0 0.0
  %986 = vmatprep.subr.mxu0 0.0
  %987 = vmatpush1.msra.mxu0 0.0
  %988 = vmatprep.subr.mxu0 0.0
  %989 = vmatpush1.msra.mxu0 0.0
  %990 = vmatprep.subr.mxu0 0.0
  %991 = vmatpush1.msra.mxu0 0.0
  %992 = vmatprep.subr.mxu0 0.0
  %993 = vmatpush1.msra.mxu0 0.0
  %994 = vmatprep.subr.mxu0 0.0
  %995 = vmatpush1.msra.mxu0 0.0
  %996 = vmatprep.subr.mxu0 0.0
  %997 = vmatpush1.msra.mxu0 0.0
  %998 = vmatprep.subr.mxu0 0.0
  %999 = vmatpush1.msra.mxu0 0.0
  %1000 = vmatprep.subr.mxu0 0.0
  %1001 = vmatpush1.msra.mxu0 %v882
  %1002 = vmatprep.subr.mxu0 0.0
  %1003 = vmatpush2.msra.mxu0 0.0
  %1004 = vmatprep.subr.mxu0 0.0
  %1005 = vmatpush2.msra.mxu0 0.0
  %1006 = vmatprep.subr.mxu0 0.0
  %1007 = vmatpush2.msra.mxu0 0.0
  %1008 = vmatprep.subr.mxu0 0.0
  %1009 = vmatpush2.msra.mxu0 0.0
  %1010 = vmatprep.subr.mxu0 0.0
  %1011 = vmatpush2.msra.mxu0 0.0
  %1012 = vmatprep.subr.mxu0 0.0
  %1013 = vmatpush2.msra.mxu0 0.0
  %1014 = vmatprep.subr.mxu0 0.0
  %1015 = vmatpush2.msra.mxu0 0.0
  %1016 = vmatprep.subr.mxu0 0.0
  %1017 = vmatpush2.msra.mxu0 0.0
  %1018 = vmatprep.subr.mxu0 0.0
  %1019 = vmatpush2.msra.mxu0 0.0
  %1020 = vmatprep.subr.mxu0 0.0
  %1021 = vmatpush2.msra.mxu0 0.0
  %1022 = vmatprep.subr.mxu0 0.0
  %1023 = vmatpush2.msra.mxu0 0.0
  %1024 = vmatprep.subr.mxu0 0.0
  %1025 = vmatpush2.msra.mxu0 0.0
  %1026 = vmatprep.subr.mxu0 0.0
  %1027 = vmatpush2.msra.mxu0 0.0
  %1028 = vmatprep.subr.mxu0 0.0
  %1029 = vmatpush2.msra.mxu0 0.0
  %1030 = vmatprep.subr.mxu0 0.0
  %1031 = vmatpush2.msra.mxu0 0.0
  %1032 = vmatprep.subr.mxu0 0.0
  %1033 = vmatpush2.msra.mxu0 0.0
  %1034 = vmatprep.mubr.f32.mxu0 0.0
  %1035 = vmatmul.mubr.f32.gmra.mxu0 %v968
  %v1036 = vpop.f32.mrf.mxu0
  %v1037 = vadd.f32 0.0, %v1036
  %v1038 = vpop.f32.mrf.mxu0
  %1039 = vdwg.mxu0
  %v1040 = vlaneseq
  %v1041 = vshrl.u32 %v1040, 7
  %v1042 = vsub.s32 0, %v1041
  %v1043 = vrot.slane %v1037, %v1042
  %v1044 = vsub.f32 %v866, %v1043
  %v1045 = vsub.f32 %v871, %v1043
  %v1046 = vmul.f32 %v1044, %v1044
  %v1047 = vmul.f32 %v1045, %v1045
  %v1048 = vsel %vm58, %v1046, 0.0
  %v1049 = vsel %vm58, %v1047, 0.0
  %v1050 = vadd.f32 %v1048, %v1049
  %v1051 = vrot.slane %v1050, 4
  %v1052 = vadd.f32 %v1050, %v1051
  %v1053 = vrot.slane %v1052, 2
  %v1054 = vadd.f32 %v1052, %v1053
  %v1055 = vrot.slane %v1054, 1
  %v1056 = vadd.f32 %v1054, %v1055
  %v1058 = vsel %vm58, %v1056, 0
  %1060 = vmatprep.subr.mxu0 0.0
  %1061 = vmatpush1.msra.mxu0 0.0
  %1062 = vmatprep.subr.mxu0 0.0
  %1063 = vmatpush1.msra.mxu0 0.0
  %1064 = vmatprep.subr.mxu0 0.0
  %1065 = vmatpush1.msra.mxu0 0.0
  %1066 = vmatprep.subr.mxu0 0.0
  %1067 = vmatpush1.msra.mxu0 0.0
  %1068 = vmatprep.subr.mxu0 0.0
  %1069 = vmatpush1.msra.mxu0 0.0
  %1070 = vmatprep.subr.mxu0 0.0
  %1071 = vmatpush1.msra.mxu0 0.0
  %1072 = vmatprep.subr.mxu0 0.0
  %1073 = vmatpush1.msra.mxu0 0.0
  %1074 = vmatprep.subr.mxu0 0.0
  %1075 = vmatpush1.msra.mxu0 0.0
  %1076 = vmatprep.subr.mxu0 0.0
  %1077 = vmatpush1.msra.mxu0 %v881
  %1078 = vmatprep.subr.mxu0 0.0
  %1079 = vmatpush1.msra.mxu0 %v880
  %1080 = vmatprep.subr.mxu0 0.0
  %1081 = vmatpush1.msra.mxu0 %v879
  %1082 = vmatprep.subr.mxu0 0.0
  %1083 = vmatpush1.msra.mxu0 %v878
  %1084 = vmatprep.subr.mxu0 0.0
  %1085 = vmatpush1.msra.mxu0 %v877
  %1086 = vmatprep.subr.mxu0 0.0
  %1087 = vmatpush1.msra.mxu0 %v876
  %1088 = vmatprep.subr.mxu0 0.0
  %1089 = vmatpush1.msra.mxu0 %v875
  %1090 = vmatprep.subr.mxu0 0.0
  %1091 = vmatpush1.msra.mxu0 %v874
  %1092 = vmatprep.subr.mxu0 0.0
  %1093 = vmatpush2.msra.mxu0 0.0
  %1094 = vmatprep.subr.mxu0 0.0
  %1095 = vmatpush2.msra.mxu0 0.0
  %1096 = vmatprep.subr.mxu0 0.0
  %1097 = vmatpush2.msra.mxu0 0.0
  %1098 = vmatprep.subr.mxu0 0.0
  %1099 = vmatpush2.msra.mxu0 0.0
  %1100 = vmatprep.subr.mxu0 0.0
  %1101 = vmatpush2.msra.mxu0 0.0
  %1102 = vmatprep.subr.mxu0 0.0
  %1103 = vmatpush2.msra.mxu0 0.0
  %1104 = vmatprep.subr.mxu0 0.0
  %1105 = vmatpush2.msra.mxu0 0.0
  %1106 = vmatprep.subr.mxu0 0.0
  %1107 = vmatpush2.msra.mxu0 0.0
  %1108 = vmatprep.subr.mxu0 0.0
  %1109 = vmatpush2.msra.mxu0 0.0
  %1110 = vmatprep.subr.mxu0 0.0
  %1111 = vmatpush2.msra.mxu0 0.0
  %1112 = vmatprep.subr.mxu0 0.0
  %1113 = vmatpush2.msra.mxu0 0.0
  %1114 = vmatprep.subr.mxu0 0.0
  %1115 = vmatpush2.msra.mxu0 0.0
  %1116 = vmatprep.subr.mxu0 0.0
  %1117 = vmatpush2.msra.mxu0 0.0
  %1118 = vmatprep.subr.mxu0 0.0
  %1119 = vmatpush2.msra.mxu0 0.0
  %1120 = vmatprep.subr.mxu0 0.0
  %1121 = vmatpush2.msra.mxu0 0.0
  %1122 = vmatprep.subr.mxu0 0.0
  %1123 = vmatpush2.msra.mxu0 0.0
  %1124 = vmatprep.mubr.f32.mxu0 0.0
  %1125 = vmatmul.mubr.f32.gmra.mxu0 %v1058
  %v1126 = vpop.f32.mrf.mxu0
  %v1127 = vadd.f32 0.0, %v1126
  %v1128 = vpop.f32.mrf.mxu0
  %1129 = vdwg.mxu0
  %v1130 = vmul.f32 %v1127, 0.0078125
  %v1131 = vld [vmem:[%s6] sm:$0x1]
  %v1132 = vadd.f32 %v1130, 1e-05
  %v1133 = vrsqrt.pop %v1132
  %v1134 = vmul.f32 %v1131, %v1133
  %v1135 = vld [vmem:[%s7] sm:$0x1]
  %v1136 = vmul.f32 %v965, %v1134
  %v1137 = vsub.f32 %v1135, %v1136
  %v1139 = vsel %vm966, %v1134, 0
  %1141 = vmatprep.subr.mxu0 0.0
  %1142 = vmatpush1.msra.mxu0 0.0
  %1143 = vmatprep.subr.mxu0 0.0
  %1144 = vmatpush1.msra.mxu0 0.0
  %1145 = vmatprep.subr.mxu0 0.0
  %1146 = vmatpush1.msra.mxu0 0.0
  %1147 = vmatprep.subr.mxu0 0.0
  %1148 = vmatpush1.msra.mxu0 0.0
  %1149 = vmatprep.subr.mxu0 0.0
  %1150 = vmatpush1.msra.mxu0 0.0
  %1151 = vmatprep.subr.mxu0 0.0
  %1152 = vmatpush1.msra.mxu0 0.0
  %1153 = vmatprep.subr.mxu0 0.0
  %1154 = vmatpush1.msra.mxu0 0.0
  %1155 = vmatprep.subr.mxu0 0.0
  %1156 = vmatpush1.msra.mxu0 0.0
  %1157 = vmatprep.subr.mxu0 0.0
  %1158 = vmatpush1.msra.mxu0 0.0
  %1159 = vmatprep.subr.mxu0 0.0
  %1160 = vmatpush1.msra.mxu0 0.0
  %1161 = vmatprep.subr.mxu0 0.0
  %1162 = vmatpush1.msra.mxu0 0.0
  %1163 = vmatprep.subr.mxu0 0.0
  %1164 = vmatpush1.msra.mxu0 0.0
  %1165 = vmatprep.subr.mxu0 0.0
  %1166 = vmatpush1.msra.mxu0 0.0
  %1167 = vmatprep.subr.mxu0 0.0
  %1168 = vmatpush1.msra.mxu0 0.0
  %1169 = vmatprep.subr.mxu0 0.0
  %1170 = vmatpush1.msra.mxu0 0.0
  %1171 = vmatprep.subr.mxu0 0.0
  %1172 = vmatpush1.msra.mxu0 %v882
  %1173 = vmatprep.subr.mxu0 0.0
  %1174 = vmatpush2.msra.mxu0 0.0
  %1175 = vmatprep.subr.mxu0 0.0
  %1176 = vmatpush2.msra.mxu0 0.0
  %1177 = vmatprep.subr.mxu0 0.0
  %1178 = vmatpush2.msra.mxu0 0.0
  %1179 = vmatprep.subr.mxu0 0.0
  %1180 = vmatpush2.msra.mxu0 0.0
  %1181 = vmatprep.subr.mxu0 0.0
  %1182 = vmatpush2.msra.mxu0 0.0
  %1183 = vmatprep.subr.mxu0 0.0
  %1184 = vmatpush2.msra.mxu0 0.0
  %1185 = vmatprep.subr.mxu0 0.0
  %1186 = vmatpush2.msra.mxu0 0.0
  %1187 = vmatprep.subr.mxu0 0.0
  %1188 = vmatpush2.msra.mxu0 0.0
  %1189 = vmatprep.subr.mxu0 0.0
  %1190 = vmatpush2.msra.mxu0 0.0
  %1191 = vmatprep.subr.mxu0 0.0
  %1192 = vmatpush2.msra.mxu0 0.0
  %1193 = vmatprep.subr.mxu0 0.0
  %1194 = vmatpush2.msra.mxu0 0.0
  %1195 = vmatprep.subr.mxu0 0.0
  %1196 = vmatpush2.msra.mxu0 0.0
  %1197 = vmatprep.subr.mxu0 0.0
  %1198 = vmatpush2.msra.mxu0 0.0
  %1199 = vmatprep.subr.mxu0 0.0
  %1200 = vmatpush2.msra.mxu0 0.0
  %1201 = vmatprep.subr.mxu0 0.0
  %1202 = vmatpush2.msra.mxu0 0.0
  %1203 = vmatprep.subr.mxu0 0.0
  %1204 = vmatpush2.msra.mxu0 0.0
  %1205 = vmatprep.mubr.f32.mxu0 0.0
  %1206 = vmatmul.mubr.f32.gmra.mxu0 %v1139
  %v1207 = vpop.f32.mrf.mxu0
  %v1208 = vadd.f32 0.0, %v1207
  %v1209 = vpop.f32.mrf.mxu0
  %1210 = vdwg.mxu0
  %v1211 = vlaneseq
  %v1212 = vshrl.u32 %v1211, 7
  %v1213 = vsub.s32 0, %v1212
  %v1214 = vrot.slane %v1208, %v1213
  %v1215 = vmul.f32 %v866, %v1214
  %v1216 = vmul.f32 %v871, %v1214
  %v1218 = vsel %vm966, %v1137, 0
  %1220 = vmatprep.subr.mxu0 0.0
  %1221 = vmatpush1.msra.mxu0 0.0
  %1222 = vmatprep.subr.mxu0 0.0
  %1223 = vmatpush1.msra.mxu0 0.0
  %1224 = vmatprep.subr.mxu0 0.0
  %1225 = vmatpush1.msra.mxu0 0.0
  %1226 = vmatprep.subr.mxu0 0.0
  %1227 = vmatpush1.msra.mxu0 0.0
  %1228 = vmatprep.subr.mxu0 0.0
  %1229 = vmatpush1.msra.mxu0 0.0
  %1230 = vmatprep.subr.mxu0 0.0
  %1231 = vmatpush1.msra.mxu0 0.0
  %1232 = vmatprep.subr.mxu0 0.0
  %1233 = vmatpush1.msra.mxu0 0.0
  %1234 = vmatprep.subr.mxu0 0.0
  %1235 = vmatpush1.msra.mxu0 0.0
  %1236 = vmatprep.subr.mxu0 0.0
  %1237 = vmatpush1.msra.mxu0 0.0
  %1238 = vmatprep.subr.mxu0 0.0
  %1239 = vmatpush1.msra.mxu0 0.0
  %1240 = vmatprep.subr.mxu0 0.0
  %1241 = vmatpush1.msra.mxu0 0.0
  %1242 = vmatprep.subr.mxu0 0.0
  %1243 = vmatpush1.msra.mxu0 0.0
  %1244 = vmatprep.subr.mxu0 0.0
  %1245 = vmatpush1.msra.mxu0 0.0
  %1246 = vmatprep.subr.mxu0 0.0
  %1247 = vmatpush1.msra.mxu0 0.0
  %1248 = vmatprep.subr.mxu0 0.0
  %1249 = vmatpush1.msra.mxu0 0.0
  %1250 = vmatprep.subr.mxu0 0.0
  %1251 = vmatpush1.msra.mxu0 %v882
  %1252 = vmatprep.subr.mxu0 0.0
  %1253 = vmatpush2.msra.mxu0 0.0
  %1254 = vmatprep.subr.mxu0 0.0
  %1255 = vmatpush2.msra.mxu0 0.0
  %1256 = vmatprep.subr.mxu0 0.0
  %1257 = vmatpush2.msra.mxu0 0.0
  %1258 = vmatprep.subr.mxu0 0.0
  %1259 = vmatpush2.msra.mxu0 0.0
  %1260 = vmatprep.subr.mxu0 0.0
  %1261 = vmatpush2.msra.mxu0 0.0
  %1262 = vmatprep.subr.mxu0 0.0
  %1263 = vmatpush2.msra.mxu0 0.0
  %1264 = vmatprep.subr.mxu0 0.0
  %1265 = vmatpush2.msra.mxu0 0.0
  %1266 = vmatprep.subr.mxu0 0.0
  %1267 = vmatpush2.msra.mxu0 0.0
  %1268 = vmatprep.subr.mxu0 0.0
  %1269 = vmatpush2.msra.mxu0 0.0
  %1270 = vmatprep.subr.mxu0 0.0
  %1271 = vmatpush2.msra.mxu0 0.0
  %1272 = vmatprep.subr.mxu0 0.0
  %1273 = vmatpush2.msra.mxu0 0.0
  %1274 = vmatprep.subr.mxu0 0.0
  %1275 = vmatpush2.msra.mxu0 0.0
  %1276 = vmatprep.subr.mxu0 0.0
  %1277 = vmatpush2.msra.mxu0 0.0
  %1278 = vmatprep.subr.mxu0 0.0
  %1279 = vmatpush2.msra.mxu0 0.0
  %1280 = vmatprep.subr.mxu0 0.0
  %1281 = vmatpush2.msra.mxu0 0.0
  %1282 = vmatprep.subr.mxu0 0.0
  %1283 = vmatpush2.msra.mxu0 0.0
  %1284 = vmatprep.mubr.f32.mxu0 0.0
  %1285 = vmatmul.mubr.f32.gmra.mxu0 %v1218
  %v1286 = vpop.f32.mrf.mxu0
  %v1287 = vadd.f32 0.0, %v1286
  %v1288 = vpop.f32.mrf.mxu0
  %1289 = vdwg.mxu0
  %v1290 = vlaneseq
  %v1291 = vshrl.u32 %v1290, 7
  %v1292 = vsub.s32 0, %v1291
  %v1293 = vrot.slane %v1287, %v1292
  %v1294 = vadd.f32 %v1215, %v1293
  %v1295 = vadd.f32 %v1216, %v1293
  %v1296 = vmax.f32 %v1294, 0.0
  %v1297 = vmax.f32 %v1295, 0.0
  %1298 = vst.msk [vmem:[#allocation3] sm:$0x1] %vm496, 0.0
  %1299 = vst.msk [vmem:[#allocation3 + $0x10] sm:$0x1] %vm496, 0.0
  %1300 = vst.msk [vmem:[#allocation3 + $0x9] sm:$0x1] %vm496, 0.0
  %1301 = vst.msk [vmem:[#allocation3 + $0x19] sm:$0x1] %vm496, 0.0
  %1302 = vst.msk [vmem:[#allocation3 + $0x1] sm:$0xff] %vm58, %v1296
  %1303 = vst.msk [vmem:[#allocation3 + $0x11] sm:$0xff] %vm58, %v1297
  %v1304 = vld [vmem:[#allocation3] sm:$0xff]
  %v1305 = vld [vmem:[#allocation3 + $0x10] sm:$0xff]
  %v1306 = vpack.c.bf16 %v1305, %v1304
  %v1307 = vld [vmem:[%s10] sm:$0xf]
  %v1308 = vld [vmem:[%s10 + $0x4] sm:$0xf]
  %v1309 = vld [vmem:[%s10 + $0x8] sm:$0xf]
  %v1310 = vld [vmem:[%s10 + $0xc] sm:$0xf]
  %v1311 = vld [vmem:[%s10 + $0x10] sm:$0xf]
  %v1312 = vld [vmem:[%s10 + $0x14] sm:$0xf]
  %v1313 = vld [vmem:[%s10 + $0x18] sm:$0xf]
  %v1314 = vld [vmem:[%s10 + $0x1c] sm:$0xf]
  %v1315 = vld [vmem:[#allocation3 + $0x1] sm:$0xff]
  %v1316 = vld [vmem:[#allocation3 + $0x11] sm:$0xff]
  %v1317 = vpack.c.bf16 %v1316, %v1315
  %s1318 = scalar_lea.vmem %s10, 32
  %v1319 = vld [vmem:[%s1318] sm:$0xf]
  %v1320 = vld [vmem:[%s1318 + $0x4] sm:$0xf]
  %v1321 = vld [vmem:[%s1318 + $0x8] sm:$0xf]
  %v1322 = vld [vmem:[%s1318 + $0xc] sm:$0xf]
  %v1323 = vld [vmem:[%s1318 + $0x10] sm:$0xf]
  %v1324 = vld [vmem:[%s1318 + $0x14] sm:$0xf]
  %v1325 = vld [vmem:[%s1318 + $0x18] sm:$0xf]
  %v1326 = vld [vmem:[%s1318 + $0x1c] sm:$0xf]
  %v1335 = vunpack.c.l.b16 %v1319
  %v1336 = vunpack.c.l.b16 %v1320
  %v1337 = vunpack.c.l.b16 %v1321
  %v1338 = vunpack.c.l.b16 %v1322
  %v1339 = vunpack.c.l.b16 %v1323
  %v1340 = vunpack.c.l.b16 %v1324
  %v1341 = vunpack.c.l.b16 %v1325
  %v1342 = vunpack.c.l.b16 %v1326
  %v1343 = vpack.c.b16 %v1336, %v1335
  %v1344 = vpack.c.b16 %v1338, %v1337
  %v1345 = vpack.c.b16 %v1340, %v1339
  %v1346 = vpack.c.b16 %v1342, %v1341
  %v1352 = vsel %vm58, %v1317, 0
  %1354 = vmatprep.subr.bf16.mxu0 0
  %1355 = vmatpush1.bf16.msra.mxu0 0
  %1356 = vmatprep.subr.bf16.mxu0 0
  %1357 = vmatpush1.bf16.msra.mxu0 0
  %1358 = vmatprep.subr.bf16.mxu0 0
  %1359 = vmatpush1.bf16.msra.mxu0 0
  %1360 = vmatprep.subr.bf16.mxu0 0
  %1361 = vmatpush1.bf16.msra.mxu0 0
  %1362 = vmatprep.subr.bf16.mxu0 0
  %1363 = vmatpush1.bf16.msra.mxu0 %v1346
  %1364 = vmatprep.subr.bf16.mxu0 0
  %1365 = vmatpush1.bf16.msra.mxu0 %v1345
  %1366 = vmatprep.subr.bf16.mxu0 0
  %1367 = vmatpush1.bf16.msra.mxu0 %v1344
  %1368 = vmatprep.subr.bf16.mxu0 0
  %1369 = vmatpush1.bf16.msra.mxu0 %v1343
  %1370 = vmatprep.subr.bf16.mxu0 0
  %1371 = vmatpush2.bf16.msra.mxu0 0
  %1372 = vmatprep.subr.bf16.mxu0 0
  %1373 = vmatpush2.bf16.msra.mxu0 0
  %1374 = vmatprep.subr.bf16.mxu0 0
  %1375 = vmatpush2.bf16.msra.mxu0 0
  %1376 = vmatprep.subr.bf16.mxu0 0
  %1377 = vmatpush2.bf16.msra.mxu0 0
  %1378 = vmatprep.subr.bf16.mxu0 0
  %1379 = vmatpush2.bf16.msra.mxu0 0
  %1380 = vmatprep.subr.bf16.mxu0 0
  %1381 = vmatpush2.bf16.msra.mxu0 0
  %1382 = vmatprep.subr.bf16.mxu0 0
  %1383 = vmatpush2.bf16.msra.mxu0 0
  %1384 = vmatprep.subr.bf16.mxu0 0
  %1385 = vmatpush2.bf16.msra.mxu0 0
  %1386 = vmatprep.mubr.bf16.mxu0 0
  %1387 = vmatmul.mubr.bf16.gmra.mxu0 %v1352
  %v1388 = vpop.f32.mrf.mxu0
  %v1389 = vadd.f32 0.0, %v1388
  %v1390 = vpop.f32.mrf.mxu0
  %v1391 = vpop.f32.mrf.mxu0
  %v1392 = vadd.f32 0.0, %v1391
  %v1393 = vpop.f32.mrf.mxu0
  %1394 = vdwg.mxu0
  %v1403 = vunpack.c.l.b16 %v1307
  %v1404 = vunpack.c.l.b16 %v1308
  %v1405 = vunpack.c.l.b16 %v1309
  %v1406 = vunpack.c.l.b16 %v1310
  %v1407 = vunpack.c.l.b16 %v1311
  %v1408 = vunpack.c.l.b16 %v1312
  %v1409 = vunpack.c.l.b16 %v1313
  %v1410 = vunpack.c.l.b16 %v1314
  %v1411 = vpack.c.b16 %v1404, %v1403
  %v1412 = vpack.c.b16 %v1406, %v1405
  %v1413 = vpack.c.b16 %v1408, %v1407
  %v1414 = vpack.c.b16 %v1410, %v1409
  %v1420 = vsel %vm58, %v1306, 0
  %1422 = vmatprep.subr.bf16.mxu0 0
  %1423 = vmatpush1.bf16.msra.mxu0 0
  %1424 = vmatprep.subr.bf16.mxu0 0
  %1425 = vmatpush1.bf16.msra.mxu0 0
  %1426 = vmatprep.subr.bf16.mxu0 0
  %1427 = vmatpush1.bf16.msra.mxu0 0
  %1428 = vmatprep.subr.bf16.mxu0 0
  %1429 = vmatpush1.bf16.msra.mxu0 0
  %1430 = vmatprep.subr.bf16.mxu0 0
  %1431 = vmatpush1.bf16.msra.mxu0 %v1414
  %1432 = vmatprep.subr.bf16.mxu0 0
  %1433 = vmatpush1.bf16.msra.mxu0 %v1413
  %1434 = vmatprep.subr.bf16.mxu0 0
  %1435 = vmatpush1.bf16.msra.mxu0 %v1412
  %1436 = vmatprep.subr.bf16.mxu0 0
  %1437 = vmatpush1.bf16.msra.mxu0 %v1411
  %1438 = vmatprep.subr.bf16.mxu0 0
  %1439 = vmatpush2.bf16.msra.mxu0 0
  %1440 = vmatprep.subr.bf16.mxu0 0
  %1441 = vmatpush2.bf16.msra.mxu0 0
  %1442 = vmatprep.subr.bf16.mxu0 0
  %1443 = vmatpush2.bf16.msra.mxu0 0
  %1444 = vmatprep.subr.bf16.mxu0 0
  %1445 = vmatpush2.bf16.msra.mxu0 0
  %1446 = vmatprep.subr.bf16.mxu0 0
  %1447 = vmatpush2.bf16.msra.mxu0 0
  %1448 = vmatprep.subr.bf16.mxu0 0
  %1449 = vmatpush2.bf16.msra.mxu0 0
  %1450 = vmatprep.subr.bf16.mxu0 0
  %1451 = vmatpush2.bf16.msra.mxu0 0
  %1452 = vmatprep.subr.bf16.mxu0 0
  %1453 = vmatpush2.bf16.msra.mxu0 0
  %1454 = vmatprep.mubr.bf16.mxu0 0
  %1455 = vmatmul.mubr.bf16.gmra.mxu0 %v1420
  %v1456 = vpop.f32.mrf.mxu0
  %v1457 = vadd.f32 %v1389, %v1456
  %v1458 = vpop.f32.mrf.mxu0
  %v1459 = vpop.f32.mrf.mxu0
  %v1460 = vadd.f32 %v1392, %v1459
  %v1461 = vpop.f32.mrf.mxu0
  %1462 = vdwg.mxu0
  %v1463 = vld [vmem:[#allocation3 + $0x2] sm:$0xff]
  %v1464 = vld [vmem:[#allocation3 + $0x12] sm:$0xff]
  %v1465 = vpack.c.bf16 %v1464, %v1463
  %s1466 = scalar_lea.vmem %s10, 64
  %v1467 = vld [vmem:[%s1466] sm:$0xf]
  %v1468 = vld [vmem:[%s1466 + $0x4] sm:$0xf]
  %v1469 = vld [vmem:[%s1466 + $0x8] sm:$0xf]
  %v1470 = vld [vmem:[%s1466 + $0xc] sm:$0xf]
  %v1471 = vld [vmem:[%s1466 + $0x10] sm:$0xf]
  %v1472 = vld [vmem:[%s1466 + $0x14] sm:$0xf]
  %v1473 = vld [vmem:[%s1466 + $0x18] sm:$0xf]
  %v1474 = vld [vmem:[%s1466 + $0x1c] sm:$0xf]
  %v1483 = vunpack.c.l.b16 %v1467
  %v1484 = vunpack.c.l.b16 %v1468
  %v1485 = vunpack.c.l.b16 %v1469
  %v1486 = vunpack.c.l.b16 %v1470
  %v1487 = vunpack.c.l.b16 %v1471
  %v1488 = vunpack.c.l.b16 %v1472
  %v1489 = vunpack.c.l.b16 %v1473
  %v1490 = vunpack.c.l.b16 %v1474
  %v1491 = vpack.c.b16 %v1484, %v1483
  %v1492 = vpack.c.b16 %v1486, %v1485
  %v1493 = vpack.c.b16 %v1488, %v1487
  %v1494 = vpack.c.b16 %v1490, %v1489
  %v1500 = vsel %vm58, %v1465, 0
  %1502 = vmatprep.subr.bf16.mxu0 0
  %1503 = vmatpush1.bf16.msra.mxu0 0
  %1504 = vmatprep.subr.bf16.mxu0 0
  %1505 = vmatpush1.bf16.msra.mxu0 0
  %1506 = vmatprep.subr.bf16.mxu0 0
  %1507 = vmatpush1.bf16.msra.mxu0 0
  %1508 = vmatprep.subr.bf16.mxu0 0
  %1509 = vmatpush1.bf16.msra.mxu0 0
  %1510 = vmatprep.subr.bf16.mxu0 0
  %1511 = vmatpush1.bf16.msra.mxu0 %v1494
  %1512 = vmatprep.subr.bf16.mxu0 0
  %1513 = vmatpush1.bf16.msra.mxu0 %v1493
  %1514 = vmatprep.subr.bf16.mxu0 0
  %1515 = vmatpush1.bf16.msra.mxu0 %v1492
  %1516 = vmatprep.subr.bf16.mxu0 0
  %1517 = vmatpush1.bf16.msra.mxu0 %v1491
  %1518 = vmatprep.subr.bf16.mxu0 0
  %1519 = vmatpush2.bf16.msra.mxu0 0
  %1520 = vmatprep.subr.bf16.mxu0 0
  %1521 = vmatpush2.bf16.msra.mxu0 0
  %1522 = vmatprep.subr.bf16.mxu0 0
  %1523 = vmatpush2.bf16.msra.mxu0 0
  %1524 = vmatprep.subr.bf16.mxu0 0
  %1525 = vmatpush2.bf16.msra.mxu0 0
  %1526 = vmatprep.subr.bf16.mxu0 0
  %1527 = vmatpush2.bf16.msra.mxu0 0
  %1528 = vmatprep.subr.bf16.mxu0 0
  %1529 = vmatpush2.bf16.msra.mxu0 0
  %1530 = vmatprep.subr.bf16.mxu0 0
  %1531 = vmatpush2.bf16.msra.mxu0 0
  %1532 = vmatprep.subr.bf16.mxu0 0
  %1533 = vmatpush2.bf16.msra.mxu0 0
  %1534 = vmatprep.mubr.bf16.mxu0 0
  %1535 = vmatmul.mubr.bf16.gmra.mxu0 %v1500
  %v1536 = vpop.f32.mrf.mxu0
  %v1537 = vadd.f32 0.0, %v1536
  %v1538 = vpop.f32.mrf.mxu0
  %v1539 = vpop.f32.mrf.mxu0
  %v1540 = vadd.f32 0.0, %v1539
  %v1541 = vpop.f32.mrf.mxu0
  %1542 = vdwg.mxu0
  %v1543 = vadd.f32 %v1457, %v1537
  %v1544 = vadd.f32 %v1460, %v1540
  %v1545 = vld [vmem:[%s11] sm:$0xff]
  %v1546 = vld [vmem:[%s11 + $0x8] sm:$0xff]
  %v1548 = vsel %vm792, %v1545, 0
  %v1551 = vsel %vm792, %v1546, 0
  %1553 = vmatprep.subr.mxu0 0.0
  %1554 = vmatpush1.msra.mxu0 0.0
  %1555 = vmatprep.subr.mxu0 0.0
  %1556 = vmatpush1.msra.mxu0 0.0
  %1557 = vmatprep.subr.mxu0 0.0
  %1558 = vmatpush1.msra.mxu0 0.0
  %1559 = vmatprep.subr.mxu0 0.0
  %1560 = vmatpush1.msra.mxu0 0.0
  %1561 = vmatprep.subr.mxu0 0.0
  %1562 = vmatpush1.msra.mxu0 0.0
  %1563 = vmatprep.subr.mxu0 0.0
  %1564 = vmatpush1.msra.mxu0 0.0
  %1565 = vmatprep.subr.mxu0 0.0
  %1566 = vmatpush1.msra.mxu0 0.0
  %1567 = vmatprep.subr.mxu0 0.0
  %1568 = vmatpush1.msra.mxu0 0.0
  %1569 = vmatprep.subr.mxu0 0.0
  %1570 = vmatpush1.msra.mxu0 0.0
  %1571 = vmatprep.subr.mxu0 0.0
  %1572 = vmatpush1.msra.mxu0 0.0
  %1573 = vmatprep.subr.mxu0 0.0
  %1574 = vmatpush1.msra.mxu0 0.0
  %1575 = vmatprep.subr.mxu0 0.0
  %1576 = vmatpush1.msra.mxu0 0.0
  %1577 = vmatprep.subr.mxu0 0.0
  %1578 = vmatpush1.msra.mxu0 %v48
  %1579 = vmatprep.subr.mxu0 0.0
  %1580 = vmatpush1.msra.mxu0 %v47
  %1581 = vmatprep.subr.mxu0 0.0
  %1582 = vmatpush1.msra.mxu0 %v46
  %1583 = vmatprep.subr.mxu0 0.0
  %1584 = vmatpush1.msra.mxu0 %v45
  %1585 = vmatprep.subr.mxu0 0.0
  %1586 = vmatpush2.msra.mxu0 0.0
  %1587 = vmatprep.subr.mxu0 0.0
  %1588 = vmatpush2.msra.mxu0 0.0
  %1589 = vmatprep.subr.mxu0 0.0
  %1590 = vmatpush2.msra.mxu0 0.0
  %1591 = vmatprep.subr.mxu0 0.0
  %1592 = vmatpush2.msra.mxu0 0.0
  %1593 = vmatprep.subr.mxu0 0.0
  %1594 = vmatpush2.msra.mxu0 0.0
  %1595 = vmatprep.subr.mxu0 0.0
  %1596 = vmatpush2.msra.mxu0 0.0
  %1597 = vmatprep.subr.mxu0 0.0
  %1598 = vmatpush2.msra.mxu0 0.0
  %1599 = vmatprep.subr.mxu0 0.0
  %1600 = vmatpush2.msra.mxu0 0.0
  %1601 = vmatprep.subr.mxu0 0.0
  %1602 = vmatpush2.msra.mxu0 0.0
  %1603 = vmatprep.subr.mxu0 0.0
  %1604 = vmatpush2.msra.mxu0 0.0
  %1605 = vmatprep.subr.mxu0 0.0
  %1606 = vmatpush2.msra.mxu0 0.0
  %1607 = vmatprep.subr.mxu0 0.0
  %1608 = vmatpush2.msra.mxu0 0.0
  %1609 = vmatprep.subr.mxu0 0.0
  %1610 = vmatpush2.msra.mxu0 0.0
  %1611 = vmatprep.subr.mxu0 0.0
  %1612 = vmatpush2.msra.mxu0 0.0
  %1613 = vmatprep.subr.mxu0 0.0
  %1614 = vmatpush2.msra.mxu0 0.0
  %1615 = vmatprep.subr.mxu0 0.0
  %1616 = vmatpush2.msra.mxu0 0.0
  %1617 = vmatprep.mubr.f32.mxu0 0.0
  %1618 = vmatmul.mubr.f32.gmra.mxu0 %v1548
  %v1619 = vpop.f32.mrf.mxu0
  %v1620 = vadd.f32 0.0, %v1619
  %v1621 = vpop.f32.mrf.mxu0
  %1622 = vmatprep.mubr.f32.mxu0 0.0
  %1623 = vmatmul.mubr.f32.gmra.mxu0 %v1551
  %v1624 = vpop.f32.mrf.mxu0
  %v1625 = vadd.f32 0.0, %v1624
  %v1626 = vpop.f32.mrf.mxu0
  %1627 = vdwg.mxu0
  %v1628 = vpack.c.bf16 %v1625, %v1620
  %v1629 = vld [vmem:[%s12] sm:$0xf]
  %v1630 = vld [vmem:[%s12 + $0x4] sm:$0xf]
  %v1631 = vld [vmem:[%s12 + $0x8] sm:$0xf]
  %v1632 = vld [vmem:[%s12 + $0xc] sm:$0xf]
  %v1633 = vld [vmem:[%s12 + $0x10] sm:$0xf]
  %v1634 = vld [vmem:[%s12 + $0x14] sm:$0xf]
  %v1635 = vld [vmem:[%s12 + $0x18] sm:$0xf]
  %v1636 = vld [vmem:[%s12 + $0x1c] sm:$0xf]
  %v1645 = vunpack.c.l.b16 %v1629
  %v1646 = vunpack.c.l.b16 %v1630
  %v1647 = vunpack.c.l.b16 %v1631
  %v1648 = vunpack.c.l.b16 %v1632
  %v1649 = vunpack.c.l.b16 %v1633
  %v1650 = vunpack.c.l.b16 %v1634
  %v1651 = vunpack.c.l.b16 %v1635
  %v1652 = vunpack.c.l.b16 %v1636
  %v1653 = vpack.c.b16 %v1646, %v1645
  %v1654 = vpack.c.b16 %v1648, %v1647
  %v1655 = vpack.c.b16 %v1650, %v1649
  %v1656 = vpack.c.b16 %v1652, %v1651
  %v1662 = vsel %vm58, %v1628, 0
  %1664 = vmatprep.subr.bf16.mxu0 0
  %1665 = vmatpush1.bf16.msra.mxu0 0
  %1666 = vmatprep.subr.bf16.mxu0 0
  %1667 = vmatpush1.bf16.msra.mxu0 0
  %1668 = vmatprep.subr.bf16.mxu0 0
  %1669 = vmatpush1.bf16.msra.mxu0 0
  %1670 = vmatprep.subr.bf16.mxu0 0
  %1671 = vmatpush1.bf16.msra.mxu0 0
  %1672 = vmatprep.subr.bf16.mxu0 0
  %1673 = vmatpush1.bf16.msra.mxu0 %v1656
  %1674 = vmatprep.subr.bf16.mxu0 0
  %1675 = vmatpush1.bf16.msra.mxu0 %v1655
  %1676 = vmatprep.subr.bf16.mxu0 0
  %1677 = vmatpush1.bf16.msra.mxu0 %v1654
  %1678 = vmatprep.subr.bf16.mxu0 0
  %1679 = vmatpush1.bf16.msra.mxu0 %v1653
  %1680 = vmatprep.subr.bf16.mxu0 0
  %1681 = vmatpush2.bf16.msra.mxu0 0
  %1682 = vmatprep.subr.bf16.mxu0 0
  %1683 = vmatpush2.bf16.msra.mxu0 0
  %1684 = vmatprep.subr.bf16.mxu0 0
  %1685 = vmatpush2.bf16.msra.mxu0 0
  %1686 = vmatprep.subr.bf16.mxu0 0
  %1687 = vmatpush2.bf16.msra.mxu0 0
  %1688 = vmatprep.subr.bf16.mxu0 0
  %1689 = vmatpush2.bf16.msra.mxu0 0
  %1690 = vmatprep.subr.bf16.mxu0 0
  %1691 = vmatpush2.bf16.msra.mxu0 0
  %1692 = vmatprep.subr.bf16.mxu0 0
  %1693 = vmatpush2.bf16.msra.mxu0 0
  %1694 = vmatprep.subr.bf16.mxu0 0
  %1695 = vmatpush2.bf16.msra.mxu0 0
  %1696 = vmatprep.mubr.bf16.mxu0 0
  %1697 = vmatmul.mubr.bf16.gmra.mxu0 %v1662
  %v1698 = vpop.f32.mrf.mxu0
  %v1699 = vadd.f32 0.0, %v1698
  %v1700 = vpop.f32.mrf.mxu0
  %v1701 = vpop.f32.mrf.mxu0
  %v1702 = vadd.f32 0.0, %v1701
  %v1703 = vpop.f32.mrf.mxu0
  %1704 = vdwg.mxu0
  %v1705 = vadd.f32 %v1543, %v1699
  %v1706 = vadd.f32 %v1544, %v1702
  %v1707 = vpack.c.bf16 %v1706, %v1705
  %v1709 = vunpack.c.l.b16 %v1707
  %v1710 = vunpack.c.h.b16 %v1707
  %v1711 = vpack.c.b16 %v1709, %v1709
  %v1712 = vpack.c.b16 %v1710, %v1710
  %vm1715 = vcmask 519168
  %1716 = vst.msk [vmem:[%s13] sm:$0xf] %vm1715, %v1711
  %1717 = vst.msk [vmem:[%s13 + $0x4] sm:$0xf] %vm1715, %v1712
  // Predicated region
  $region54: #{resnet_stage_forward.2} parent=0 // pred_check
    _
  $region55: #{resnet_stage_forward.2} parent=0 // pred_check_branch
    %1719 = sbr.rel (0) target = $region57
  $region56: #{resnet_stage_forward.2} parent=0 // pred_region
    _
  $region57: #{resnet_stage_forward.2} parent=0 // pred_fallthru
    _
  // Predicated region
  $region58: #{resnet_stage_forward.2} parent=0 // pred_check
    _
  $region59: #{resnet_stage_forward.2} parent=0 // pred_check_branch
    %1721 = sbr.rel (0) target = $region61
  $region60: #{resnet_stage_forward.2} parent=0 // pred_region
    _
  $region61: #{resnet_stage_forward.2} parent=0 // pred_fallthru
    _

</llo_original>
